<compile_context>
chip_gen: v6e
topology: v6e:2x2x1
jax: 0.10.0
libtpu: 0.0.40
codegen_flags: <defaults>
</compile_context>

<pallas_src>
import functools

import jax
import jax.numpy as jnp
from jax import lax
from jax.experimental import pallas as pl
from jax.experimental.pallas import tpu as pltpu


def _resblock_kernel(ks, pad, W, Cin, Cout, has_adjust,
                     lhs_ref, w1_ref, w2_ref, bias_ref, o_ref, h_scr):
    """One grid step: tn rows of the (N, W, ks*Cin) im2col input -> (tn*W, Cout) output."""
    tn = lhs_ref.shape[0]
    nrow = tn * W
    K1 = ks * Cin
    K2 = ks * Cout

    lhs1 = lhs_ref[...]                                        # (tn, W, ks*Cin) bf16

    # ---- conv1 (+ folded BN1) fused with the 1x1 adjust conv: ONE MXU push ----
    r1 = jnp.dot(lhs1.reshape(nrow, K1), w1_ref[...],
                 preferred_element_type=jnp.float32)           # (nrow, Cout or 2*Cout) f32
    h = jnp.maximum(r1[:, :Cout] + bias_ref[0:1, :], 0.0)      # conv1 + BN1 + ReLU

    if has_adjust:
        res = r1[:, Cout:] + bias_ref[2:3, :]                  # adjust(x) residual (f32)
    else:
        # identity residual == centre-tap columns of the im2col LHS (bf16 -> f32)
        res = lhs1[:, :, pad * Cin:(pad + 1) * Cin].reshape(nrow, Cin).astype(jnp.float32)

    # ---- conv2 (+ folded BN2): im2col via a W-padded VMEM scratch, ONE MXU push ----
    if pad:
        zpad = jnp.zeros((tn, pad, Cout), jnp.bfloat16)
        h_scr[:, 0:pad, :] = zpad                              # cheap: 2*pad columns / step
        h_scr[:, pad + W:, :] = zpad
    h_scr[:, pad:pad + W, :] = h.reshape(tn, W, Cout).astype(jnp.bfloat16)
    lhs2 = jnp.concatenate([h_scr[:, k:k + W, :] for k in range(ks)],
                           axis=-1)                            # (tn, W, ks*Cout) bf16
    y = jnp.dot(lhs2.reshape(nrow, K2), w2_ref[...],
                preferred_element_type=jnp.float32)
    y = jnp.maximum(y + bias_ref[1:2, :], 0.0)                 # conv2 + BN2 + ReLU

    o_ref[...] = (y + res).astype(o_ref.dtype)                 # (tn*W, Cout)


def _fold_bn(w, b, gamma, beta, mean, var, cin, ks, eps):
    """Fold eval-mode BN into the conv weight/bias; weight -> (ks*cin, cout)."""
    scale = gamma / jnp.sqrt(var + eps)                        # (cout,)
    wr = jnp.transpose(w[:, :, 0, :], (2, 1, 0))               # (ks, cin, cout)
    wm = (wr * scale[None, None, :]).reshape(ks * cin, -1)
    bf = (b - mean) * scale + beta
    return wm, bf


def _pick_row_tile(n_rows, bytes_per_row, target_bytes=1 << 20):
    """Largest row tile (multiple of 8) under a per-step byte budget; never degenerates."""
    cap = max(8, (target_bytes // max(1, bytes_per_row)) // 8 * 8)
    return min(cap, pl.cdiv(n_rows, 8) * 8)


def res_block(x, params, *, ks, eps=1e-5, row_bytes_budget=1 << 20):
    """x: (B, Cin, H, W) f32  ->  (B, Cout, H, W) f32.  stride == 1, odd ks, eval-mode BN."""
    assert ks % 2 == 1, "only odd kernel_size gives same-width output with pad=(ks-1)//2"
    B, Cin, H, W = x.shape
    Cout = params["w1"].shape[0]
    pad = (ks - 1) // 2
    has_adjust = "adj_w" in params
    if not has_adjust:
        assert Cin == Cout, "identity residual requires Cin == Cout"
    K1 = ks * Cin

    # --- fold BN into conv weights/biases (once, in XLA) ---
    w1m, b1f = _fold_bn(params["w1"], params["b1"], params["bn1_gamma"], params["bn1_beta"],
                        params["bn1_mean"], params["bn1_var"], Cin, ks, eps)
    w2m, b2f = _fold_bn(params["w2"], params["b2"], params["bn2_gamma"], params["bn2_beta"],
                        params["bn2_mean"], params["bn2_var"], Cout, ks, eps)

    if has_adjust:
        # 1x1 adjust conv rides along as extra output columns of conv1's RHS
        # (non-zero only on the centre-tap rows).
        wadj = jnp.transpose(params["adj_w"][:, :, 0, 0], (1, 0))            # (Cin, Cout)
        wadj_full = jnp.zeros((K1, Cout), jnp.float32)
        wadj_full = wadj_full.at[pad * Cin:(pad + 1) * Cin, :].set(wadj)
        w1c = jnp.concatenate([w1m, wadj_full], axis=1)                      # (K1, 2*Cout)
        bias = jnp.stack([b1f, b2f, params["adj_b"]], axis=0)                # (3, Cout)
    else:
        w1c = w1m                                                            # (K1, Cout)
        bias = jnp.stack([b1f, b2f], axis=0)                                 # (2, Cout)
    w1c = w1c.astype(jnp.bfloat16)
    w2b = w2m.astype(jnp.bfloat16)
    bias = bias.astype(jnp.float32)
    n_out_cols = w1c.shape[1]

    # --- channels-last rows + wrapper-side W padding + im2col LHS (bf16 DMA stream) ---
    N = B * H
    xr = jnp.transpose(x, (0, 2, 3, 1)).reshape(N, W, Cin)

    bytes_per_row = W * (K1 * 2 + Cout * 4)            # bf16 im2col in + f32 out per row
    tn = _pick_row_tile(N, bytes_per_row, row_bytes_budget)
    Np = pl.cdiv(N, tn) * tn                           # pad rows up; no degenerate tiles

    xr = jnp.pad(xr, ((0, Np - N), (pad, pad), (0, 0)))                       # (Np, W+2p, Cin)
    lhs1 = jnp.concatenate([xr[:, k:k + W, :] for k in range(ks)],
                           axis=-1).astype(jnp.bfloat16)                      # (Np, W, ks*Cin)

    kernel = functools.partial(_resblock_kernel, ks, pad, W, Cin, Cout, has_adjust)

    out = pl.pallas_call(
        kernel,
        out_shape=jax.ShapeDtypeStruct((Np * W, Cout), x.dtype),
        grid_spec=pltpu.PrefetchScalarGridSpec(
            num_scalar_prefetch=0,
            grid=(Np // tn,),
            in_specs=[
                pl.BlockSpec((tn, W, K1), lambda i: (i, 0, 0)),        # im2col rows (bf16)
                pl.BlockSpec((K1, n_out_cols), lambda i: (0, 0)),      # W1 (+adjust), resident
                pl.BlockSpec((ks * Cout, Cout), lambda i: (0, 0)),     # W2, resident
                pl.BlockSpec((bias.shape[0], Cout), lambda i: (0, 0)),  # stacked biases
            ],
            out_specs=pl.BlockSpec((tn * W, Cout), lambda i: (i, 0)),
            scratch_shapes=[pltpu.VMEM((tn, W + 2 * pad, Cout), jnp.bfloat16)],
        ),
        compiler_params=pltpu.CompilerParams(
            dimension_semantics=("parallel",)),
    )(lhs1, w1c, w2b, bias)

    out = out.reshape(Np, W, Cout)[:N].reshape(B, H, W, Cout)
    return jnp.transpose(out, (0, 3, 1, 2))


# ------------------------- test harness -------------------------

def init_params(key, cin, cout, ks):
    k = jax.random.split(key, 14)

    def conv_w(kk, co, ci, kw):
        return jax.random.normal(kk, (co, ci, 1, kw), jnp.float32) / jnp.sqrt(ci * kw)

    p = dict(
        w1=conv_w(k[0], cout, cin, ks),
        b1=0.05 * jax.random.normal(k[1], (cout,), jnp.float32),
        bn1_gamma=1.0 + 0.1 * jax.random.normal(k[2], (cout,), jnp.float32),
        bn1_beta=0.1 * jax.random.normal(k[3], (cout,), jnp.float32),
        bn1_mean=0.1 * jax.random.normal(k[4], (cout,), jnp.float32),
        bn1_var=0.9 + 0.1 * jax.random.uniform(k[5], (cout,), jnp.float32),
        w2=conv_w(k[6], cout, cout, ks),
        b2=0.05 * jax.random.normal(k[7], (cout,), jnp.float32),
        bn2_gamma=1.0 + 0.1 * jax.random.normal(k[8], (cout,), jnp.float32),
        bn2_beta=0.1 * jax.random.normal(k[9], (cout,), jnp.float32),
        bn2_mean=0.1 * jax.random.normal(k[10], (cout,), jnp.float32),
        bn2_var=0.9 + 0.1 * jax.random.uniform(k[11], (cout,), jnp.float32),
    )
    if cin != cout:
        p["adj_w"] = jax.random.normal(k[12], (cout, cin, 1, 1), jnp.float32) / jnp.sqrt(cin)
        p["adj_b"] = 0.05 * jax.random.normal(k[13], (cout,), jnp.float32)
    return p


def reference(x, params, *, ks, eps=1e-5):
    pad = (ks - 1) // 2
    dn = ("NCHW", "OIHW", "NCHW")

    def conv_bn_relu(z, w, b, gamma, beta, mean, var):
        y = lax.conv_general_dilated(z, w, window_strides=(1, 1),
                                     padding=((0, 0), (pad, pad)),
                                     dimension_numbers=dn,
                                     precision=lax.Precision.HIGHEST)
        y = y + b[None, :, None, None]
        scale = gamma / jnp.sqrt(var + eps)
        y = (y - mean[None, :, None, None]) * scale[None, :, None, None] \
            + beta[None, :, None, None]
        return jnp.maximum(y, 0.0)

    h = conv_bn_relu(x, params["w1"], params["b1"], params["bn1_gamma"],
                     params["bn1_beta"], params["bn1_mean"], params["bn1_var"])
    h = conv_bn_relu(h, params["w2"], params["b2"], params["bn2_gamma"],
                     params["bn2_beta"], params["bn2_mean"], params["bn2_var"])
    if "adj_w" in params:
        res = lax.conv_general_dilated(x, params["adj_w"], window_strides=(1, 1),
                                       padding=((0, 0), (0, 0)),
                                       dimension_numbers=dn,
                                       precision=lax.Precision.HIGHEST)
        res = res + params["adj_b"][None, :, None, None]
    else:
        res = x
    return h + res


if __name__ == "__main__":
    key = jax.random.PRNGKey(0)
    kx, kp = jax.random.split(key)

    B, Cin, Cout, H, W, ks = 2, 16, 32, 8, 64, 3    # stride = 1

    # Case 1: Cin != Cout  (1x1 adjust conv fused into conv1's RHS)
    x = jax.random.normal(kx, (B, Cin, H, W), jnp.float32)
    params = init_params(kp, Cin, Cout, ks)
    out = jax.block_until_ready(res_block(x, params, ks=ks))
    ref = reference(x, params, ks=ks)
    assert out.shape == (B, Cout, H, W)
    # bf16 MXU operands / bf16 im2col input (f32 accumulation) -> loosened tolerance.
    assert jnp.allclose(out, ref, atol=5e-2, rtol=5e-2)

    # Case 2: Cin == Cout  (identity residual taken from the centre-tap im2col columns)
    x2 = jax.random.normal(jax.random.PRNGKey(2), (B, Cout, H, W), jnp.float32)
    params2 = init_params(jax.random.PRNGKey(1), Cout, Cout, ks)
    out2 = jax.block_until_ready(res_block(x2, params2, ks=ks))
    ref2 = reference(x2, params2, ks=ks)
    assert jnp.allclose(out2, ref2, atol=5e-2, rtol=5e-2)

    print("KERNEL_OK")
</pallas_src>

<mosaic_0001>
module attributes {stable_mosaic.version = 11 : i64} {
  func.func @_resblock_kernel(%arg0: i32, %arg1: memref<16x64x48xbf16, #tpu.memory_space<vmem>>, %arg2: memref<48x64xbf16, #tpu.memory_space<vmem>>, %arg3: memref<96x32xbf16, #tpu.memory_space<vmem>>, %arg4: memref<3x32xf32, #tpu.memory_space<vmem>>, %arg5: memref<1024x32xf32, #tpu.memory_space<vmem>>, %arg6: memref<16x66x32xbf16, #tpu.memory_space<vmem>>) attributes {dimension_semantics = [#tpu.dimension_semantics<parallel>], iteration_bounds = array<i64: 1>, scalar_prefetch = 0 : i64, scratch_operands = 1 : i64, tpu.core_type = #tpu.core_type<tc>, window_params = [{transform_indices = @transform_0, window_bounds = array<i64: 16, 64, 48>}, {pipeline_mode = #tpu.pipeline_mode<synchronous>, transform_indices = @transform_1, window_bounds = array<i64: 48, 64>}, {pipeline_mode = #tpu.pipeline_mode<synchronous>, transform_indices = @transform_2, window_bounds = array<i64: 96, 32>}, {pipeline_mode = #tpu.pipeline_mode<synchronous>, transform_indices = @transform_3, window_bounds = array<i64: 3, 32>}, {transform_indices = @transform_4, window_bounds = array<i64: 1024, 32>}]} {
    %c0 = arith.constant 0 : index
    %c0_0 = arith.constant 0 : index
    %c0_1 = arith.constant 0 : index
    %0 = vector.load %arg1[%c0, %c0_0, %c0_1] : memref<16x64x48xbf16, #tpu.memory_space<vmem>>, vector<16x64x48xbf16>
    %1 = vector.shape_cast %0 : vector<16x64x48xbf16> to vector<1024x48xbf16>
    %c0_2 = arith.constant 0 : index
    %c0_3 = arith.constant 0 : index
    %2 = vector.load %arg2[%c0_2, %c0_3] : memref<48x64xbf16, #tpu.memory_space<vmem>>, vector<48x64xbf16>
    %cst = arith.constant dense<0.000000e+00> : vector<1024x64xf32>
    %3 = tpu.matmul %1, %2, %cst {dimension_numbers = #tpu.dot_dimension_numbers<[1], [0], [0], [1], [0, 0, 1, 1], [], []>} : vector<1024x48xbf16>, vector<48x64xbf16>, vector<1024x64xf32> -> vector<1024x64xf32>
    %4 = vector.extract_strided_slice %3 {offsets = [0, 0], sizes = [1024, 32], strides = [1, 1]} : vector<1024x64xf32> to vector<1024x32xf32>
    %c0_4 = arith.constant 0 : index
    %c0_5 = arith.constant 0 : index
    %5 = vector.load %arg4[%c0_4, %c0_5] : memref<3x32xf32, #tpu.memory_space<vmem>>, vector<1x32xf32>
    %6 = vector.broadcast %5 : vector<1x32xf32> to vector<1024x32xf32>
    %7 = arith.addf %4, %6 : vector<1024x32xf32>
    %cst_6 = arith.constant 0.000000e+00 : f32
    %8 = vector.broadcast %cst_6 : f32 to vector<1024x32xf32>
    %9 = arith.maximumf %7, %8 : vector<1024x32xf32>
    %10 = vector.extract_strided_slice %3 {offsets = [0, 32], sizes = [1024, 32], strides = [1, 1]} : vector<1024x64xf32> to vector<1024x32xf32>
    %c2 = arith.constant 2 : index
    %c0_7 = arith.constant 0 : index
    %11 = vector.load %arg4[%c2, %c0_7] : memref<3x32xf32, #tpu.memory_space<vmem>>, vector<1x32xf32>
    %12 = vector.broadcast %11 : vector<1x32xf32> to vector<1024x32xf32>
    %13 = arith.addf %10, %12 : vector<1024x32xf32>
    %cst_8 = arith.constant 0.000000e+00 : bf16
    %14 = vector.broadcast %cst_8 : bf16 to vector<16x1x32xbf16>
    %c0_9 = arith.constant 0 : index
    %c0_10 = arith.constant 0 : index
    %c0_11 = arith.constant 0 : index
    %15 = vector.load %arg6[%c0_9, %c0_10, %c0_11] : memref<16x66x32xbf16, #tpu.memory_space<vmem>>, vector<16x1x32xbf16>
    tpu.vector_store %arg6[%c0_9, %c0_10, %c0_11], %14 {strides = array<i32>} : memref<16x66x32xbf16, #tpu.memory_space<vmem>>, vector<16x1x32xbf16>,
    %c0_12 = arith.constant 0 : index
    %c65 = arith.constant 65 : index
    %c0_13 = arith.constant 0 : index
    %16 = vector.load %arg6[%c0_12, %c65, %c0_13] : memref<16x66x32xbf16, #tpu.memory_space<vmem>>, vector<16x1x32xbf16>
    tpu.vector_store %arg6[%c0_12, %c65, %c0_13], %14 {strides = array<i32>} : memref<16x66x32xbf16, #tpu.memory_space<vmem>>, vector<16x1x32xbf16>,
    %17 = vector.shape_cast %9 : vector<1024x32xf32> to vector<16x64x32xf32>
    %18 = arith.truncf %17 : vector<16x64x32xf32> to vector<16x64x32xbf16>
    %c0_14 = arith.constant 0 : index
    %c1 = arith.constant 1 : index
    %c0_15 = arith.constant 0 : index
    %19 = vector.load %arg6[%c0_14, %c1, %c0_15] : memref<16x66x32xbf16, #tpu.memory_space<vmem>>, vector<16x64x32xbf16>
    tpu.vector_store %arg6[%c0_14, %c1, %c0_15], %18 {strides = array<i32>} : memref<16x66x32xbf16, #tpu.memory_space<vmem>>, vector<16x64x32xbf16>,
    %c0_16 = arith.constant 0 : index
    %c0_17 = arith.constant 0 : index
    %c0_18 = arith.constant 0 : index
    %20 = vector.load %arg6[%c0_16, %c0_17, %c0_18] : memref<16x66x32xbf16, #tpu.memory_space<vmem>>, vector<16x64x32xbf16>
    %c0_19 = arith.constant 0 : index
    %c1_20 = arith.constant 1 : index
    %c0_21 = arith.constant 0 : index
    %21 = vector.load %arg6[%c0_19, %c1_20, %c0_21] : memref<16x66x32xbf16, #tpu.memory_space<vmem>>, vector<16x64x32xbf16>
    %c0_22 = arith.constant 0 : index
    %c2_23 = arith.constant 2 : index
    %c0_24 = arith.constant 0 : index
    %22 = vector.load %arg6[%c0_22, %c2_23, %c0_24] : memref<16x66x32xbf16, #tpu.memory_space<vmem>>, vector<16x64x32xbf16>
    %23 = tpu.concatenate %20, %21, %22 in 2 : vector<16x64x32xbf16>, vector<16x64x32xbf16>, vector<16x64x32xbf16> -> vector<16x64x96xbf16>
    %24 = vector.shape_cast %23 : vector<16x64x96xbf16> to vector<1024x96xbf16>
    %c0_25 = arith.constant 0 : index
    %c0_26 = arith.constant 0 : index
    %25 = vector.load %arg3[%c0_25, %c0_26] : memref<96x32xbf16, #tpu.memory_space<vmem>>, vector<96x32xbf16>
    %cst_27 = arith.constant dense<0.000000e+00> : vector<1024x32xf32>
    %26 = tpu.matmul %24, %25, %cst_27 {dimension_numbers = #tpu.dot_dimension_numbers<[1], [0], [0], [1], [0, 0, 1, 1], [], []>} : vector<1024x96xbf16>, vector<96x32xbf16>, vector<1024x32xf32> -> vector<1024x32xf32>
    %c1_28 = arith.constant 1 : index
    %c0_29 = arith.constant 0 : index
    %27 = vector.load %arg4[%c1_28, %c0_29] : memref<3x32xf32, #tpu.memory_space<vmem>>, vector<1x32xf32>
    %28 = vector.broadcast %27 : vector<1x32xf32> to vector<1024x32xf32>
    %29 = arith.addf %26, %28 : vector<1024x32xf32>
    %cst_30 = arith.constant 0.000000e+00 : f32
    %30 = vector.broadcast %cst_30 : f32 to vector<1024x32xf32>
    %31 = arith.maximumf %29, %30 : vector<1024x32xf32>
    %32 = arith.addf %31, %13 : vector<1024x32xf32>
    %c0_31 = arith.constant 0 : index
    %c0_32 = arith.constant 0 : index
    %33 = vector.load %arg5[%c0_31, %c0_32] : memref<1024x32xf32, #tpu.memory_space<vmem>>, vector<1024x32xf32>
    tpu.vector_store %arg5[%c0_31, %c0_32], %32 {strides = array<i32>} : memref<1024x32xf32, #tpu.memory_space<vmem>>, vector<1024x32xf32>,
    return
  }
  func.func @transform_0(%arg0: i32) -> (i32, i32, i32) {
    %c0_i32 = arith.constant 0 : i32
    %c0_i32_0 = arith.constant 0 : i32
    %c0_i32_1 = arith.constant 0 : i32
    return %arg0, %c0_i32, %c0_i32_0 : i32, i32, i32
  }
  func.func @transform_1(%arg0: i32) -> (i32, i32) {
    %c0_i32 = arith.constant 0 : i32
    %c0_i32_0 = arith.constant 0 : i32
    %c0_i32_1 = arith.constant 0 : i32
    return %c0_i32, %c0_i32_0 : i32, i32
  }
  func.func @transform_2(%arg0: i32) -> (i32, i32) {
    %c0_i32 = arith.constant 0 : i32
    %c0_i32_0 = arith.constant 0 : i32
    %c0_i32_1 = arith.constant 0 : i32
    return %c0_i32, %c0_i32_0 : i32, i32
  }
  func.func @transform_3(%arg0: i32) -> (i32, i32) {
    %c0_i32 = arith.constant 0 : i32
    %c0_i32_0 = arith.constant 0 : i32
    %c0_i32_1 = arith.constant 0 : i32
    return %c0_i32, %c0_i32_0 : i32, i32
  }
  func.func @transform_4(%arg0: i32) -> (i32, i32) {
    %c0_i32 = arith.constant 0 : i32
    %c0_i32_0 = arith.constant 0 : i32
    return %arg0, %c0_i32 : i32, i32
  }
}

</mosaic_0001>

<llo_original>
// kernel: tpu_custom_call.1
$region0: #{tpu_custom_call.1}
  #allocation0 [shape = 'u32[]', space=smem, size = 0x4, offset = 0x4, fixed_abs, tag = 'smem constant byte address 0x4 - core index']
  #allocation1 [shape = 'u32[144,128]{1,0:T(1,128)}', space=vmem, size = 0x12000, scoped, tag = 'internal scratch']
  #allocation2 [shape = 'bf16[16,66,32]{2,1,0:T(8,128)(2,1)}', space=vmem, size = 0x48000, scoped, tag = 'scratch operand']
  %s0 = inlined_call_operand.vmem [shape: bf16[16,64,48], index: 0, kind: input, shape index: {}]
  %s1 = inlined_call_operand.vmem [shape: bf16[48,64], index: 1, kind: input, shape index: {}]
  %s2 = inlined_call_operand.vmem [shape: bf16[96,32], index: 2, kind: input, shape index: {}]
  %s3 = inlined_call_operand.vmem [shape: f32[3,32], index: 3, kind: input, shape index: {}]
  %s4 = inlined_call_operand.vmem [shape: f32[1024,32], index: 4, kind: output, shape index: {}]
  %s5 = sld [smem:[#allocation0]]
  $region26: #{tpu_custom_call.1} parent=0
    _
  %s7 = ssub.s32 1, %s5
  %s8 = scalar_select 0, %s7, %s5
  // Predicated region
  $region2: #{tpu_custom_call.1} parent=0 // pred_check
    _
  $region3: #{tpu_custom_call.1} parent=0 // pred_check_branch
    %10 = sbr.rel (0) target = $region5
  $region4: #{tpu_custom_call.1} parent=0 // pred_region
    _
  $region5: #{tpu_custom_call.1} parent=0 // pred_fallthru
    _
  // Predicated region
  $region6: #{tpu_custom_call.1} parent=0 // pred_check
    _
  $region7: #{tpu_custom_call.1} parent=0 // pred_check_branch
    %12 = sbr.rel (0) target = $region9
  $region8: #{tpu_custom_call.1} parent=0 // pred_region
    _
  $region9: #{tpu_custom_call.1} parent=0 // pred_fallthru
    _
  // Predicated region
  $region10: #{tpu_custom_call.1} parent=0 // pred_check
    _
  $region11: #{tpu_custom_call.1} parent=0 // pred_check_branch
    %14 = sbr.rel (0) target = $region13
  $region12: #{tpu_custom_call.1} parent=0 // pred_region
    _
  $region13: #{tpu_custom_call.1} parent=0 // pred_fallthru
    _
  // Predicated region
  $region14: #{tpu_custom_call.1} parent=0 // pred_check
    _
  $region15: #{tpu_custom_call.1} parent=0 // pred_check_branch
    %16 = sbr.rel (0) target = $region17
  $region16: #{tpu_custom_call.1} parent=0 // pred_region
    _
  $region17: #{tpu_custom_call.1} parent=0 // pred_fallthru
    _
  %v18 = vld [vmem:[%s0] sm:$0xf]
  %v19 = vld [vmem:[%s0 + $0x4] sm:$0xf]
  %v20 = vld [vmem:[%s0 + $0x8] sm:$0xf]
  %v21 = vld [vmem:[%s0 + $0xc] sm:$0xf]
  %v22 = vld [vmem:[%s0 + $0x10] sm:$0xf]
  %v23 = vld [vmem:[%s0 + $0x14] sm:$0xf]
  %v24 = vld [vmem:[%s0 + $0x18] sm:$0xf]
  %v25 = vld [vmem:[%s0 + $0x1c] sm:$0xf]
  %v26 = vld [vmem:[%s0 + $0x20] sm:$0xf]
  %v27 = vld [vmem:[%s0 + $0x24] sm:$0xf]
  %v28 = vld [vmem:[%s0 + $0x28] sm:$0xf]
  %v29 = vld [vmem:[%s0 + $0x2c] sm:$0xf]
  %v30 = vld [vmem:[%s0 + $0x30] sm:$0xf]
  %v31 = vld [vmem:[%s0 + $0x34] sm:$0xf]
  %v32 = vld [vmem:[%s0 + $0x38] sm:$0xf]
  %v33 = vld [vmem:[%s0 + $0x3c] sm:$0xf]
  %v34 = vld [vmem:[%s0 + $0x40] sm:$0xf]
  %v35 = vld [vmem:[%s0 + $0x44] sm:$0xf]
  %v36 = vld [vmem:[%s0 + $0x48] sm:$0xf]
  %v37 = vld [vmem:[%s0 + $0x4c] sm:$0xf]
  %v38 = vld [vmem:[%s0 + $0x50] sm:$0xf]
  %v39 = vld [vmem:[%s0 + $0x54] sm:$0xf]
  %v40 = vld [vmem:[%s0 + $0x58] sm:$0xf]
  %v41 = vld [vmem:[%s0 + $0x5c] sm:$0xf]
  %v42 = vld [vmem:[%s0 + $0x60] sm:$0xf]
  %v43 = vld [vmem:[%s0 + $0x64] sm:$0xf]
  %v44 = vld [vmem:[%s0 + $0x68] sm:$0xf]
  %v45 = vld [vmem:[%s0 + $0x6c] sm:$0xf]
  %v46 = vld [vmem:[%s0 + $0x70] sm:$0xf]
  %v47 = vld [vmem:[%s0 + $0x74] sm:$0xf]
  %v48 = vld [vmem:[%s0 + $0x78] sm:$0xf]
  %v49 = vld [vmem:[%s0 + $0x7c] sm:$0xf]
  %v50 = vld [vmem:[%s0 + $0x80] sm:$0xf]
  %v51 = vld [vmem:[%s0 + $0x84] sm:$0xf]
  %v52 = vld [vmem:[%s0 + $0x88] sm:$0xf]
  %v53 = vld [vmem:[%s0 + $0x8c] sm:$0xf]
  %v54 = vld [vmem:[%s0 + $0x90] sm:$0xf]
  %v55 = vld [vmem:[%s0 + $0x94] sm:$0xf]
  %v56 = vld [vmem:[%s0 + $0x98] sm:$0xf]
  %v57 = vld [vmem:[%s0 + $0x9c] sm:$0xf]
  %v58 = vld [vmem:[%s0 + $0xa0] sm:$0xf]
  %v59 = vld [vmem:[%s0 + $0xa4] sm:$0xf]
  %v60 = vld [vmem:[%s0 + $0xa8] sm:$0xf]
  %v61 = vld [vmem:[%s0 + $0xac] sm:$0xf]
  %v62 = vld [vmem:[%s0 + $0xb0] sm:$0xf]
  %v63 = vld [vmem:[%s0 + $0xb4] sm:$0xf]
  %v64 = vld [vmem:[%s0 + $0xb8] sm:$0xf]
  %v65 = vld [vmem:[%s0 + $0xbc] sm:$0xf]
  %v66 = vld [vmem:[%s0 + $0xc0] sm:$0xf]
  %v67 = vld [vmem:[%s0 + $0xc4] sm:$0xf]
  %v68 = vld [vmem:[%s0 + $0xc8] sm:$0xf]
  %v69 = vld [vmem:[%s0 + $0xcc] sm:$0xf]
  %v70 = vld [vmem:[%s0 + $0xd0] sm:$0xf]
  %v71 = vld [vmem:[%s0 + $0xd4] sm:$0xf]
  %v72 = vld [vmem:[%s0 + $0xd8] sm:$0xf]
  %v73 = vld [vmem:[%s0 + $0xdc] sm:$0xf]
  %v74 = vld [vmem:[%s0 + $0xe0] sm:$0xf]
  %v75 = vld [vmem:[%s0 + $0xe4] sm:$0xf]
  %v76 = vld [vmem:[%s0 + $0xe8] sm:$0xf]
  %v77 = vld [vmem:[%s0 + $0xec] sm:$0xf]
  %v78 = vld [vmem:[%s0 + $0xf0] sm:$0xf]
  %v79 = vld [vmem:[%s0 + $0xf4] sm:$0xf]
  %v80 = vld [vmem:[%s0 + $0xf8] sm:$0xf]
  %v81 = vld [vmem:[%s0 + $0xfc] sm:$0xf]
  %v82 = vld [vmem:[%s0 + $0x100] sm:$0xf]
  %v83 = vld [vmem:[%s0 + $0x104] sm:$0xf]
  %v84 = vld [vmem:[%s0 + $0x108] sm:$0xf]
  %v85 = vld [vmem:[%s0 + $0x10c] sm:$0xf]
  %v86 = vld [vmem:[%s0 + $0x110] sm:$0xf]
  %v87 = vld [vmem:[%s0 + $0x114] sm:$0xf]
  %v88 = vld [vmem:[%s0 + $0x118] sm:$0xf]
  %v89 = vld [vmem:[%s0 + $0x11c] sm:$0xf]
  %v90 = vld [vmem:[%s0 + $0x120] sm:$0xf]
  %v91 = vld [vmem:[%s0 + $0x124] sm:$0xf]
  %v92 = vld [vmem:[%s0 + $0x128] sm:$0xf]
  %v93 = vld [vmem:[%s0 + $0x12c] sm:$0xf]
  %v94 = vld [vmem:[%s0 + $0x130] sm:$0xf]
  %v95 = vld [vmem:[%s0 + $0x134] sm:$0xf]
  %v96 = vld [vmem:[%s0 + $0x138] sm:$0xf]
  %v97 = vld [vmem:[%s0 + $0x13c] sm:$0xf]
  %v98 = vld [vmem:[%s0 + $0x140] sm:$0xf]
  %v99 = vld [vmem:[%s0 + $0x144] sm:$0xf]
  %v100 = vld [vmem:[%s0 + $0x148] sm:$0xf]
  %v101 = vld [vmem:[%s0 + $0x14c] sm:$0xf]
  %v102 = vld [vmem:[%s0 + $0x150] sm:$0xf]
  %v103 = vld [vmem:[%s0 + $0x154] sm:$0xf]
  %v104 = vld [vmem:[%s0 + $0x158] sm:$0xf]
  %v105 = vld [vmem:[%s0 + $0x15c] sm:$0xf]
  %v106 = vld [vmem:[%s0 + $0x160] sm:$0xf]
  %v107 = vld [vmem:[%s0 + $0x164] sm:$0xf]
  %v108 = vld [vmem:[%s0 + $0x168] sm:$0xf]
  %v109 = vld [vmem:[%s0 + $0x16c] sm:$0xf]
  %v110 = vld [vmem:[%s0 + $0x170] sm:$0xf]
  %v111 = vld [vmem:[%s0 + $0x174] sm:$0xf]
  %v112 = vld [vmem:[%s0 + $0x178] sm:$0xf]
  %v113 = vld [vmem:[%s0 + $0x17c] sm:$0xf]
  %v114 = vld [vmem:[%s0 + $0x180] sm:$0xf]
  %v115 = vld [vmem:[%s0 + $0x184] sm:$0xf]
  %v116 = vld [vmem:[%s0 + $0x188] sm:$0xf]
  %v117 = vld [vmem:[%s0 + $0x18c] sm:$0xf]
  %v118 = vld [vmem:[%s0 + $0x190] sm:$0xf]
  %v119 = vld [vmem:[%s0 + $0x194] sm:$0xf]
  %v120 = vld [vmem:[%s0 + $0x198] sm:$0xf]
  %v121 = vld [vmem:[%s0 + $0x19c] sm:$0xf]
  %v122 = vld [vmem:[%s0 + $0x1a0] sm:$0xf]
  %v123 = vld [vmem:[%s0 + $0x1a4] sm:$0xf]
  %v124 = vld [vmem:[%s0 + $0x1a8] sm:$0xf]
  %v125 = vld [vmem:[%s0 + $0x1ac] sm:$0xf]
  %v126 = vld [vmem:[%s0 + $0x1b0] sm:$0xf]
  %v127 = vld [vmem:[%s0 + $0x1b4] sm:$0xf]
  %v128 = vld [vmem:[%s0 + $0x1b8] sm:$0xf]
  %v129 = vld [vmem:[%s0 + $0x1bc] sm:$0xf]
  %v130 = vld [vmem:[%s0 + $0x1c0] sm:$0xf]
  %v131 = vld [vmem:[%s0 + $0x1c4] sm:$0xf]
  %v132 = vld [vmem:[%s0 + $0x1c8] sm:$0xf]
  %v133 = vld [vmem:[%s0 + $0x1cc] sm:$0xf]
  %v134 = vld [vmem:[%s0 + $0x1d0] sm:$0xf]
  %v135 = vld [vmem:[%s0 + $0x1d4] sm:$0xf]
  %v136 = vld [vmem:[%s0 + $0x1d8] sm:$0xf]
  %v137 = vld [vmem:[%s0 + $0x1dc] sm:$0xf]
  %v138 = vld [vmem:[%s0 + $0x1e0] sm:$0xf]
  %v139 = vld [vmem:[%s0 + $0x1e4] sm:$0xf]
  %v140 = vld [vmem:[%s0 + $0x1e8] sm:$0xf]
  %v141 = vld [vmem:[%s0 + $0x1ec] sm:$0xf]
  %v142 = vld [vmem:[%s0 + $0x1f0] sm:$0xf]
  %v143 = vld [vmem:[%s0 + $0x1f4] sm:$0xf]
  %v144 = vld [vmem:[%s0 + $0x1f8] sm:$0xf]
  %v145 = vld [vmem:[%s0 + $0x1fc] sm:$0xf]
  %v146 = vld [vmem:[%s1] sm:$0xf]
  %v147 = vld [vmem:[%s1 + $0x4] sm:$0xf]
  %v148 = vld [vmem:[%s1 + $0x8] sm:$0xf]
  %v149 = vld [vmem:[%s1 + $0xc] sm:$0xf]
  %v150 = vld [vmem:[%s1 + $0x10] sm:$0xf]
  %v151 = vld [vmem:[%s1 + $0x14] sm:$0xf]
  %v280 = vunpack.c.l.b16 %v18
  %v281 = vunpack.c.l.b16 %v19
  %v282 = vunpack.c.l.b16 %v20
  %v283 = vunpack.c.l.b16 %v21
  %v284 = vunpack.c.l.b16 %v22
  %v285 = vunpack.c.l.b16 %v23
  %v286 = vunpack.c.l.b16 %v24
  %v287 = vunpack.c.l.b16 %v25
  %v288 = vunpack.c.l.b16 %v26
  %v289 = vunpack.c.l.b16 %v27
  %v290 = vunpack.c.l.b16 %v28
  %v291 = vunpack.c.l.b16 %v29
  %v292 = vunpack.c.l.b16 %v30
  %v293 = vunpack.c.l.b16 %v31
  %v294 = vunpack.c.l.b16 %v32
  %v295 = vunpack.c.l.b16 %v33
  %v296 = vunpack.c.l.b16 %v34
  %v297 = vunpack.c.l.b16 %v35
  %v298 = vunpack.c.l.b16 %v36
  %v299 = vunpack.c.l.b16 %v37
  %v300 = vunpack.c.l.b16 %v38
  %v301 = vunpack.c.l.b16 %v39
  %v302 = vunpack.c.l.b16 %v40
  %v303 = vunpack.c.l.b16 %v41
  %v304 = vunpack.c.l.b16 %v42
  %v305 = vunpack.c.l.b16 %v43
  %v306 = vunpack.c.l.b16 %v44
  %v307 = vunpack.c.l.b16 %v45
  %v308 = vunpack.c.l.b16 %v46
  %v309 = vunpack.c.l.b16 %v47
  %v310 = vunpack.c.l.b16 %v48
  %v311 = vunpack.c.l.b16 %v49
  %v312 = vunpack.c.l.b16 %v50
  %v313 = vunpack.c.l.b16 %v51
  %v314 = vunpack.c.l.b16 %v52
  %v315 = vunpack.c.l.b16 %v53
  %v316 = vunpack.c.l.b16 %v54
  %v317 = vunpack.c.l.b16 %v55
  %v318 = vunpack.c.l.b16 %v56
  %v319 = vunpack.c.l.b16 %v57
  %v320 = vunpack.c.l.b16 %v58
  %v321 = vunpack.c.l.b16 %v59
  %v322 = vunpack.c.l.b16 %v60
  %v323 = vunpack.c.l.b16 %v61
  %v324 = vunpack.c.l.b16 %v62
  %v325 = vunpack.c.l.b16 %v63
  %v326 = vunpack.c.l.b16 %v64
  %v327 = vunpack.c.l.b16 %v65
  %v328 = vunpack.c.l.b16 %v66
  %v329 = vunpack.c.l.b16 %v67
  %v330 = vunpack.c.l.b16 %v68
  %v331 = vunpack.c.l.b16 %v69
  %v332 = vunpack.c.l.b16 %v70
  %v333 = vunpack.c.l.b16 %v71
  %v334 = vunpack.c.l.b16 %v72
  %v335 = vunpack.c.l.b16 %v73
  %v336 = vunpack.c.l.b16 %v74
  %v337 = vunpack.c.l.b16 %v75
  %v338 = vunpack.c.l.b16 %v76
  %v339 = vunpack.c.l.b16 %v77
  %v340 = vunpack.c.l.b16 %v78
  %v341 = vunpack.c.l.b16 %v79
  %v342 = vunpack.c.l.b16 %v80
  %v343 = vunpack.c.l.b16 %v81
  %v344 = vunpack.c.l.b16 %v82
  %v345 = vunpack.c.l.b16 %v83
  %v346 = vunpack.c.l.b16 %v84
  %v347 = vunpack.c.l.b16 %v85
  %v348 = vunpack.c.l.b16 %v86
  %v349 = vunpack.c.l.b16 %v87
  %v350 = vunpack.c.l.b16 %v88
  %v351 = vunpack.c.l.b16 %v89
  %v352 = vunpack.c.l.b16 %v90
  %v353 = vunpack.c.l.b16 %v91
  %v354 = vunpack.c.l.b16 %v92
  %v355 = vunpack.c.l.b16 %v93
  %v356 = vunpack.c.l.b16 %v94
  %v357 = vunpack.c.l.b16 %v95
  %v358 = vunpack.c.l.b16 %v96
  %v359 = vunpack.c.l.b16 %v97
  %v360 = vunpack.c.l.b16 %v98
  %v361 = vunpack.c.l.b16 %v99
  %v362 = vunpack.c.l.b16 %v100
  %v363 = vunpack.c.l.b16 %v101
  %v364 = vunpack.c.l.b16 %v102
  %v365 = vunpack.c.l.b16 %v103
  %v366 = vunpack.c.l.b16 %v104
  %v367 = vunpack.c.l.b16 %v105
  %v368 = vunpack.c.l.b16 %v106
  %v369 = vunpack.c.l.b16 %v107
  %v370 = vunpack.c.l.b16 %v108
  %v371 = vunpack.c.l.b16 %v109
  %v372 = vunpack.c.l.b16 %v110
  %v373 = vunpack.c.l.b16 %v111
  %v374 = vunpack.c.l.b16 %v112
  %v375 = vunpack.c.l.b16 %v113
  %v376 = vunpack.c.l.b16 %v114
  %v377 = vunpack.c.l.b16 %v115
  %v378 = vunpack.c.l.b16 %v116
  %v379 = vunpack.c.l.b16 %v117
  %v380 = vunpack.c.l.b16 %v118
  %v381 = vunpack.c.l.b16 %v119
  %v382 = vunpack.c.l.b16 %v120
  %v383 = vunpack.c.l.b16 %v121
  %v384 = vunpack.c.l.b16 %v122
  %v385 = vunpack.c.l.b16 %v123
  %v386 = vunpack.c.l.b16 %v124
  %v387 = vunpack.c.l.b16 %v125
  %v388 = vunpack.c.l.b16 %v126
  %v389 = vunpack.c.l.b16 %v127
  %v390 = vunpack.c.l.b16 %v128
  %v391 = vunpack.c.l.b16 %v129
  %v392 = vunpack.c.l.b16 %v130
  %v393 = vunpack.c.l.b16 %v131
  %v394 = vunpack.c.l.b16 %v132
  %v395 = vunpack.c.l.b16 %v133
  %v396 = vunpack.c.l.b16 %v134
  %v397 = vunpack.c.l.b16 %v135
  %v398 = vunpack.c.l.b16 %v136
  %v399 = vunpack.c.l.b16 %v137
  %v400 = vunpack.c.l.b16 %v138
  %v401 = vunpack.c.l.b16 %v139
  %v402 = vunpack.c.l.b16 %v140
  %v403 = vunpack.c.l.b16 %v141
  %v404 = vunpack.c.l.b16 %v142
  %v405 = vunpack.c.l.b16 %v143
  %v406 = vunpack.c.l.b16 %v144
  %v407 = vunpack.c.l.b16 %v145
  %v408 = vpack.c.b16 %v281, %v280
  %v409 = vpack.c.b16 %v283, %v282
  %v410 = vpack.c.b16 %v285, %v284
  %v411 = vpack.c.b16 %v287, %v286
  %v412 = vpack.c.b16 %v289, %v288
  %v413 = vpack.c.b16 %v291, %v290
  %v414 = vpack.c.b16 %v293, %v292
  %v415 = vpack.c.b16 %v295, %v294
  %v416 = vpack.c.b16 %v297, %v296
  %v417 = vpack.c.b16 %v299, %v298
  %v418 = vpack.c.b16 %v301, %v300
  %v419 = vpack.c.b16 %v303, %v302
  %v420 = vpack.c.b16 %v305, %v304
  %v421 = vpack.c.b16 %v307, %v306
  %v422 = vpack.c.b16 %v309, %v308
  %v423 = vpack.c.b16 %v311, %v310
  %v424 = vpack.c.b16 %v313, %v312
  %v425 = vpack.c.b16 %v315, %v314
  %v426 = vpack.c.b16 %v317, %v316
  %v427 = vpack.c.b16 %v319, %v318
  %v428 = vpack.c.b16 %v321, %v320
  %v429 = vpack.c.b16 %v323, %v322
  %v430 = vpack.c.b16 %v325, %v324
  %v431 = vpack.c.b16 %v327, %v326
  %v432 = vpack.c.b16 %v329, %v328
  %v433 = vpack.c.b16 %v331, %v330
  %v434 = vpack.c.b16 %v333, %v332
  %v435 = vpack.c.b16 %v335, %v334
  %v436 = vpack.c.b16 %v337, %v336
  %v437 = vpack.c.b16 %v339, %v338
  %v438 = vpack.c.b16 %v341, %v340
  %v439 = vpack.c.b16 %v343, %v342
  %v440 = vpack.c.b16 %v345, %v344
  %v441 = vpack.c.b16 %v347, %v346
  %v442 = vpack.c.b16 %v349, %v348
  %v443 = vpack.c.b16 %v351, %v350
  %v444 = vpack.c.b16 %v353, %v352
  %v445 = vpack.c.b16 %v355, %v354
  %v446 = vpack.c.b16 %v357, %v356
  %v447 = vpack.c.b16 %v359, %v358
  %v448 = vpack.c.b16 %v361, %v360
  %v449 = vpack.c.b16 %v363, %v362
  %v450 = vpack.c.b16 %v365, %v364
  %v451 = vpack.c.b16 %v367, %v366
  %v452 = vpack.c.b16 %v369, %v368
  %v453 = vpack.c.b16 %v371, %v370
  %v454 = vpack.c.b16 %v373, %v372
  %v455 = vpack.c.b16 %v375, %v374
  %v456 = vpack.c.b16 %v377, %v376
  %v457 = vpack.c.b16 %v379, %v378
  %v458 = vpack.c.b16 %v381, %v380
  %v459 = vpack.c.b16 %v383, %v382
  %v460 = vpack.c.b16 %v385, %v384
  %v461 = vpack.c.b16 %v387, %v386
  %v462 = vpack.c.b16 %v389, %v388
  %v463 = vpack.c.b16 %v391, %v390
  %v464 = vpack.c.b16 %v393, %v392
  %v465 = vpack.c.b16 %v395, %v394
  %v466 = vpack.c.b16 %v397, %v396
  %v467 = vpack.c.b16 %v399, %v398
  %v468 = vpack.c.b16 %v401, %v400
  %v469 = vpack.c.b16 %v403, %v402
  %v470 = vpack.c.b16 %v405, %v404
  %v471 = vpack.c.b16 %v407, %v406
  %v478 = vunpack.c.l.b16 %v146
  %v479 = vunpack.c.l.b16 %v147
  %v480 = vunpack.c.l.b16 %v148
  %v481 = vunpack.c.l.b16 %v149
  %v482 = vunpack.c.l.b16 %v150
  %v483 = vunpack.c.l.b16 %v151
  %v484 = vpack.c.b16 %v479, %v478
  %v485 = vpack.c.b16 %v481, %v480
  %v486 = vpack.c.b16 %v483, %v482
  %vm490 = vcmask 392192
  %v492 = vsel %vm490, %v408, 0
  %v495 = vsel %vm490, %v409, 0
  %v498 = vsel %vm490, %v410, 0
  %v501 = vsel %vm490, %v411, 0
  %v504 = vsel %vm490, %v412, 0
  %v507 = vsel %vm490, %v413, 0
  %v510 = vsel %vm490, %v414, 0
  %v513 = vsel %vm490, %v415, 0
  %v516 = vsel %vm490, %v416, 0
  %v519 = vsel %vm490, %v417, 0
  %v522 = vsel %vm490, %v418, 0
  %v525 = vsel %vm490, %v419, 0
  %v528 = vsel %vm490, %v420, 0
  %v531 = vsel %vm490, %v421, 0
  %v534 = vsel %vm490, %v422, 0
  %v537 = vsel %vm490, %v423, 0
  %v540 = vsel %vm490, %v424, 0
  %v543 = vsel %vm490, %v425, 0
  %v546 = vsel %vm490, %v426, 0
  %v549 = vsel %vm490, %v427, 0
  %v552 = vsel %vm490, %v428, 0
  %v555 = vsel %vm490, %v429, 0
  %v558 = vsel %vm490, %v430, 0
  %v561 = vsel %vm490, %v431, 0
  %v564 = vsel %vm490, %v432, 0
  %v567 = vsel %vm490, %v433, 0
  %v570 = vsel %vm490, %v434, 0
  %v573 = vsel %vm490, %v435, 0
  %v576 = vsel %vm490, %v436, 0
  %v579 = vsel %vm490, %v437, 0
  %v582 = vsel %vm490, %v438, 0
  %v585 = vsel %vm490, %v439, 0
  %v588 = vsel %vm490, %v440, 0
  %v591 = vsel %vm490, %v441, 0
  %v594 = vsel %vm490, %v442, 0
  %v597 = vsel %vm490, %v443, 0
  %v600 = vsel %vm490, %v444, 0
  %v603 = vsel %vm490, %v445, 0
  %v606 = vsel %vm490, %v446, 0
  %v609 = vsel %vm490, %v447, 0
  %v612 = vsel %vm490, %v448, 0
  %v615 = vsel %vm490, %v449, 0
  %v618 = vsel %vm490, %v450, 0
  %v621 = vsel %vm490, %v451, 0
  %v624 = vsel %vm490, %v452, 0
  %v627 = vsel %vm490, %v453, 0
  %v630 = vsel %vm490, %v454, 0
  %v633 = vsel %vm490, %v455, 0
  %v636 = vsel %vm490, %v456, 0
  %v639 = vsel %vm490, %v457, 0
  %v642 = vsel %vm490, %v458, 0
  %v645 = vsel %vm490, %v459, 0
  %v648 = vsel %vm490, %v460, 0
  %v651 = vsel %vm490, %v461, 0
  %v654 = vsel %vm490, %v462, 0
  %v657 = vsel %vm490, %v463, 0
  %v660 = vsel %vm490, %v464, 0
  %v663 = vsel %vm490, %v465, 0
  %v666 = vsel %vm490, %v466, 0
  %v669 = vsel %vm490, %v467, 0
  %v672 = vsel %vm490, %v468, 0
  %v675 = vsel %vm490, %v469, 0
  %v678 = vsel %vm490, %v470, 0
  %v681 = vsel %vm490, %v471, 0
  %683 = vmatprep.subr.bf16.mxu0 0
  %684 = vmatpush1.bf16.msra.mxu0 0
  %685 = vmatprep.subr.bf16.mxu0 0
  %686 = vmatpush1.bf16.msra.mxu0 0
  %687 = vmatprep.subr.bf16.mxu0 0
  %688 = vmatpush1.bf16.msra.mxu0 0
  %689 = vmatprep.subr.bf16.mxu0 0
  %690 = vmatpush1.bf16.msra.mxu0 0
  %691 = vmatprep.subr.bf16.mxu0 0
  %692 = vmatpush1.bf16.msra.mxu0 0
  %693 = vmatprep.subr.bf16.mxu0 0
  %694 = vmatpush1.bf16.msra.mxu0 %v486
  %695 = vmatprep.subr.bf16.mxu0 0
  %696 = vmatpush1.bf16.msra.mxu0 %v485
  %697 = vmatprep.subr.bf16.mxu0 0
  %698 = vmatpush1.bf16.msra.mxu0 %v484
  %699 = vmatprep.subr.bf16.mxu0 0
  %700 = vmatpush2.bf16.msra.mxu0 0
  %701 = vmatprep.subr.bf16.mxu0 0
  %702 = vmatpush2.bf16.msra.mxu0 0
  %703 = vmatprep.subr.bf16.mxu0 0
  %704 = vmatpush2.bf16.msra.mxu0 0
  %705 = vmatprep.subr.bf16.mxu0 0
  %706 = vmatpush2.bf16.msra.mxu0 0
  %707 = vmatprep.subr.bf16.mxu0 0
  %708 = vmatpush2.bf16.msra.mxu0 0
  %709 = vmatprep.subr.bf16.mxu0 0
  %710 = vmatpush2.bf16.msra.mxu0 0
  %711 = vmatprep.subr.bf16.mxu0 0
  %712 = vmatpush2.bf16.msra.mxu0 0
  %713 = vmatprep.subr.bf16.mxu0 0
  %714 = vmatpush2.bf16.msra.mxu0 0
  %715 = vmatprep.mubr.bf16.mxu0 0
  %716 = vmatmul.mubr.bf16.gmra.mxu0 %v492
  %v717 = vpop.f32.mrf.mxu0
  %v718 = vadd.f32 0.0, %v717
  %v719 = vpop.f32.mrf.mxu0
  %v720 = vpop.f32.mrf.mxu0
  %v721 = vadd.f32 0.0, %v720
  %v722 = vpop.f32.mrf.mxu0
  %723 = vmatprep.mubr.bf16.mxu0 0
  %724 = vmatmul.mubr.bf16.gmra.mxu0 %v495
  %v725 = vpop.f32.mrf.mxu0
  %v726 = vadd.f32 0.0, %v725
  %v727 = vpop.f32.mrf.mxu0
  %v728 = vpop.f32.mrf.mxu0
  %v729 = vadd.f32 0.0, %v728
  %v730 = vpop.f32.mrf.mxu0
  %731 = vmatprep.mubr.bf16.mxu0 0
  %732 = vmatmul.mubr.bf16.gmra.mxu0 %v498
  %v733 = vpop.f32.mrf.mxu0
  %v734 = vadd.f32 0.0, %v733
  %v735 = vpop.f32.mrf.mxu0
  %v736 = vpop.f32.mrf.mxu0
  %v737 = vadd.f32 0.0, %v736
  %v738 = vpop.f32.mrf.mxu0
  %739 = vmatprep.mubr.bf16.mxu0 0
  %740 = vmatmul.mubr.bf16.gmra.mxu0 %v501
  %v741 = vpop.f32.mrf.mxu0
  %v742 = vadd.f32 0.0, %v741
  %v743 = vpop.f32.mrf.mxu0
  %v744 = vpop.f32.mrf.mxu0
  %v745 = vadd.f32 0.0, %v744
  %v746 = vpop.f32.mrf.mxu0
  %747 = vmatprep.mubr.bf16.mxu0 0
  %748 = vmatmul.mubr.bf16.gmra.mxu0 %v504
  %v749 = vpop.f32.mrf.mxu0
  %v750 = vadd.f32 0.0, %v749
  %v751 = vpop.f32.mrf.mxu0
  %v752 = vpop.f32.mrf.mxu0
  %v753 = vadd.f32 0.0, %v752
  %v754 = vpop.f32.mrf.mxu0
  %755 = vmatprep.mubr.bf16.mxu0 0
  %756 = vmatmul.mubr.bf16.gmra.mxu0 %v507
  %v757 = vpop.f32.mrf.mxu0
  %v758 = vadd.f32 0.0, %v757
  %v759 = vpop.f32.mrf.mxu0
  %v760 = vpop.f32.mrf.mxu0
  %v761 = vadd.f32 0.0, %v760
  %v762 = vpop.f32.mrf.mxu0
  %763 = vmatprep.mubr.bf16.mxu0 0
  %764 = vmatmul.mubr.bf16.gmra.mxu0 %v510
  %v765 = vpop.f32.mrf.mxu0
  %v766 = vadd.f32 0.0, %v765
  %v767 = vpop.f32.mrf.mxu0
  %v768 = vpop.f32.mrf.mxu0
  %v769 = vadd.f32 0.0, %v768
  %v770 = vpop.f32.mrf.mxu0
  %771 = vmatprep.mubr.bf16.mxu0 0
  %772 = vmatmul.mubr.bf16.gmra.mxu0 %v513
  %v773 = vpop.f32.mrf.mxu0
  %v774 = vadd.f32 0.0, %v773
  %v775 = vpop.f32.mrf.mxu0
  %v776 = vpop.f32.mrf.mxu0
  %v777 = vadd.f32 0.0, %v776
  %v778 = vpop.f32.mrf.mxu0
  %779 = vmatprep.mubr.bf16.mxu0 0
  %780 = vmatmul.mubr.bf16.gmra.mxu0 %v516
  %v781 = vpop.f32.mrf.mxu0
  %v782 = vadd.f32 0.0, %v781
  %v783 = vpop.f32.mrf.mxu0
  %v784 = vpop.f32.mrf.mxu0
  %v785 = vadd.f32 0.0, %v784
  %v786 = vpop.f32.mrf.mxu0
  %787 = vmatprep.mubr.bf16.mxu0 0
  %788 = vmatmul.mubr.bf16.gmra.mxu0 %v519
  %v789 = vpop.f32.mrf.mxu0
  %v790 = vadd.f32 0.0, %v789
  %v791 = vpop.f32.mrf.mxu0
  %v792 = vpop.f32.mrf.mxu0
  %v793 = vadd.f32 0.0, %v792
  %v794 = vpop.f32.mrf.mxu0
  %795 = vmatprep.mubr.bf16.mxu0 0
  %796 = vmatmul.mubr.bf16.gmra.mxu0 %v522
  %v797 = vpop.f32.mrf.mxu0
  %v798 = vadd.f32 0.0, %v797
  %v799 = vpop.f32.mrf.mxu0
  %v800 = vpop.f32.mrf.mxu0
  %v801 = vadd.f32 0.0, %v800
  %v802 = vpop.f32.mrf.mxu0
  %803 = vmatprep.mubr.bf16.mxu0 0
  %804 = vmatmul.mubr.bf16.gmra.mxu0 %v525
  %v805 = vpop.f32.mrf.mxu0
  %v806 = vadd.f32 0.0, %v805
  %v807 = vpop.f32.mrf.mxu0
  %v808 = vpop.f32.mrf.mxu0
  %v809 = vadd.f32 0.0, %v808
  %v810 = vpop.f32.mrf.mxu0
  %811 = vmatprep.mubr.bf16.mxu0 0
  %812 = vmatmul.mubr.bf16.gmra.mxu0 %v528
  %v813 = vpop.f32.mrf.mxu0
  %v814 = vadd.f32 0.0, %v813
  %v815 = vpop.f32.mrf.mxu0
  %v816 = vpop.f32.mrf.mxu0
  %v817 = vadd.f32 0.0, %v816
  %v818 = vpop.f32.mrf.mxu0
  %819 = vmatprep.mubr.bf16.mxu0 0
  %820 = vmatmul.mubr.bf16.gmra.mxu0 %v531
  %v821 = vpop.f32.mrf.mxu0
  %v822 = vadd.f32 0.0, %v821
  %v823 = vpop.f32.mrf.mxu0
  %v824 = vpop.f32.mrf.mxu0
  %v825 = vadd.f32 0.0, %v824
  %v826 = vpop.f32.mrf.mxu0
  %827 = vmatprep.mubr.bf16.mxu0 0
  %828 = vmatmul.mubr.bf16.gmra.mxu0 %v534
  %v829 = vpop.f32.mrf.mxu0
  %v830 = vadd.f32 0.0, %v829
  %v831 = vpop.f32.mrf.mxu0
  %v832 = vpop.f32.mrf.mxu0
  %v833 = vadd.f32 0.0, %v832
  %v834 = vpop.f32.mrf.mxu0
  %835 = vmatprep.mubr.bf16.mxu0 0
  %836 = vmatmul.mubr.bf16.gmra.mxu0 %v537
  %v837 = vpop.f32.mrf.mxu0
  %v838 = vadd.f32 0.0, %v837
  %v839 = vpop.f32.mrf.mxu0
  %v840 = vpop.f32.mrf.mxu0
  %v841 = vadd.f32 0.0, %v840
  %v842 = vpop.f32.mrf.mxu0
  %843 = vmatprep.mubr.bf16.mxu0 0
  %844 = vmatmul.mubr.bf16.gmra.mxu0 %v540
  %v845 = vpop.f32.mrf.mxu0
  %v846 = vadd.f32 0.0, %v845
  %v847 = vpop.f32.mrf.mxu0
  %v848 = vpop.f32.mrf.mxu0
  %v849 = vadd.f32 0.0, %v848
  %v850 = vpop.f32.mrf.mxu0
  %851 = vmatprep.mubr.bf16.mxu0 0
  %852 = vmatmul.mubr.bf16.gmra.mxu0 %v543
  %v853 = vpop.f32.mrf.mxu0
  %v854 = vadd.f32 0.0, %v853
  %v855 = vpop.f32.mrf.mxu0
  %v856 = vpop.f32.mrf.mxu0
  %v857 = vadd.f32 0.0, %v856
  %v858 = vpop.f32.mrf.mxu0
  %859 = vmatprep.mubr.bf16.mxu0 0
  %860 = vmatmul.mubr.bf16.gmra.mxu0 %v546
  %v861 = vpop.f32.mrf.mxu0
  %v862 = vadd.f32 0.0, %v861
  %v863 = vpop.f32.mrf.mxu0
  %v864 = vpop.f32.mrf.mxu0
  %v865 = vadd.f32 0.0, %v864
  %v866 = vpop.f32.mrf.mxu0
  %867 = vmatprep.mubr.bf16.mxu0 0
  %868 = vmatmul.mubr.bf16.gmra.mxu0 %v549
  %v869 = vpop.f32.mrf.mxu0
  %v870 = vadd.f32 0.0, %v869
  %v871 = vpop.f32.mrf.mxu0
  %v872 = vpop.f32.mrf.mxu0
  %v873 = vadd.f32 0.0, %v872
  %v874 = vpop.f32.mrf.mxu0
  %875 = vmatprep.mubr.bf16.mxu0 0
  %876 = vmatmul.mubr.bf16.gmra.mxu0 %v552
  %v877 = vpop.f32.mrf.mxu0
  %v878 = vadd.f32 0.0, %v877
  %v879 = vpop.f32.mrf.mxu0
  %v880 = vpop.f32.mrf.mxu0
  %v881 = vadd.f32 0.0, %v880
  %v882 = vpop.f32.mrf.mxu0
  %883 = vmatprep.mubr.bf16.mxu0 0
  %884 = vmatmul.mubr.bf16.gmra.mxu0 %v555
  %v885 = vpop.f32.mrf.mxu0
  %v886 = vadd.f32 0.0, %v885
  %v887 = vpop.f32.mrf.mxu0
  %v888 = vpop.f32.mrf.mxu0
  %v889 = vadd.f32 0.0, %v888
  %v890 = vpop.f32.mrf.mxu0
  %891 = vmatprep.mubr.bf16.mxu0 0
  %892 = vmatmul.mubr.bf16.gmra.mxu0 %v558
  %v893 = vpop.f32.mrf.mxu0
  %v894 = vadd.f32 0.0, %v893
  %v895 = vpop.f32.mrf.mxu0
  %v896 = vpop.f32.mrf.mxu0
  %v897 = vadd.f32 0.0, %v896
  %v898 = vpop.f32.mrf.mxu0
  %899 = vmatprep.mubr.bf16.mxu0 0
  %900 = vmatmul.mubr.bf16.gmra.mxu0 %v561
  %v901 = vpop.f32.mrf.mxu0
  %v902 = vadd.f32 0.0, %v901
  %v903 = vpop.f32.mrf.mxu0
  %v904 = vpop.f32.mrf.mxu0
  %v905 = vadd.f32 0.0, %v904
  %v906 = vpop.f32.mrf.mxu0
  %907 = vmatprep.mubr.bf16.mxu0 0
  %908 = vmatmul.mubr.bf16.gmra.mxu0 %v564
  %v909 = vpop.f32.mrf.mxu0
  %v910 = vadd.f32 0.0, %v909
  %v911 = vpop.f32.mrf.mxu0
  %v912 = vpop.f32.mrf.mxu0
  %v913 = vadd.f32 0.0, %v912
  %v914 = vpop.f32.mrf.mxu0
  %915 = vmatprep.mubr.bf16.mxu0 0
  %916 = vmatmul.mubr.bf16.gmra.mxu0 %v567
  %v917 = vpop.f32.mrf.mxu0
  %v918 = vadd.f32 0.0, %v917
  %v919 = vpop.f32.mrf.mxu0
  %v920 = vpop.f32.mrf.mxu0
  %v921 = vadd.f32 0.0, %v920
  %v922 = vpop.f32.mrf.mxu0
  %923 = vmatprep.mubr.bf16.mxu0 0
  %924 = vmatmul.mubr.bf16.gmra.mxu0 %v570
  %v925 = vpop.f32.mrf.mxu0
  %v926 = vadd.f32 0.0, %v925
  %v927 = vpop.f32.mrf.mxu0
  %v928 = vpop.f32.mrf.mxu0
  %v929 = vadd.f32 0.0, %v928
  %v930 = vpop.f32.mrf.mxu0
  %931 = vmatprep.mubr.bf16.mxu0 0
  %932 = vmatmul.mubr.bf16.gmra.mxu0 %v573
  %v933 = vpop.f32.mrf.mxu0
  %v934 = vadd.f32 0.0, %v933
  %v935 = vpop.f32.mrf.mxu0
  %v936 = vpop.f32.mrf.mxu0
  %v937 = vadd.f32 0.0, %v936
  %v938 = vpop.f32.mrf.mxu0
  %939 = vmatprep.mubr.bf16.mxu0 0
  %940 = vmatmul.mubr.bf16.gmra.mxu0 %v576
  %v941 = vpop.f32.mrf.mxu0
  %v942 = vadd.f32 0.0, %v941
  %v943 = vpop.f32.mrf.mxu0
  %v944 = vpop.f32.mrf.mxu0
  %v945 = vadd.f32 0.0, %v944
  %v946 = vpop.f32.mrf.mxu0
  %947 = vmatprep.mubr.bf16.mxu0 0
  %948 = vmatmul.mubr.bf16.gmra.mxu0 %v579
  %v949 = vpop.f32.mrf.mxu0
  %v950 = vadd.f32 0.0, %v949
  %v951 = vpop.f32.mrf.mxu0
  %v952 = vpop.f32.mrf.mxu0
  %v953 = vadd.f32 0.0, %v952
  %v954 = vpop.f32.mrf.mxu0
  %955 = vmatprep.mubr.bf16.mxu0 0
  %956 = vmatmul.mubr.bf16.gmra.mxu0 %v582
  %v957 = vpop.f32.mrf.mxu0
  %v958 = vadd.f32 0.0, %v957
  %v959 = vpop.f32.mrf.mxu0
  %v960 = vpop.f32.mrf.mxu0
  %v961 = vadd.f32 0.0, %v960
  %v962 = vpop.f32.mrf.mxu0
  %963 = vmatprep.mubr.bf16.mxu0 0
  %964 = vmatmul.mubr.bf16.gmra.mxu0 %v585
  %v965 = vpop.f32.mrf.mxu0
  %v966 = vadd.f32 0.0, %v965
  %v967 = vpop.f32.mrf.mxu0
  %v968 = vpop.f32.mrf.mxu0
  %v969 = vadd.f32 0.0, %v968
  %v970 = vpop.f32.mrf.mxu0
  %971 = vmatprep.mubr.bf16.mxu0 0
  %972 = vmatmul.mubr.bf16.gmra.mxu0 %v588
  %v973 = vpop.f32.mrf.mxu0
  %v974 = vadd.f32 0.0, %v973
  %v975 = vpop.f32.mrf.mxu0
  %v976 = vpop.f32.mrf.mxu0
  %v977 = vadd.f32 0.0, %v976
  %v978 = vpop.f32.mrf.mxu0
  %979 = vmatprep.mubr.bf16.mxu0 0
  %980 = vmatmul.mubr.bf16.gmra.mxu0 %v591
  %v981 = vpop.f32.mrf.mxu0
  %v982 = vadd.f32 0.0, %v981
  %v983 = vpop.f32.mrf.mxu0
  %v984 = vpop.f32.mrf.mxu0
  %v985 = vadd.f32 0.0, %v984
  %v986 = vpop.f32.mrf.mxu0
  %987 = vmatprep.mubr.bf16.mxu0 0
  %988 = vmatmul.mubr.bf16.gmra.mxu0 %v594
  %v989 = vpop.f32.mrf.mxu0
  %v990 = vadd.f32 0.0, %v989
  %v991 = vpop.f32.mrf.mxu0
  %v992 = vpop.f32.mrf.mxu0
  %v993 = vadd.f32 0.0, %v992
  %v994 = vpop.f32.mrf.mxu0
  %995 = vmatprep.mubr.bf16.mxu0 0
  %996 = vmatmul.mubr.bf16.gmra.mxu0 %v597
  %v997 = vpop.f32.mrf.mxu0
  %v998 = vadd.f32 0.0, %v997
  %v999 = vpop.f32.mrf.mxu0
  %v1000 = vpop.f32.mrf.mxu0
  %v1001 = vadd.f32 0.0, %v1000
  %v1002 = vpop.f32.mrf.mxu0
  %1003 = vmatprep.mubr.bf16.mxu0 0
  %1004 = vmatmul.mubr.bf16.gmra.mxu0 %v600
  %v1005 = vpop.f32.mrf.mxu0
  %v1006 = vadd.f32 0.0, %v1005
  %v1007 = vpop.f32.mrf.mxu0
  %v1008 = vpop.f32.mrf.mxu0
  %v1009 = vadd.f32 0.0, %v1008
  %v1010 = vpop.f32.mrf.mxu0
  %1011 = vmatprep.mubr.bf16.mxu0 0
  %1012 = vmatmul.mubr.bf16.gmra.mxu0 %v603
  %v1013 = vpop.f32.mrf.mxu0
  %v1014 = vadd.f32 0.0, %v1013
  %v1015 = vpop.f32.mrf.mxu0
  %v1016 = vpop.f32.mrf.mxu0
  %v1017 = vadd.f32 0.0, %v1016
  %v1018 = vpop.f32.mrf.mxu0
  %1019 = vmatprep.mubr.bf16.mxu0 0
  %1020 = vmatmul.mubr.bf16.gmra.mxu0 %v606
  %v1021 = vpop.f32.mrf.mxu0
  %v1022 = vadd.f32 0.0, %v1021
  %v1023 = vpop.f32.mrf.mxu0
  %v1024 = vpop.f32.mrf.mxu0
  %v1025 = vadd.f32 0.0, %v1024
  %v1026 = vpop.f32.mrf.mxu0
  %1027 = vmatprep.mubr.bf16.mxu0 0
  %1028 = vmatmul.mubr.bf16.gmra.mxu0 %v609
  %v1029 = vpop.f32.mrf.mxu0
  %v1030 = vadd.f32 0.0, %v1029
  %v1031 = vpop.f32.mrf.mxu0
  %v1032 = vpop.f32.mrf.mxu0
  %v1033 = vadd.f32 0.0, %v1032
  %v1034 = vpop.f32.mrf.mxu0
  %1035 = vmatprep.mubr.bf16.mxu0 0
  %1036 = vmatmul.mubr.bf16.gmra.mxu0 %v612
  %v1037 = vpop.f32.mrf.mxu0
  %v1038 = vadd.f32 0.0, %v1037
  %v1039 = vpop.f32.mrf.mxu0
  %v1040 = vpop.f32.mrf.mxu0
  %v1041 = vadd.f32 0.0, %v1040
  %v1042 = vpop.f32.mrf.mxu0
  %1043 = vmatprep.mubr.bf16.mxu0 0
  %1044 = vmatmul.mubr.bf16.gmra.mxu0 %v615
  %v1045 = vpop.f32.mrf.mxu0
  %v1046 = vadd.f32 0.0, %v1045
  %v1047 = vpop.f32.mrf.mxu0
  %v1048 = vpop.f32.mrf.mxu0
  %v1049 = vadd.f32 0.0, %v1048
  %v1050 = vpop.f32.mrf.mxu0
  %1051 = vmatprep.mubr.bf16.mxu0 0
  %1052 = vmatmul.mubr.bf16.gmra.mxu0 %v618
  %v1053 = vpop.f32.mrf.mxu0
  %v1054 = vadd.f32 0.0, %v1053
  %v1055 = vpop.f32.mrf.mxu0
  %v1056 = vpop.f32.mrf.mxu0
  %v1057 = vadd.f32 0.0, %v1056
  %v1058 = vpop.f32.mrf.mxu0
  %1059 = vmatprep.mubr.bf16.mxu0 0
  %1060 = vmatmul.mubr.bf16.gmra.mxu0 %v621
  %v1061 = vpop.f32.mrf.mxu0
  %v1062 = vadd.f32 0.0, %v1061
  %v1063 = vpop.f32.mrf.mxu0
  %v1064 = vpop.f32.mrf.mxu0
  %v1065 = vadd.f32 0.0, %v1064
  %v1066 = vpop.f32.mrf.mxu0
  %1067 = vmatprep.mubr.bf16.mxu0 0
  %1068 = vmatmul.mubr.bf16.gmra.mxu0 %v624
  %v1069 = vpop.f32.mrf.mxu0
  %v1070 = vadd.f32 0.0, %v1069
  %v1071 = vpop.f32.mrf.mxu0
  %v1072 = vpop.f32.mrf.mxu0
  %v1073 = vadd.f32 0.0, %v1072
  %v1074 = vpop.f32.mrf.mxu0
  %1075 = vmatprep.mubr.bf16.mxu0 0
  %1076 = vmatmul.mubr.bf16.gmra.mxu0 %v627
  %v1077 = vpop.f32.mrf.mxu0
  %v1078 = vadd.f32 0.0, %v1077
  %v1079 = vpop.f32.mrf.mxu0
  %v1080 = vpop.f32.mrf.mxu0
  %v1081 = vadd.f32 0.0, %v1080
  %v1082 = vpop.f32.mrf.mxu0
  %1083 = vmatprep.mubr.bf16.mxu0 0
  %1084 = vmatmul.mubr.bf16.gmra.mxu0 %v630
  %v1085 = vpop.f32.mrf.mxu0
  %v1086 = vadd.f32 0.0, %v1085
  %v1087 = vpop.f32.mrf.mxu0
  %v1088 = vpop.f32.mrf.mxu0
  %v1089 = vadd.f32 0.0, %v1088
  %v1090 = vpop.f32.mrf.mxu0
  %1091 = vmatprep.mubr.bf16.mxu0 0
  %1092 = vmatmul.mubr.bf16.gmra.mxu0 %v633
  %v1093 = vpop.f32.mrf.mxu0
  %v1094 = vadd.f32 0.0, %v1093
  %v1095 = vpop.f32.mrf.mxu0
  %v1096 = vpop.f32.mrf.mxu0
  %v1097 = vadd.f32 0.0, %v1096
  %v1098 = vpop.f32.mrf.mxu0
  %1099 = vmatprep.mubr.bf16.mxu0 0
  %1100 = vmatmul.mubr.bf16.gmra.mxu0 %v636
  %v1101 = vpop.f32.mrf.mxu0
  %v1102 = vadd.f32 0.0, %v1101
  %v1103 = vpop.f32.mrf.mxu0
  %v1104 = vpop.f32.mrf.mxu0
  %v1105 = vadd.f32 0.0, %v1104
  %v1106 = vpop.f32.mrf.mxu0
  %1107 = vmatprep.mubr.bf16.mxu0 0
  %1108 = vmatmul.mubr.bf16.gmra.mxu0 %v639
  %v1109 = vpop.f32.mrf.mxu0
  %v1110 = vadd.f32 0.0, %v1109
  %v1111 = vpop.f32.mrf.mxu0
  %v1112 = vpop.f32.mrf.mxu0
  %v1113 = vadd.f32 0.0, %v1112
  %v1114 = vpop.f32.mrf.mxu0
  %1115 = vmatprep.mubr.bf16.mxu0 0
  %1116 = vmatmul.mubr.bf16.gmra.mxu0 %v642
  %v1117 = vpop.f32.mrf.mxu0
  %v1118 = vadd.f32 0.0, %v1117
  %v1119 = vpop.f32.mrf.mxu0
  %v1120 = vpop.f32.mrf.mxu0
  %v1121 = vadd.f32 0.0, %v1120
  %v1122 = vpop.f32.mrf.mxu0
  %1123 = vmatprep.mubr.bf16.mxu0 0
  %1124 = vmatmul.mubr.bf16.gmra.mxu0 %v645
  %v1125 = vpop.f32.mrf.mxu0
  %v1126 = vadd.f32 0.0, %v1125
  %v1127 = vpop.f32.mrf.mxu0
  %v1128 = vpop.f32.mrf.mxu0
  %v1129 = vadd.f32 0.0, %v1128
  %v1130 = vpop.f32.mrf.mxu0
  %1131 = vmatprep.mubr.bf16.mxu0 0
  %1132 = vmatmul.mubr.bf16.gmra.mxu0 %v648
  %v1133 = vpop.f32.mrf.mxu0
  %v1134 = vadd.f32 0.0, %v1133
  %v1135 = vpop.f32.mrf.mxu0
  %v1136 = vpop.f32.mrf.mxu0
  %v1137 = vadd.f32 0.0, %v1136
  %v1138 = vpop.f32.mrf.mxu0
  %1139 = vmatprep.mubr.bf16.mxu0 0
  %1140 = vmatmul.mubr.bf16.gmra.mxu0 %v651
  %v1141 = vpop.f32.mrf.mxu0
  %v1142 = vadd.f32 0.0, %v1141
  %v1143 = vpop.f32.mrf.mxu0
  %v1144 = vpop.f32.mrf.mxu0
  %v1145 = vadd.f32 0.0, %v1144
  %v1146 = vpop.f32.mrf.mxu0
  %1147 = vmatprep.mubr.bf16.mxu0 0
  %1148 = vmatmul.mubr.bf16.gmra.mxu0 %v654
  %v1149 = vpop.f32.mrf.mxu0
  %v1150 = vadd.f32 0.0, %v1149
  %v1151 = vpop.f32.mrf.mxu0
  %v1152 = vpop.f32.mrf.mxu0
  %v1153 = vadd.f32 0.0, %v1152
  %v1154 = vpop.f32.mrf.mxu0
  %1155 = vmatprep.mubr.bf16.mxu0 0
  %1156 = vmatmul.mubr.bf16.gmra.mxu0 %v657
  %v1157 = vpop.f32.mrf.mxu0
  %v1158 = vadd.f32 0.0, %v1157
  %v1159 = vpop.f32.mrf.mxu0
  %v1160 = vpop.f32.mrf.mxu0
  %v1161 = vadd.f32 0.0, %v1160
  %v1162 = vpop.f32.mrf.mxu0
  %1163 = vmatprep.mubr.bf16.mxu0 0
  %1164 = vmatmul.mubr.bf16.gmra.mxu0 %v660
  %v1165 = vpop.f32.mrf.mxu0
  %v1166 = vadd.f32 0.0, %v1165
  %v1167 = vpop.f32.mrf.mxu0
  %v1168 = vpop.f32.mrf.mxu0
  %v1169 = vadd.f32 0.0, %v1168
  %v1170 = vpop.f32.mrf.mxu0
  %1171 = vmatprep.mubr.bf16.mxu0 0
  %1172 = vmatmul.mubr.bf16.gmra.mxu0 %v663
  %v1173 = vpop.f32.mrf.mxu0
  %v1174 = vadd.f32 0.0, %v1173
  %v1175 = vpop.f32.mrf.mxu0
  %v1176 = vpop.f32.mrf.mxu0
  %v1177 = vadd.f32 0.0, %v1176
  %v1178 = vpop.f32.mrf.mxu0
  %1179 = vmatprep.mubr.bf16.mxu0 0
  %1180 = vmatmul.mubr.bf16.gmra.mxu0 %v666
  %v1181 = vpop.f32.mrf.mxu0
  %v1182 = vadd.f32 0.0, %v1181
  %v1183 = vpop.f32.mrf.mxu0
  %v1184 = vpop.f32.mrf.mxu0
  %v1185 = vadd.f32 0.0, %v1184
  %v1186 = vpop.f32.mrf.mxu0
  %1187 = vmatprep.mubr.bf16.mxu0 0
  %1188 = vmatmul.mubr.bf16.gmra.mxu0 %v669
  %v1189 = vpop.f32.mrf.mxu0
  %v1190 = vadd.f32 0.0, %v1189
  %v1191 = vpop.f32.mrf.mxu0
  %v1192 = vpop.f32.mrf.mxu0
  %v1193 = vadd.f32 0.0, %v1192
  %v1194 = vpop.f32.mrf.mxu0
  %1195 = vmatprep.mubr.bf16.mxu0 0
  %1196 = vmatmul.mubr.bf16.gmra.mxu0 %v672
  %v1197 = vpop.f32.mrf.mxu0
  %v1198 = vadd.f32 0.0, %v1197
  %v1199 = vpop.f32.mrf.mxu0
  %v1200 = vpop.f32.mrf.mxu0
  %v1201 = vadd.f32 0.0, %v1200
  %v1202 = vpop.f32.mrf.mxu0
  %1203 = vmatprep.mubr.bf16.mxu0 0
  %1204 = vmatmul.mubr.bf16.gmra.mxu0 %v675
  %v1205 = vpop.f32.mrf.mxu0
  %v1206 = vadd.f32 0.0, %v1205
  %v1207 = vpop.f32.mrf.mxu0
  %v1208 = vpop.f32.mrf.mxu0
  %v1209 = vadd.f32 0.0, %v1208
  %v1210 = vpop.f32.mrf.mxu0
  %1211 = vmatprep.mubr.bf16.mxu0 0
  %1212 = vmatmul.mubr.bf16.gmra.mxu0 %v678
  %v1213 = vpop.f32.mrf.mxu0
  %v1214 = vadd.f32 0.0, %v1213
  %v1215 = vpop.f32.mrf.mxu0
  %v1216 = vpop.f32.mrf.mxu0
  %v1217 = vadd.f32 0.0, %v1216
  %v1218 = vpop.f32.mrf.mxu0
  %1219 = vmatprep.mubr.bf16.mxu0 0
  %1220 = vmatmul.mubr.bf16.gmra.mxu0 %v681
  %v1221 = vpop.f32.mrf.mxu0
  %v1222 = vadd.f32 0.0, %v1221
  %v1223 = vpop.f32.mrf.mxu0
  %v1224 = vpop.f32.mrf.mxu0
  %v1225 = vadd.f32 0.0, %v1224
  %v1226 = vpop.f32.mrf.mxu0
  %1227 = vdwg.mxu0
  %v1228 = vld [vmem:[%s3] sm:$0x1]
  %v1229 = vlaneseq
  %v1230 = vshrl.u32 %v1229, 7
  %v1231 = vsub.s32 0, %v1230
  %v1232 = vrot.slane %v1228, %v1231
  %v1233 = vadd.f32 %v718, %v1232
  %v1234 = vadd.f32 %v721, %v1232
  %v1235 = vadd.f32 %v726, %v1232
  %v1236 = vadd.f32 %v729, %v1232
  %v1237 = vadd.f32 %v734, %v1232
  %v1238 = vadd.f32 %v737, %v1232
  %v1239 = vadd.f32 %v742, %v1232
  %v1240 = vadd.f32 %v745, %v1232
  %v1241 = vadd.f32 %v750, %v1232
  %v1242 = vadd.f32 %v753, %v1232
  %v1243 = vadd.f32 %v758, %v1232
  %v1244 = vadd.f32 %v761, %v1232
  %v1245 = vadd.f32 %v766, %v1232
  %v1246 = vadd.f32 %v769, %v1232
  %v1247 = vadd.f32 %v774, %v1232
  %v1248 = vadd.f32 %v777, %v1232
  %v1249 = vadd.f32 %v782, %v1232
  %v1250 = vadd.f32 %v785, %v1232
  %v1251 = vadd.f32 %v790, %v1232
  %v1252 = vadd.f32 %v793, %v1232
  %v1253 = vadd.f32 %v798, %v1232
  %v1254 = vadd.f32 %v801, %v1232
  %v1255 = vadd.f32 %v806, %v1232
  %v1256 = vadd.f32 %v809, %v1232
  %v1257 = vadd.f32 %v814, %v1232
  %v1258 = vadd.f32 %v817, %v1232
  %v1259 = vadd.f32 %v822, %v1232
  %v1260 = vadd.f32 %v825, %v1232
  %v1261 = vadd.f32 %v830, %v1232
  %v1262 = vadd.f32 %v833, %v1232
  %v1263 = vadd.f32 %v838, %v1232
  %v1264 = vadd.f32 %v841, %v1232
  %v1265 = vadd.f32 %v846, %v1232
  %v1266 = vadd.f32 %v849, %v1232
  %v1267 = vadd.f32 %v854, %v1232
  %v1268 = vadd.f32 %v857, %v1232
  %v1269 = vadd.f32 %v862, %v1232
  %v1270 = vadd.f32 %v865, %v1232
  %v1271 = vadd.f32 %v870, %v1232
  %v1272 = vadd.f32 %v873, %v1232
  %v1273 = vadd.f32 %v878, %v1232
  %v1274 = vadd.f32 %v881, %v1232
  %v1275 = vadd.f32 %v886, %v1232
  %v1276 = vadd.f32 %v889, %v1232
  %v1277 = vadd.f32 %v894, %v1232
  %v1278 = vadd.f32 %v897, %v1232
  %v1279 = vadd.f32 %v902, %v1232
  %v1280 = vadd.f32 %v905, %v1232
  %v1281 = vadd.f32 %v910, %v1232
  %v1282 = vadd.f32 %v913, %v1232
  %v1283 = vadd.f32 %v918, %v1232
  %v1284 = vadd.f32 %v921, %v1232
  %v1285 = vadd.f32 %v926, %v1232
  %v1286 = vadd.f32 %v929, %v1232
  %v1287 = vadd.f32 %v934, %v1232
  %v1288 = vadd.f32 %v937, %v1232
  %v1289 = vadd.f32 %v942, %v1232
  %v1290 = vadd.f32 %v945, %v1232
  %v1291 = vadd.f32 %v950, %v1232
  %v1292 = vadd.f32 %v953, %v1232
  %v1293 = vadd.f32 %v958, %v1232
  %v1294 = vadd.f32 %v961, %v1232
  %v1295 = vadd.f32 %v966, %v1232
  %v1296 = vadd.f32 %v969, %v1232
  %v1297 = vadd.f32 %v974, %v1232
  %v1298 = vadd.f32 %v977, %v1232
  %v1299 = vadd.f32 %v982, %v1232
  %v1300 = vadd.f32 %v985, %v1232
  %v1301 = vadd.f32 %v990, %v1232
  %v1302 = vadd.f32 %v993, %v1232
  %v1303 = vadd.f32 %v998, %v1232
  %v1304 = vadd.f32 %v1001, %v1232
  %v1305 = vadd.f32 %v1006, %v1232
  %v1306 = vadd.f32 %v1009, %v1232
  %v1307 = vadd.f32 %v1014, %v1232
  %v1308 = vadd.f32 %v1017, %v1232
  %v1309 = vadd.f32 %v1022, %v1232
  %v1310 = vadd.f32 %v1025, %v1232
  %v1311 = vadd.f32 %v1030, %v1232
  %v1312 = vadd.f32 %v1033, %v1232
  %v1313 = vadd.f32 %v1038, %v1232
  %v1314 = vadd.f32 %v1041, %v1232
  %v1315 = vadd.f32 %v1046, %v1232
  %v1316 = vadd.f32 %v1049, %v1232
  %v1317 = vadd.f32 %v1054, %v1232
  %v1318 = vadd.f32 %v1057, %v1232
  %v1319 = vadd.f32 %v1062, %v1232
  %v1320 = vadd.f32 %v1065, %v1232
  %v1321 = vadd.f32 %v1070, %v1232
  %v1322 = vadd.f32 %v1073, %v1232
  %v1323 = vadd.f32 %v1078, %v1232
  %v1324 = vadd.f32 %v1081, %v1232
  %v1325 = vadd.f32 %v1086, %v1232
  %v1326 = vadd.f32 %v1089, %v1232
  %v1327 = vadd.f32 %v1094, %v1232
  %v1328 = vadd.f32 %v1097, %v1232
  %v1329 = vadd.f32 %v1102, %v1232
  %v1330 = vadd.f32 %v1105, %v1232
  %v1331 = vadd.f32 %v1110, %v1232
  %v1332 = vadd.f32 %v1113, %v1232
  %v1333 = vadd.f32 %v1118, %v1232
  %v1334 = vadd.f32 %v1121, %v1232
  %v1335 = vadd.f32 %v1126, %v1232
  %v1336 = vadd.f32 %v1129, %v1232
  %v1337 = vadd.f32 %v1134, %v1232
  %v1338 = vadd.f32 %v1137, %v1232
  %v1339 = vadd.f32 %v1142, %v1232
  %v1340 = vadd.f32 %v1145, %v1232
  %v1341 = vadd.f32 %v1150, %v1232
  %v1342 = vadd.f32 %v1153, %v1232
  %v1343 = vadd.f32 %v1158, %v1232
  %v1344 = vadd.f32 %v1161, %v1232
  %v1345 = vadd.f32 %v1166, %v1232
  %v1346 = vadd.f32 %v1169, %v1232
  %v1347 = vadd.f32 %v1174, %v1232
  %v1348 = vadd.f32 %v1177, %v1232
  %v1349 = vadd.f32 %v1182, %v1232
  %v1350 = vadd.f32 %v1185, %v1232
  %v1351 = vadd.f32 %v1190, %v1232
  %v1352 = vadd.f32 %v1193, %v1232
  %v1353 = vadd.f32 %v1198, %v1232
  %v1354 = vadd.f32 %v1201, %v1232
  %v1355 = vadd.f32 %v1206, %v1232
  %v1356 = vadd.f32 %v1209, %v1232
  %v1357 = vadd.f32 %v1214, %v1232
  %v1358 = vadd.f32 %v1217, %v1232
  %v1359 = vadd.f32 %v1222, %v1232
  %v1360 = vadd.f32 %v1225, %v1232
  %v1361 = vmax.f32 %v1233, 0.0
  %v1362 = vmax.f32 %v1234, 0.0
  %v1363 = vmax.f32 %v1235, 0.0
  %v1364 = vmax.f32 %v1236, 0.0
  %v1365 = vmax.f32 %v1237, 0.0
  %v1366 = vmax.f32 %v1238, 0.0
  %v1367 = vmax.f32 %v1239, 0.0
  %v1368 = vmax.f32 %v1240, 0.0
  %v1369 = vmax.f32 %v1241, 0.0
  %v1370 = vmax.f32 %v1242, 0.0
  %v1371 = vmax.f32 %v1243, 0.0
  %v1372 = vmax.f32 %v1244, 0.0
  %v1373 = vmax.f32 %v1245, 0.0
  %v1374 = vmax.f32 %v1246, 0.0
  %v1375 = vmax.f32 %v1247, 0.0
  %v1376 = vmax.f32 %v1248, 0.0
  %v1377 = vmax.f32 %v1249, 0.0
  %v1378 = vmax.f32 %v1250, 0.0
  %v1379 = vmax.f32 %v1251, 0.0
  %v1380 = vmax.f32 %v1252, 0.0
  %v1381 = vmax.f32 %v1253, 0.0
  %v1382 = vmax.f32 %v1254, 0.0
  %v1383 = vmax.f32 %v1255, 0.0
  %v1384 = vmax.f32 %v1256, 0.0
  %v1385 = vmax.f32 %v1257, 0.0
  %v1386 = vmax.f32 %v1258, 0.0
  %v1387 = vmax.f32 %v1259, 0.0
  %v1388 = vmax.f32 %v1260, 0.0
  %v1389 = vmax.f32 %v1261, 0.0
  %v1390 = vmax.f32 %v1262, 0.0
  %v1391 = vmax.f32 %v1263, 0.0
  %v1392 = vmax.f32 %v1264, 0.0
  %v1393 = vmax.f32 %v1265, 0.0
  %v1394 = vmax.f32 %v1266, 0.0
  %v1395 = vmax.f32 %v1267, 0.0
  %v1396 = vmax.f32 %v1268, 0.0
  %v1397 = vmax.f32 %v1269, 0.0
  %v1398 = vmax.f32 %v1270, 0.0
  %v1399 = vmax.f32 %v1271, 0.0
  %v1400 = vmax.f32 %v1272, 0.0
  %v1401 = vmax.f32 %v1273, 0.0
  %v1402 = vmax.f32 %v1274, 0.0
  %v1403 = vmax.f32 %v1275, 0.0
  %v1404 = vmax.f32 %v1276, 0.0
  %v1405 = vmax.f32 %v1277, 0.0
  %v1406 = vmax.f32 %v1278, 0.0
  %v1407 = vmax.f32 %v1279, 0.0
  %v1408 = vmax.f32 %v1280, 0.0
  %v1409 = vmax.f32 %v1281, 0.0
  %v1410 = vmax.f32 %v1282, 0.0
  %v1411 = vmax.f32 %v1283, 0.0
  %v1412 = vmax.f32 %v1284, 0.0
  %v1413 = vmax.f32 %v1285, 0.0
  %v1414 = vmax.f32 %v1286, 0.0
  %v1415 = vmax.f32 %v1287, 0.0
  %v1416 = vmax.f32 %v1288, 0.0
  %v1417 = vmax.f32 %v1289, 0.0
  %v1418 = vmax.f32 %v1290, 0.0
  %v1419 = vmax.f32 %v1291, 0.0
  %v1420 = vmax.f32 %v1292, 0.0
  %v1421 = vmax.f32 %v1293, 0.0
  %v1422 = vmax.f32 %v1294, 0.0
  %v1423 = vmax.f32 %v1295, 0.0
  %v1424 = vmax.f32 %v1296, 0.0
  %v1425 = vmax.f32 %v1297, 0.0
  %v1426 = vmax.f32 %v1298, 0.0
  %v1427 = vmax.f32 %v1299, 0.0
  %v1428 = vmax.f32 %v1300, 0.0
  %v1429 = vmax.f32 %v1301, 0.0
  %v1430 = vmax.f32 %v1302, 0.0
  %v1431 = vmax.f32 %v1303, 0.0
  %v1432 = vmax.f32 %v1304, 0.0
  %v1433 = vmax.f32 %v1305, 0.0
  %v1434 = vmax.f32 %v1306, 0.0
  %v1435 = vmax.f32 %v1307, 0.0
  %v1436 = vmax.f32 %v1308, 0.0
  %v1437 = vmax.f32 %v1309, 0.0
  %v1438 = vmax.f32 %v1310, 0.0
  %v1439 = vmax.f32 %v1311, 0.0
  %v1440 = vmax.f32 %v1312, 0.0
  %v1441 = vmax.f32 %v1313, 0.0
  %v1442 = vmax.f32 %v1314, 0.0
  %v1443 = vmax.f32 %v1315, 0.0
  %v1444 = vmax.f32 %v1316, 0.0
  %v1445 = vmax.f32 %v1317, 0.0
  %v1446 = vmax.f32 %v1318, 0.0
  %v1447 = vmax.f32 %v1319, 0.0
  %v1448 = vmax.f32 %v1320, 0.0
  %v1449 = vmax.f32 %v1321, 0.0
  %v1450 = vmax.f32 %v1322, 0.0
  %v1451 = vmax.f32 %v1323, 0.0
  %v1452 = vmax.f32 %v1324, 0.0
  %v1453 = vmax.f32 %v1325, 0.0
  %v1454 = vmax.f32 %v1326, 0.0
  %v1455 = vmax.f32 %v1327, 0.0
  %v1456 = vmax.f32 %v1328, 0.0
  %v1457 = vmax.f32 %v1329, 0.0
  %v1458 = vmax.f32 %v1330, 0.0
  %v1459 = vmax.f32 %v1331, 0.0
  %v1460 = vmax.f32 %v1332, 0.0
  %v1461 = vmax.f32 %v1333, 0.0
  %v1462 = vmax.f32 %v1334, 0.0
  %v1463 = vmax.f32 %v1335, 0.0
  %v1464 = vmax.f32 %v1336, 0.0
  %v1465 = vmax.f32 %v1337, 0.0
  %v1466 = vmax.f32 %v1338, 0.0
  %v1467 = vmax.f32 %v1339, 0.0
  %v1468 = vmax.f32 %v1340, 0.0
  %v1469 = vmax.f32 %v1341, 0.0
  %v1470 = vmax.f32 %v1342, 0.0
  %v1471 = vmax.f32 %v1343, 0.0
  %v1472 = vmax.f32 %v1344, 0.0
  %v1473 = vmax.f32 %v1345, 0.0
  %v1474 = vmax.f32 %v1346, 0.0
  %v1475 = vmax.f32 %v1347, 0.0
  %v1476 = vmax.f32 %v1348, 0.0
  %v1477 = vmax.f32 %v1349, 0.0
  %v1478 = vmax.f32 %v1350, 0.0
  %v1479 = vmax.f32 %v1351, 0.0
  %v1480 = vmax.f32 %v1352, 0.0
  %v1481 = vmax.f32 %v1353, 0.0
  %v1482 = vmax.f32 %v1354, 0.0
  %v1483 = vmax.f32 %v1355, 0.0
  %v1484 = vmax.f32 %v1356, 0.0
  %v1485 = vmax.f32 %v1357, 0.0
  %v1486 = vmax.f32 %v1358, 0.0
  %v1487 = vmax.f32 %v1359, 0.0
  %v1488 = vmax.f32 %v1360, 0.0
  %v1489 = vld [vmem:[%s3 + $0x2] sm:$0x1]
  %v1490 = vlaneseq
  %v1491 = vshrl.u32 %v1490, 7
  %v1492 = vsub.s32 0, %v1491
  %v1493 = vrot.slane %v1489, %v1492
  %1495 = vrot.lane.b32.xlu0 %v1493, 32
  %v1496 = vpop.permute.xlu0 %1495
  %v1498 = vadd.f32 %v718, %v1496
  %v1499 = vadd.f32 %v721, %v1496
  %v1500 = vadd.f32 %v726, %v1496
  %v1501 = vadd.f32 %v729, %v1496
  %v1502 = vadd.f32 %v734, %v1496
  %v1503 = vadd.f32 %v737, %v1496
  %v1504 = vadd.f32 %v742, %v1496
  %v1505 = vadd.f32 %v745, %v1496
  %v1506 = vadd.f32 %v750, %v1496
  %v1507 = vadd.f32 %v753, %v1496
  %v1508 = vadd.f32 %v758, %v1496
  %v1509 = vadd.f32 %v761, %v1496
  %v1510 = vadd.f32 %v766, %v1496
  %v1511 = vadd.f32 %v769, %v1496
  %v1512 = vadd.f32 %v774, %v1496
  %v1513 = vadd.f32 %v777, %v1496
  %v1514 = vadd.f32 %v782, %v1496
  %v1515 = vadd.f32 %v785, %v1496
  %v1516 = vadd.f32 %v790, %v1496
  %v1517 = vadd.f32 %v793, %v1496
  %v1518 = vadd.f32 %v798, %v1496
  %v1519 = vadd.f32 %v801, %v1496
  %v1520 = vadd.f32 %v806, %v1496
  %v1521 = vadd.f32 %v809, %v1496
  %v1522 = vadd.f32 %v814, %v1496
  %v1523 = vadd.f32 %v817, %v1496
  %v1524 = vadd.f32 %v822, %v1496
  %v1525 = vadd.f32 %v825, %v1496
  %v1526 = vadd.f32 %v830, %v1496
  %v1527 = vadd.f32 %v833, %v1496
  %v1528 = vadd.f32 %v838, %v1496
  %v1529 = vadd.f32 %v841, %v1496
  %v1530 = vadd.f32 %v846, %v1496
  %v1531 = vadd.f32 %v849, %v1496
  %v1532 = vadd.f32 %v854, %v1496
  %v1533 = vadd.f32 %v857, %v1496
  %v1534 = vadd.f32 %v862, %v1496
  %v1535 = vadd.f32 %v865, %v1496
  %v1536 = vadd.f32 %v870, %v1496
  %v1537 = vadd.f32 %v873, %v1496
  %v1538 = vadd.f32 %v878, %v1496
  %v1539 = vadd.f32 %v881, %v1496
  %v1540 = vadd.f32 %v886, %v1496
  %v1541 = vadd.f32 %v889, %v1496
  %v1542 = vadd.f32 %v894, %v1496
  %v1543 = vadd.f32 %v897, %v1496
  %v1544 = vadd.f32 %v902, %v1496
  %v1545 = vadd.f32 %v905, %v1496
  %v1546 = vadd.f32 %v910, %v1496
  %v1547 = vadd.f32 %v913, %v1496
  %v1548 = vadd.f32 %v918, %v1496
  %v1549 = vadd.f32 %v921, %v1496
  %v1550 = vadd.f32 %v926, %v1496
  %v1551 = vadd.f32 %v929, %v1496
  %v1552 = vadd.f32 %v934, %v1496
  %v1553 = vadd.f32 %v937, %v1496
  %v1554 = vadd.f32 %v942, %v1496
  %v1555 = vadd.f32 %v945, %v1496
  %v1556 = vadd.f32 %v950, %v1496
  %v1557 = vadd.f32 %v953, %v1496
  %v1558 = vadd.f32 %v958, %v1496
  %v1559 = vadd.f32 %v961, %v1496
  %v1560 = vadd.f32 %v966, %v1496
  %v1561 = vadd.f32 %v969, %v1496
  %v1562 = vadd.f32 %v974, %v1496
  %v1563 = vadd.f32 %v977, %v1496
  %v1564 = vadd.f32 %v982, %v1496
  %v1565 = vadd.f32 %v985, %v1496
  %v1566 = vadd.f32 %v990, %v1496
  %v1567 = vadd.f32 %v993, %v1496
  %v1568 = vadd.f32 %v998, %v1496
  %v1569 = vadd.f32 %v1001, %v1496
  %v1570 = vadd.f32 %v1006, %v1496
  %v1571 = vadd.f32 %v1009, %v1496
  %v1572 = vadd.f32 %v1014, %v1496
  %v1573 = vadd.f32 %v1017, %v1496
  %v1574 = vadd.f32 %v1022, %v1496
  %v1575 = vadd.f32 %v1025, %v1496
  %v1576 = vadd.f32 %v1030, %v1496
  %v1577 = vadd.f32 %v1033, %v1496
  %v1578 = vadd.f32 %v1038, %v1496
  %v1579 = vadd.f32 %v1041, %v1496
  %v1580 = vadd.f32 %v1046, %v1496
  %v1581 = vadd.f32 %v1049, %v1496
  %v1582 = vadd.f32 %v1054, %v1496
  %v1583 = vadd.f32 %v1057, %v1496
  %v1584 = vadd.f32 %v1062, %v1496
  %v1585 = vadd.f32 %v1065, %v1496
  %v1586 = vadd.f32 %v1070, %v1496
  %v1587 = vadd.f32 %v1073, %v1496
  %v1588 = vadd.f32 %v1078, %v1496
  %v1589 = vadd.f32 %v1081, %v1496
  %v1590 = vadd.f32 %v1086, %v1496
  %v1591 = vadd.f32 %v1089, %v1496
  %v1592 = vadd.f32 %v1094, %v1496
  %v1593 = vadd.f32 %v1097, %v1496
  %v1594 = vadd.f32 %v1102, %v1496
  %v1595 = vadd.f32 %v1105, %v1496
  %v1596 = vadd.f32 %v1110, %v1496
  %v1597 = vadd.f32 %v1113, %v1496
  %v1598 = vadd.f32 %v1118, %v1496
  %v1599 = vadd.f32 %v1121, %v1496
  %v1600 = vadd.f32 %v1126, %v1496
  %v1601 = vadd.f32 %v1129, %v1496
  %v1602 = vadd.f32 %v1134, %v1496
  %v1603 = vadd.f32 %v1137, %v1496
  %v1604 = vadd.f32 %v1142, %v1496
  %v1605 = vadd.f32 %v1145, %v1496
  %v1606 = vadd.f32 %v1150, %v1496
  %v1607 = vadd.f32 %v1153, %v1496
  %v1608 = vadd.f32 %v1158, %v1496
  %v1609 = vadd.f32 %v1161, %v1496
  %v1610 = vadd.f32 %v1166, %v1496
  %v1611 = vadd.f32 %v1169, %v1496
  %v1612 = vadd.f32 %v1174, %v1496
  %v1613 = vadd.f32 %v1177, %v1496
  %v1614 = vadd.f32 %v1182, %v1496
  %v1615 = vadd.f32 %v1185, %v1496
  %v1616 = vadd.f32 %v1190, %v1496
  %v1617 = vadd.f32 %v1193, %v1496
  %v1618 = vadd.f32 %v1198, %v1496
  %v1619 = vadd.f32 %v1201, %v1496
  %v1620 = vadd.f32 %v1206, %v1496
  %v1621 = vadd.f32 %v1209, %v1496
  %v1622 = vadd.f32 %v1214, %v1496
  %v1623 = vadd.f32 %v1217, %v1496
  %v1624 = vadd.f32 %v1222, %v1496
  %v1625 = vadd.f32 %v1225, %v1496
  %vm1626 = vcmask 253952
  %vm1627 = vsmask.f32 256
  %vm1628 = vmand %vm1626, %vm1627
  %v1629 = vld [vmem:[#allocation2] sm:$0x1]
  %v1630 = vsel %vm1628, 0, %v1629
  %1631 = vst [vmem:[#allocation2] sm:$0x1] %v1630
  %v1632 = vld [vmem:[#allocation2 + $0x24] sm:$0x1]
  %v1633 = vsel %vm1628, 0, %v1632
  %1634 = vst [vmem:[#allocation2 + $0x24] sm:$0x1] %v1633
  %v1635 = vld [vmem:[#allocation2 + $0x48] sm:$0x1]
  %v1636 = vsel %vm1628, 0, %v1635
  %1637 = vst [vmem:[#allocation2 + $0x48] sm:$0x1] %v1636
  %v1638 = vld [vmem:[#allocation2 + $0x6c] sm:$0x1]
  %v1639 = vsel %vm1628, 0, %v1638
  %1640 = vst [vmem:[#allocation2 + $0x6c] sm:$0x1] %v1639
  %v1641 = vld [vmem:[#allocation2 + $0x90] sm:$0x1]
  %v1642 = vsel %vm1628, 0, %v1641
  %1643 = vst [vmem:[#allocation2 + $0x90] sm:$0x1] %v1642
  %v1644 = vld [vmem:[#allocation2 + $0xb4] sm:$0x1]
  %v1645 = vsel %vm1628, 0, %v1644
  %1646 = vst [vmem:[#allocation2 + $0xb4] sm:$0x1] %v1645
  %v1647 = vld [vmem:[#allocation2 + $0xd8] sm:$0x1]
  %v1648 = vsel %vm1628, 0, %v1647
  %1649 = vst [vmem:[#allocation2 + $0xd8] sm:$0x1] %v1648
  %v1650 = vld [vmem:[#allocation2 + $0xfc] sm:$0x1]
  %v1651 = vsel %vm1628, 0, %v1650
  %1652 = vst [vmem:[#allocation2 + $0xfc] sm:$0x1] %v1651
  %v1653 = vld [vmem:[#allocation2 + $0x120] sm:$0x1]
  %v1654 = vsel %vm1628, 0, %v1653
  %1655 = vst [vmem:[#allocation2 + $0x120] sm:$0x1] %v1654
  %v1656 = vld [vmem:[#allocation2 + $0x144] sm:$0x1]
  %v1657 = vsel %vm1628, 0, %v1656
  %1658 = vst [vmem:[#allocation2 + $0x144] sm:$0x1] %v1657
  %v1659 = vld [vmem:[#allocation2 + $0x168] sm:$0x1]
  %v1660 = vsel %vm1628, 0, %v1659
  %1661 = vst [vmem:[#allocation2 + $0x168] sm:$0x1] %v1660
  %v1662 = vld [vmem:[#allocation2 + $0x18c] sm:$0x1]
  %v1663 = vsel %vm1628, 0, %v1662
  %1664 = vst [vmem:[#allocation2 + $0x18c] sm:$0x1] %v1663
  %v1665 = vld [vmem:[#allocation2 + $0x1b0] sm:$0x1]
  %v1666 = vsel %vm1628, 0, %v1665
  %1667 = vst [vmem:[#allocation2 + $0x1b0] sm:$0x1] %v1666
  %v1668 = vld [vmem:[#allocation2 + $0x1d4] sm:$0x1]
  %v1669 = vsel %vm1628, 0, %v1668
  %1670 = vst [vmem:[#allocation2 + $0x1d4] sm:$0x1] %v1669
  %v1671 = vld [vmem:[#allocation2 + $0x1f8] sm:$0x1]
  %v1672 = vsel %vm1628, 0, %v1671
  %1673 = vst [vmem:[#allocation2 + $0x1f8] sm:$0x1] %v1672
  %v1674 = vld [vmem:[#allocation2 + $0x21c] sm:$0x1]
  %v1675 = vsel %vm1628, 0, %v1674
  %1676 = vst [vmem:[#allocation2 + $0x21c] sm:$0x1] %v1675
  %vm1677 = vsmask.f32 7938
  %vm1678 = vmand %vm1626, %vm1677
  %v1679 = vld [vmem:[#allocation2 + $0x20] sm:$0x1]
  %v1680 = vsel %vm1678, 0, %v1679
  %1681 = vst [vmem:[#allocation2 + $0x20] sm:$0x1] %v1680
  %v1682 = vld [vmem:[#allocation2 + $0x44] sm:$0x1]
  %v1683 = vsel %vm1678, 0, %v1682
  %1684 = vst [vmem:[#allocation2 + $0x44] sm:$0x1] %v1683
  %v1685 = vld [vmem:[#allocation2 + $0x68] sm:$0x1]
  %v1686 = vsel %vm1678, 0, %v1685
  %1687 = vst [vmem:[#allocation2 + $0x68] sm:$0x1] %v1686
  %v1688 = vld [vmem:[#allocation2 + $0x8c] sm:$0x1]
  %v1689 = vsel %vm1678, 0, %v1688
  %1690 = vst [vmem:[#allocation2 + $0x8c] sm:$0x1] %v1689
  %v1691 = vld [vmem:[#allocation2 + $0xb0] sm:$0x1]
  %v1692 = vsel %vm1678, 0, %v1691
  %1693 = vst [vmem:[#allocation2 + $0xb0] sm:$0x1] %v1692
  %v1694 = vld [vmem:[#allocation2 + $0xd4] sm:$0x1]
  %v1695 = vsel %vm1678, 0, %v1694
  %1696 = vst [vmem:[#allocation2 + $0xd4] sm:$0x1] %v1695
  %v1697 = vld [vmem:[#allocation2 + $0xf8] sm:$0x1]
  %v1698 = vsel %vm1678, 0, %v1697
  %1699 = vst [vmem:[#allocation2 + $0xf8] sm:$0x1] %v1698
  %v1700 = vld [vmem:[#allocation2 + $0x11c] sm:$0x1]
  %v1701 = vsel %vm1678, 0, %v1700
  %1702 = vst [vmem:[#allocation2 + $0x11c] sm:$0x1] %v1701
  %v1703 = vld [vmem:[#allocation2 + $0x140] sm:$0x1]
  %v1704 = vsel %vm1678, 0, %v1703
  %1705 = vst [vmem:[#allocation2 + $0x140] sm:$0x1] %v1704
  %v1706 = vld [vmem:[#allocation2 + $0x164] sm:$0x1]
  %v1707 = vsel %vm1678, 0, %v1706
  %1708 = vst [vmem:[#allocation2 + $0x164] sm:$0x1] %v1707
  %v1709 = vld [vmem:[#allocation2 + $0x188] sm:$0x1]
  %v1710 = vsel %vm1678, 0, %v1709
  %1711 = vst [vmem:[#allocation2 + $0x188] sm:$0x1] %v1710
  %v1712 = vld [vmem:[#allocation2 + $0x1ac] sm:$0x1]
  %v1713 = vsel %vm1678, 0, %v1712
  %1714 = vst [vmem:[#allocation2 + $0x1ac] sm:$0x1] %v1713
  %v1715 = vld [vmem:[#allocation2 + $0x1d0] sm:$0x1]
  %v1716 = vsel %vm1678, 0, %v1715
  %1717 = vst [vmem:[#allocation2 + $0x1d0] sm:$0x1] %v1716
  %v1718 = vld [vmem:[#allocation2 + $0x1f4] sm:$0x1]
  %v1719 = vsel %vm1678, 0, %v1718
  %1720 = vst [vmem:[#allocation2 + $0x1f4] sm:$0x1] %v1719
  %v1721 = vld [vmem:[#allocation2 + $0x218] sm:$0x1]
  %v1722 = vsel %vm1678, 0, %v1721
  %1723 = vst [vmem:[#allocation2 + $0x218] sm:$0x1] %v1722
  %v1724 = vld [vmem:[#allocation2 + $0x23c] sm:$0x1]
  %v1725 = vsel %vm1678, 0, %v1724
  %1726 = vst [vmem:[#allocation2 + $0x23c] sm:$0x1] %v1725
  %v1727 = vpack.c.bf16 %v1362, %v1361
  %v1728 = vpack.c.bf16 %v1364, %v1363
  %v1729 = vpack.c.bf16 %v1366, %v1365
  %v1730 = vpack.c.bf16 %v1368, %v1367
  %v1731 = vpack.c.bf16 %v1370, %v1369
  %v1732 = vpack.c.bf16 %v1372, %v1371
  %v1733 = vpack.c.bf16 %v1374, %v1373
  %v1734 = vpack.c.bf16 %v1376, %v1375
  %v1735 = vpack.c.bf16 %v1378, %v1377
  %v1736 = vpack.c.bf16 %v1380, %v1379
  %v1737 = vpack.c.bf16 %v1382, %v1381
  %v1738 = vpack.c.bf16 %v1384, %v1383
  %v1739 = vpack.c.bf16 %v1386, %v1385
  %v1740 = vpack.c.bf16 %v1388, %v1387
  %v1741 = vpack.c.bf16 %v1390, %v1389
  %v1742 = vpack.c.bf16 %v1392, %v1391
  %v1743 = vpack.c.bf16 %v1394, %v1393
  %v1744 = vpack.c.bf16 %v1396, %v1395
  %v1745 = vpack.c.bf16 %v1398, %v1397
  %v1746 = vpack.c.bf16 %v1400, %v1399
  %v1747 = vpack.c.bf16 %v1402, %v1401
  %v1748 = vpack.c.bf16 %v1404, %v1403
  %v1749 = vpack.c.bf16 %v1406, %v1405
  %v1750 = vpack.c.bf16 %v1408, %v1407
  %v1751 = vpack.c.bf16 %v1410, %v1409
  %v1752 = vpack.c.bf16 %v1412, %v1411
  %v1753 = vpack.c.bf16 %v1414, %v1413
  %v1754 = vpack.c.bf16 %v1416, %v1415
  %v1755 = vpack.c.bf16 %v1418, %v1417
  %v1756 = vpack.c.bf16 %v1420, %v1419
  %v1757 = vpack.c.bf16 %v1422, %v1421
  %v1758 = vpack.c.bf16 %v1424, %v1423
  %v1759 = vpack.c.bf16 %v1426, %v1425
  %v1760 = vpack.c.bf16 %v1428, %v1427
  %v1761 = vpack.c.bf16 %v1430, %v1429
  %v1762 = vpack.c.bf16 %v1432, %v1431
  %v1763 = vpack.c.bf16 %v1434, %v1433
  %v1764 = vpack.c.bf16 %v1436, %v1435
  %v1765 = vpack.c.bf16 %v1438, %v1437
  %v1766 = vpack.c.bf16 %v1440, %v1439
  %v1767 = vpack.c.bf16 %v1442, %v1441
  %v1768 = vpack.c.bf16 %v1444, %v1443
  %v1769 = vpack.c.bf16 %v1446, %v1445
  %v1770 = vpack.c.bf16 %v1448, %v1447
  %v1771 = vpack.c.bf16 %v1450, %v1449
  %v1772 = vpack.c.bf16 %v1452, %v1451
  %v1773 = vpack.c.bf16 %v1454, %v1453
  %v1774 = vpack.c.bf16 %v1456, %v1455
  %v1775 = vpack.c.bf16 %v1458, %v1457
  %v1776 = vpack.c.bf16 %v1460, %v1459
  %v1777 = vpack.c.bf16 %v1462, %v1461
  %v1778 = vpack.c.bf16 %v1464, %v1463
  %v1779 = vpack.c.bf16 %v1466, %v1465
  %v1780 = vpack.c.bf16 %v1468, %v1467
  %v1781 = vpack.c.bf16 %v1470, %v1469
  %v1782 = vpack.c.bf16 %v1472, %v1471
  %v1783 = vpack.c.bf16 %v1474, %v1473
  %v1784 = vpack.c.bf16 %v1476, %v1475
  %v1785 = vpack.c.bf16 %v1478, %v1477
  %v1786 = vpack.c.bf16 %v1480, %v1479
  %v1787 = vpack.c.bf16 %v1482, %v1481
  %v1788 = vpack.c.bf16 %v1484, %v1483
  %v1789 = vpack.c.bf16 %v1486, %v1485
  %v1790 = vpack.c.bf16 %v1488, %v1487
  %v1855 = vunpack.c.l.b16 %v1727
  %v1856 = vunpack.c.h.b16 %v1727
  %v1857 = vunpack.c.l.b16 %v1728
  %v1858 = vunpack.c.h.b16 %v1728
  %v1859 = vunpack.c.l.b16 %v1729
  %v1860 = vunpack.c.h.b16 %v1729
  %v1861 = vunpack.c.l.b16 %v1730
  %v1862 = vunpack.c.h.b16 %v1730
  %v1863 = vunpack.c.l.b16 %v1731
  %v1864 = vunpack.c.h.b16 %v1731
  %v1865 = vunpack.c.l.b16 %v1732
  %v1866 = vunpack.c.h.b16 %v1732
  %v1867 = vunpack.c.l.b16 %v1733
  %v1868 = vunpack.c.h.b16 %v1733
  %v1869 = vunpack.c.l.b16 %v1734
  %v1870 = vunpack.c.h.b16 %v1734
  %v1871 = vunpack.c.l.b16 %v1735
  %v1872 = vunpack.c.h.b16 %v1735
  %v1873 = vunpack.c.l.b16 %v1736
  %v1874 = vunpack.c.h.b16 %v1736
  %v1875 = vunpack.c.l.b16 %v1737
  %v1876 = vunpack.c.h.b16 %v1737
  %v1877 = vunpack.c.l.b16 %v1738
  %v1878 = vunpack.c.h.b16 %v1738
  %v1879 = vunpack.c.l.b16 %v1739
  %v1880 = vunpack.c.h.b16 %v1739
  %v1881 = vunpack.c.l.b16 %v1740
  %v1882 = vunpack.c.h.b16 %v1740
  %v1883 = vunpack.c.l.b16 %v1741
  %v1884 = vunpack.c.h.b16 %v1741
  %v1885 = vunpack.c.l.b16 %v1742
  %v1886 = vunpack.c.h.b16 %v1742
  %v1887 = vunpack.c.l.b16 %v1743
  %v1888 = vunpack.c.h.b16 %v1743
  %v1889 = vunpack.c.l.b16 %v1744
  %v1890 = vunpack.c.h.b16 %v1744
  %v1891 = vunpack.c.l.b16 %v1745
  %v1892 = vunpack.c.h.b16 %v1745
  %v1893 = vunpack.c.l.b16 %v1746
  %v1894 = vunpack.c.h.b16 %v1746
  %v1895 = vunpack.c.l.b16 %v1747
  %v1896 = vunpack.c.h.b16 %v1747
  %v1897 = vunpack.c.l.b16 %v1748
  %v1898 = vunpack.c.h.b16 %v1748
  %v1899 = vunpack.c.l.b16 %v1749
  %v1900 = vunpack.c.h.b16 %v1749
  %v1901 = vunpack.c.l.b16 %v1750
  %v1902 = vunpack.c.h.b16 %v1750
  %v1903 = vunpack.c.l.b16 %v1751
  %v1904 = vunpack.c.h.b16 %v1751
  %v1905 = vunpack.c.l.b16 %v1752
  %v1906 = vunpack.c.h.b16 %v1752
  %v1907 = vunpack.c.l.b16 %v1753
  %v1908 = vunpack.c.h.b16 %v1753
  %v1909 = vunpack.c.l.b16 %v1754
  %v1910 = vunpack.c.h.b16 %v1754
  %v1911 = vunpack.c.l.b16 %v1755
  %v1912 = vunpack.c.h.b16 %v1755
  %v1913 = vunpack.c.l.b16 %v1756
  %v1914 = vunpack.c.h.b16 %v1756
  %v1915 = vunpack.c.l.b16 %v1757
  %v1916 = vunpack.c.h.b16 %v1757
  %v1917 = vunpack.c.l.b16 %v1758
  %v1918 = vunpack.c.h.b16 %v1758
  %v1919 = vunpack.c.l.b16 %v1759
  %v1920 = vunpack.c.h.b16 %v1759
  %v1921 = vunpack.c.l.b16 %v1760
  %v1922 = vunpack.c.h.b16 %v1760
  %v1923 = vunpack.c.l.b16 %v1761
  %v1924 = vunpack.c.h.b16 %v1761
  %v1925 = vunpack.c.l.b16 %v1762
  %v1926 = vunpack.c.h.b16 %v1762
  %v1927 = vunpack.c.l.b16 %v1763
  %v1928 = vunpack.c.h.b16 %v1763
  %v1929 = vunpack.c.l.b16 %v1764
  %v1930 = vunpack.c.h.b16 %v1764
  %v1931 = vunpack.c.l.b16 %v1765
  %v1932 = vunpack.c.h.b16 %v1765
  %v1933 = vunpack.c.l.b16 %v1766
  %v1934 = vunpack.c.h.b16 %v1766
  %v1935 = vunpack.c.l.b16 %v1767
  %v1936 = vunpack.c.h.b16 %v1767
  %v1937 = vunpack.c.l.b16 %v1768
  %v1938 = vunpack.c.h.b16 %v1768
  %v1939 = vunpack.c.l.b16 %v1769
  %v1940 = vunpack.c.h.b16 %v1769
  %v1941 = vunpack.c.l.b16 %v1770
  %v1942 = vunpack.c.h.b16 %v1770
  %v1943 = vunpack.c.l.b16 %v1771
  %v1944 = vunpack.c.h.b16 %v1771
  %v1945 = vunpack.c.l.b16 %v1772
  %v1946 = vunpack.c.h.b16 %v1772
  %v1947 = vunpack.c.l.b16 %v1773
  %v1948 = vunpack.c.h.b16 %v1773
  %v1949 = vunpack.c.l.b16 %v1774
  %v1950 = vunpack.c.h.b16 %v1774
  %v1951 = vunpack.c.l.b16 %v1775
  %v1952 = vunpack.c.h.b16 %v1775
  %v1953 = vunpack.c.l.b16 %v1776
  %v1954 = vunpack.c.h.b16 %v1776
  %v1955 = vunpack.c.l.b16 %v1777
  %v1956 = vunpack.c.h.b16 %v1777
  %v1957 = vunpack.c.l.b16 %v1778
  %v1958 = vunpack.c.h.b16 %v1778
  %v1959 = vunpack.c.l.b16 %v1779
  %v1960 = vunpack.c.h.b16 %v1779
  %v1961 = vunpack.c.l.b16 %v1780
  %v1962 = vunpack.c.h.b16 %v1780
  %v1963 = vunpack.c.l.b16 %v1781
  %v1964 = vunpack.c.h.b16 %v1781
  %v1965 = vunpack.c.l.b16 %v1782
  %v1966 = vunpack.c.h.b16 %v1782
  %v1967 = vunpack.c.l.b16 %v1783
  %v1968 = vunpack.c.h.b16 %v1783
  %v1969 = vunpack.c.l.b16 %v1784
  %v1970 = vunpack.c.h.b16 %v1784
  %v1971 = vunpack.c.l.b16 %v1785
  %v1972 = vunpack.c.h.b16 %v1785
  %v1973 = vunpack.c.l.b16 %v1786
  %v1974 = vunpack.c.h.b16 %v1786
  %v1975 = vunpack.c.l.b16 %v1787
  %v1976 = vunpack.c.h.b16 %v1787
  %v1977 = vunpack.c.l.b16 %v1788
  %v1978 = vunpack.c.h.b16 %v1788
  %v1979 = vunpack.c.l.b16 %v1789
  %v1980 = vunpack.c.h.b16 %v1789
  %v1981 = vunpack.c.l.b16 %v1790
  %v1982 = vunpack.c.h.b16 %v1790
  %v1983 = vpack.c.b16 %v1855, %v1855
  %v1984 = vpack.c.b16 %v1856, %v1856
  %v1985 = vpack.c.b16 %v1857, %v1857
  %v1986 = vpack.c.b16 %v1858, %v1858
  %v1987 = vpack.c.b16 %v1859, %v1859
  %v1988 = vpack.c.b16 %v1860, %v1860
  %v1989 = vpack.c.b16 %v1861, %v1861
  %v1990 = vpack.c.b16 %v1862, %v1862
  %v1991 = vpack.c.b16 %v1863, %v1863
  %v1992 = vpack.c.b16 %v1864, %v1864
  %v1993 = vpack.c.b16 %v1865, %v1865
  %v1994 = vpack.c.b16 %v1866, %v1866
  %v1995 = vpack.c.b16 %v1867, %v1867
  %v1996 = vpack.c.b16 %v1868, %v1868
  %v1997 = vpack.c.b16 %v1869, %v1869
  %v1998 = vpack.c.b16 %v1870, %v1870
  %v1999 = vpack.c.b16 %v1871, %v1871
  %v2000 = vpack.c.b16 %v1872, %v1872
  %v2001 = vpack.c.b16 %v1873, %v1873
  %v2002 = vpack.c.b16 %v1874, %v1874
  %v2003 = vpack.c.b16 %v1875, %v1875
  %v2004 = vpack.c.b16 %v1876, %v1876
  %v2005 = vpack.c.b16 %v1877, %v1877
  %v2006 = vpack.c.b16 %v1878, %v1878
  %v2007 = vpack.c.b16 %v1879, %v1879
  %v2008 = vpack.c.b16 %v1880, %v1880
  %v2009 = vpack.c.b16 %v1881, %v1881
  %v2010 = vpack.c.b16 %v1882, %v1882
  %v2011 = vpack.c.b16 %v1883, %v1883
  %v2012 = vpack.c.b16 %v1884, %v1884
  %v2013 = vpack.c.b16 %v1885, %v1885
  %v2014 = vpack.c.b16 %v1886, %v1886
  %v2015 = vpack.c.b16 %v1887, %v1887
  %v2016 = vpack.c.b16 %v1888, %v1888
  %v2017 = vpack.c.b16 %v1889, %v1889
  %v2018 = vpack.c.b16 %v1890, %v1890
  %v2019 = vpack.c.b16 %v1891, %v1891
  %v2020 = vpack.c.b16 %v1892, %v1892
  %v2021 = vpack.c.b16 %v1893, %v1893
  %v2022 = vpack.c.b16 %v1894, %v1894
  %v2023 = vpack.c.b16 %v1895, %v1895
  %v2024 = vpack.c.b16 %v1896, %v1896
  %v2025 = vpack.c.b16 %v1897, %v1897
  %v2026 = vpack.c.b16 %v1898, %v1898
  %v2027 = vpack.c.b16 %v1899, %v1899
  %v2028 = vpack.c.b16 %v1900, %v1900
  %v2029 = vpack.c.b16 %v1901, %v1901
  %v2030 = vpack.c.b16 %v1902, %v1902
  %v2031 = vpack.c.b16 %v1903, %v1903
  %v2032 = vpack.c.b16 %v1904, %v1904
  %v2033 = vpack.c.b16 %v1905, %v1905
  %v2034 = vpack.c.b16 %v1906, %v1906
  %v2035 = vpack.c.b16 %v1907, %v1907
  %v2036 = vpack.c.b16 %v1908, %v1908
  %v2037 = vpack.c.b16 %v1909, %v1909
  %v2038 = vpack.c.b16 %v1910, %v1910
  %v2039 = vpack.c.b16 %v1911, %v1911
  %v2040 = vpack.c.b16 %v1912, %v1912
  %v2041 = vpack.c.b16 %v1913, %v1913
  %v2042 = vpack.c.b16 %v1914, %v1914
  %v2043 = vpack.c.b16 %v1915, %v1915
  %v2044 = vpack.c.b16 %v1916, %v1916
  %v2045 = vpack.c.b16 %v1917, %v1917
  %v2046 = vpack.c.b16 %v1918, %v1918
  %v2047 = vpack.c.b16 %v1919, %v1919
  %v2048 = vpack.c.b16 %v1920, %v1920
  %v2049 = vpack.c.b16 %v1921, %v1921
  %v2050 = vpack.c.b16 %v1922, %v1922
  %v2051 = vpack.c.b16 %v1923, %v1923
  %v2052 = vpack.c.b16 %v1924, %v1924
  %v2053 = vpack.c.b16 %v1925, %v1925
  %v2054 = vpack.c.b16 %v1926, %v1926
  %v2055 = vpack.c.b16 %v1927, %v1927
  %v2056 = vpack.c.b16 %v1928, %v1928
  %v2057 = vpack.c.b16 %v1929, %v1929
  %v2058 = vpack.c.b16 %v1930, %v1930
  %v2059 = vpack.c.b16 %v1931, %v1931
  %v2060 = vpack.c.b16 %v1932, %v1932
  %v2061 = vpack.c.b16 %v1933, %v1933
  %v2062 = vpack.c.b16 %v1934, %v1934
  %v2063 = vpack.c.b16 %v1935, %v1935
  %v2064 = vpack.c.b16 %v1936, %v1936
  %v2065 = vpack.c.b16 %v1937, %v1937
  %v2066 = vpack.c.b16 %v1938, %v1938
  %v2067 = vpack.c.b16 %v1939, %v1939
  %v2068 = vpack.c.b16 %v1940, %v1940
  %v2069 = vpack.c.b16 %v1941, %v1941
  %v2070 = vpack.c.b16 %v1942, %v1942
  %v2071 = vpack.c.b16 %v1943, %v1943
  %v2072 = vpack.c.b16 %v1944, %v1944
  %v2073 = vpack.c.b16 %v1945, %v1945
  %v2074 = vpack.c.b16 %v1946, %v1946
  %v2075 = vpack.c.b16 %v1947, %v1947
  %v2076 = vpack.c.b16 %v1948, %v1948
  %v2077 = vpack.c.b16 %v1949, %v1949
  %v2078 = vpack.c.b16 %v1950, %v1950
  %v2079 = vpack.c.b16 %v1951, %v1951
  %v2080 = vpack.c.b16 %v1952, %v1952
  %v2081 = vpack.c.b16 %v1953, %v1953
  %v2082 = vpack.c.b16 %v1954, %v1954
  %v2083 = vpack.c.b16 %v1955, %v1955
  %v2084 = vpack.c.b16 %v1956, %v1956
  %v2085 = vpack.c.b16 %v1957, %v1957
  %v2086 = vpack.c.b16 %v1958, %v1958
  %v2087 = vpack.c.b16 %v1959, %v1959
  %v2088 = vpack.c.b16 %v1960, %v1960
  %v2089 = vpack.c.b16 %v1961, %v1961
  %v2090 = vpack.c.b16 %v1962, %v1962
  %v2091 = vpack.c.b16 %v1963, %v1963
  %v2092 = vpack.c.b16 %v1964, %v1964
  %v2093 = vpack.c.b16 %v1965, %v1965
  %v2094 = vpack.c.b16 %v1966, %v1966
  %v2095 = vpack.c.b16 %v1967, %v1967
  %v2096 = vpack.c.b16 %v1968, %v1968
  %v2097 = vpack.c.b16 %v1969, %v1969
  %v2098 = vpack.c.b16 %v1970, %v1970
  %v2099 = vpack.c.b16 %v1971, %v1971
  %v2100 = vpack.c.b16 %v1972, %v1972
  %v2101 = vpack.c.b16 %v1973, %v1973
  %v2102 = vpack.c.b16 %v1974, %v1974
  %v2103 = vpack.c.b16 %v1975, %v1975
  %v2104 = vpack.c.b16 %v1976, %v1976
  %v2105 = vpack.c.b16 %v1977, %v1977
  %v2106 = vpack.c.b16 %v1978, %v1978
  %v2107 = vpack.c.b16 %v1979, %v1979
  %v2108 = vpack.c.b16 %v1980, %v1980
  %v2109 = vpack.c.b16 %v1981, %v1981
  %v2110 = vpack.c.b16 %v1982, %v1982
  %vm2111 = vsmask.f32 4368
  %vm2112 = vmor %vm1627, %vm2111
  %v2114 = vshrl.u32 %v1983, 16
  %v2116 = vrot.slane %v2114, 7
  %v2117 = vshll.u32 %v1983, 16
  %v2119 = vor.u32 %v2116, %v2117
  %v2120 = vrot.slane %v2116, 4
  %v2122 = vshrl.u32 %v1984, 16
  %v2124 = vrot.slane %v2122, 7
  %v2125 = vshll.u32 %v1984, 16
  %v2127 = vor.u32 %v2124, %v2125
  %v2128 = vsel %vm2112, %v2120, %v2127
  %v2129 = vrot.slane %v2124, 4
  %v2131 = vshrl.u32 %v1985, 16
  %v2133 = vrot.slane %v2131, 7
  %v2134 = vshll.u32 %v1985, 16
  %v2136 = vor.u32 %v2133, %v2134
  %v2137 = vsel %vm2112, %v2129, %v2136
  %v2138 = vrot.slane %v2133, 4
  %v2140 = vshrl.u32 %v1986, 16
  %v2142 = vrot.slane %v2140, 7
  %v2143 = vshll.u32 %v1986, 16
  %v2145 = vor.u32 %v2142, %v2143
  %v2146 = vsel %vm2112, %v2138, %v2145
  %v2147 = vrot.slane %v2142, 4
  %v2149 = vshrl.u32 %v1987, 16
  %v2151 = vrot.slane %v2149, 7
  %v2152 = vshll.u32 %v1987, 16
  %v2154 = vor.u32 %v2151, %v2152
  %v2155 = vsel %vm2112, %v2147, %v2154
  %v2156 = vrot.slane %v2151, 4
  %v2158 = vshrl.u32 %v1988, 16
  %v2160 = vrot.slane %v2158, 7
  %v2161 = vshll.u32 %v1988, 16
  %v2163 = vor.u32 %v2160, %v2161
  %v2164 = vsel %vm2112, %v2156, %v2163
  %v2165 = vrot.slane %v2160, 4
  %v2167 = vshrl.u32 %v1989, 16
  %v2169 = vrot.slane %v2167, 7
  %v2170 = vshll.u32 %v1989, 16
  %v2172 = vor.u32 %v2169, %v2170
  %v2173 = vsel %vm2112, %v2165, %v2172
  %v2174 = vrot.slane %v2169, 4
  %v2176 = vshrl.u32 %v1990, 16
  %v2178 = vrot.slane %v2176, 7
  %v2179 = vshll.u32 %v1990, 16
  %v2181 = vor.u32 %v2178, %v2179
  %v2182 = vsel %vm2112, %v2174, %v2181
  %v2183 = vrot.slane %v2178, 4
  %v2185 = vshrl.u32 %v1991, 16
  %v2187 = vrot.slane %v2185, 7
  %v2188 = vshll.u32 %v1991, 16
  %v2190 = vor.u32 %v2187, %v2188
  %v2191 = vrot.slane %v2187, 4
  %v2193 = vshrl.u32 %v1992, 16
  %v2195 = vrot.slane %v2193, 7
  %v2196 = vshll.u32 %v1992, 16
  %v2198 = vor.u32 %v2195, %v2196
  %v2199 = vsel %vm2112, %v2191, %v2198
  %v2200 = vrot.slane %v2195, 4
  %v2202 = vshrl.u32 %v1993, 16
  %v2204 = vrot.slane %v2202, 7
  %v2205 = vshll.u32 %v1993, 16
  %v2207 = vor.u32 %v2204, %v2205
  %v2208 = vsel %vm2112, %v2200, %v2207
  %v2209 = vrot.slane %v2204, 4
  %v2211 = vshrl.u32 %v1994, 16
  %v2213 = vrot.slane %v2211, 7
  %v2214 = vshll.u32 %v1994, 16
  %v2216 = vor.u32 %v2213, %v2214
  %v2217 = vsel %vm2112, %v2209, %v2216
  %v2218 = vrot.slane %v2213, 4
  %v2220 = vshrl.u32 %v1995, 16
  %v2222 = vrot.slane %v2220, 7
  %v2223 = vshll.u32 %v1995, 16
  %v2225 = vor.u32 %v2222, %v2223
  %v2226 = vsel %vm2112, %v2218, %v2225
  %v2227 = vrot.slane %v2222, 4
  %v2229 = vshrl.u32 %v1996, 16
  %v2231 = vrot.slane %v2229, 7
  %v2232 = vshll.u32 %v1996, 16
  %v2234 = vor.u32 %v2231, %v2232
  %v2235 = vsel %vm2112, %v2227, %v2234
  %v2236 = vrot.slane %v2231, 4
  %v2238 = vshrl.u32 %v1997, 16
  %v2240 = vrot.slane %v2238, 7
  %v2241 = vshll.u32 %v1997, 16
  %v2243 = vor.u32 %v2240, %v2241
  %v2244 = vsel %vm2112, %v2236, %v2243
  %v2245 = vrot.slane %v2240, 4
  %v2247 = vshrl.u32 %v1998, 16
  %v2249 = vrot.slane %v2247, 7
  %v2250 = vshll.u32 %v1998, 16
  %v2252 = vor.u32 %v2249, %v2250
  %v2253 = vsel %vm2112, %v2245, %v2252
  %v2254 = vrot.slane %v2249, 4
  %v2256 = vshrl.u32 %v1999, 16
  %v2258 = vrot.slane %v2256, 7
  %v2259 = vshll.u32 %v1999, 16
  %v2261 = vor.u32 %v2258, %v2259
  %v2262 = vrot.slane %v2258, 4
  %v2264 = vshrl.u32 %v2000, 16
  %v2266 = vrot.slane %v2264, 7
  %v2267 = vshll.u32 %v2000, 16
  %v2269 = vor.u32 %v2266, %v2267
  %v2270 = vsel %vm2112, %v2262, %v2269
  %v2271 = vrot.slane %v2266, 4
  %v2273 = vshrl.u32 %v2001, 16
  %v2275 = vrot.slane %v2273, 7
  %v2276 = vshll.u32 %v2001, 16
  %v2278 = vor.u32 %v2275, %v2276
  %v2279 = vsel %vm2112, %v2271, %v2278
  %v2280 = vrot.slane %v2275, 4
  %v2282 = vshrl.u32 %v2002, 16
  %v2284 = vrot.slane %v2282, 7
  %v2285 = vshll.u32 %v2002, 16
  %v2287 = vor.u32 %v2284, %v2285
  %v2288 = vsel %vm2112, %v2280, %v2287
  %v2289 = vrot.slane %v2284, 4
  %v2291 = vshrl.u32 %v2003, 16
  %v2293 = vrot.slane %v2291, 7
  %v2294 = vshll.u32 %v2003, 16
  %v2296 = vor.u32 %v2293, %v2294
  %v2297 = vsel %vm2112, %v2289, %v2296
  %v2298 = vrot.slane %v2293, 4
  %v2300 = vshrl.u32 %v2004, 16
  %v2302 = vrot.slane %v2300, 7
  %v2303 = vshll.u32 %v2004, 16
  %v2305 = vor.u32 %v2302, %v2303
  %v2306 = vsel %vm2112, %v2298, %v2305
  %v2307 = vrot.slane %v2302, 4
  %v2309 = vshrl.u32 %v2005, 16
  %v2311 = vrot.slane %v2309, 7
  %v2312 = vshll.u32 %v2005, 16
  %v2314 = vor.u32 %v2311, %v2312
  %v2315 = vsel %vm2112, %v2307, %v2314
  %v2316 = vrot.slane %v2311, 4
  %v2318 = vshrl.u32 %v2006, 16
  %v2320 = vrot.slane %v2318, 7
  %v2321 = vshll.u32 %v2006, 16
  %v2323 = vor.u32 %v2320, %v2321
  %v2324 = vsel %vm2112, %v2316, %v2323
  %v2325 = vrot.slane %v2320, 4
  %v2327 = vshrl.u32 %v2007, 16
  %v2329 = vrot.slane %v2327, 7
  %v2330 = vshll.u32 %v2007, 16
  %v2332 = vor.u32 %v2329, %v2330
  %v2333 = vrot.slane %v2329, 4
  %v2335 = vshrl.u32 %v2008, 16
  %v2337 = vrot.slane %v2335, 7
  %v2338 = vshll.u32 %v2008, 16
  %v2340 = vor.u32 %v2337, %v2338
  %v2341 = vsel %vm2112, %v2333, %v2340
  %v2342 = vrot.slane %v2337, 4
  %v2344 = vshrl.u32 %v2009, 16
  %v2346 = vrot.slane %v2344, 7
  %v2347 = vshll.u32 %v2009, 16
  %v2349 = vor.u32 %v2346, %v2347
  %v2350 = vsel %vm2112, %v2342, %v2349
  %v2351 = vrot.slane %v2346, 4
  %v2353 = vshrl.u32 %v2010, 16
  %v2355 = vrot.slane %v2353, 7
  %v2356 = vshll.u32 %v2010, 16
  %v2358 = vor.u32 %v2355, %v2356
  %v2359 = vsel %vm2112, %v2351, %v2358
  %v2360 = vrot.slane %v2355, 4
  %v2362 = vshrl.u32 %v2011, 16
  %v2364 = vrot.slane %v2362, 7
  %v2365 = vshll.u32 %v2011, 16
  %v2367 = vor.u32 %v2364, %v2365
  %v2368 = vsel %vm2112, %v2360, %v2367
  %v2369 = vrot.slane %v2364, 4
  %v2371 = vshrl.u32 %v2012, 16
  %v2373 = vrot.slane %v2371, 7
  %v2374 = vshll.u32 %v2012, 16
  %v2376 = vor.u32 %v2373, %v2374
  %v2377 = vsel %vm2112, %v2369, %v2376
  %v2378 = vrot.slane %v2373, 4
  %v2380 = vshrl.u32 %v2013, 16
  %v2382 = vrot.slane %v2380, 7
  %v2383 = vshll.u32 %v2013, 16
  %v2385 = vor.u32 %v2382, %v2383
  %v2386 = vsel %vm2112, %v2378, %v2385
  %v2387 = vrot.slane %v2382, 4
  %v2389 = vshrl.u32 %v2014, 16
  %v2391 = vrot.slane %v2389, 7
  %v2392 = vshll.u32 %v2014, 16
  %v2394 = vor.u32 %v2391, %v2392
  %v2395 = vsel %vm2112, %v2387, %v2394
  %v2396 = vrot.slane %v2391, 4
  %v2398 = vshrl.u32 %v2015, 16
  %v2400 = vrot.slane %v2398, 7
  %v2401 = vshll.u32 %v2015, 16
  %v2403 = vor.u32 %v2400, %v2401
  %v2404 = vrot.slane %v2400, 4
  %v2406 = vshrl.u32 %v2016, 16
  %v2408 = vrot.slane %v2406, 7
  %v2409 = vshll.u32 %v2016, 16
  %v2411 = vor.u32 %v2408, %v2409
  %v2412 = vsel %vm2112, %v2404, %v2411
  %v2413 = vrot.slane %v2408, 4
  %v2415 = vshrl.u32 %v2017, 16
  %v2417 = vrot.slane %v2415, 7
  %v2418 = vshll.u32 %v2017, 16
  %v2420 = vor.u32 %v2417, %v2418
  %v2421 = vsel %vm2112, %v2413, %v2420
  %v2422 = vrot.slane %v2417, 4
  %v2424 = vshrl.u32 %v2018, 16
  %v2426 = vrot.slane %v2424, 7
  %v2427 = vshll.u32 %v2018, 16
  %v2429 = vor.u32 %v2426, %v2427
  %v2430 = vsel %vm2112, %v2422, %v2429
  %v2431 = vrot.slane %v2426, 4
  %v2433 = vshrl.u32 %v2019, 16
  %v2435 = vrot.slane %v2433, 7
  %v2436 = vshll.u32 %v2019, 16
  %v2438 = vor.u32 %v2435, %v2436
  %v2439 = vsel %vm2112, %v2431, %v2438
  %v2440 = vrot.slane %v2435, 4
  %v2442 = vshrl.u32 %v2020, 16
  %v2444 = vrot.slane %v2442, 7
  %v2445 = vshll.u32 %v2020, 16
  %v2447 = vor.u32 %v2444, %v2445
  %v2448 = vsel %vm2112, %v2440, %v2447
  %v2449 = vrot.slane %v2444, 4
  %v2451 = vshrl.u32 %v2021, 16
  %v2453 = vrot.slane %v2451, 7
  %v2454 = vshll.u32 %v2021, 16
  %v2456 = vor.u32 %v2453, %v2454
  %v2457 = vsel %vm2112, %v2449, %v2456
  %v2458 = vrot.slane %v2453, 4
  %v2460 = vshrl.u32 %v2022, 16
  %v2462 = vrot.slane %v2460, 7
  %v2463 = vshll.u32 %v2022, 16
  %v2465 = vor.u32 %v2462, %v2463
  %v2466 = vsel %vm2112, %v2458, %v2465
  %v2467 = vrot.slane %v2462, 4
  %v2469 = vshrl.u32 %v2023, 16
  %v2471 = vrot.slane %v2469, 7
  %v2472 = vshll.u32 %v2023, 16
  %v2474 = vor.u32 %v2471, %v2472
  %v2475 = vrot.slane %v2471, 4
  %v2477 = vshrl.u32 %v2024, 16
  %v2479 = vrot.slane %v2477, 7
  %v2480 = vshll.u32 %v2024, 16
  %v2482 = vor.u32 %v2479, %v2480
  %v2483 = vsel %vm2112, %v2475, %v2482
  %v2484 = vrot.slane %v2479, 4
  %v2486 = vshrl.u32 %v2025, 16
  %v2488 = vrot.slane %v2486, 7
  %v2489 = vshll.u32 %v2025, 16
  %v2491 = vor.u32 %v2488, %v2489
  %v2492 = vsel %vm2112, %v2484, %v2491
  %v2493 = vrot.slane %v2488, 4
  %v2495 = vshrl.u32 %v2026, 16
  %v2497 = vrot.slane %v2495, 7
  %v2498 = vshll.u32 %v2026, 16
  %v2500 = vor.u32 %v2497, %v2498
  %v2501 = vsel %vm2112, %v2493, %v2500
  %v2502 = vrot.slane %v2497, 4
  %v2504 = vshrl.u32 %v2027, 16
  %v2506 = vrot.slane %v2504, 7
  %v2507 = vshll.u32 %v2027, 16
  %v2509 = vor.u32 %v2506, %v2507
  %v2510 = vsel %vm2112, %v2502, %v2509
  %v2511 = vrot.slane %v2506, 4
  %v2513 = vshrl.u32 %v2028, 16
  %v2515 = vrot.slane %v2513, 7
  %v2516 = vshll.u32 %v2028, 16
  %v2518 = vor.u32 %v2515, %v2516
  %v2519 = vsel %vm2112, %v2511, %v2518
  %v2520 = vrot.slane %v2515, 4
  %v2522 = vshrl.u32 %v2029, 16
  %v2524 = vrot.slane %v2522, 7
  %v2525 = vshll.u32 %v2029, 16
  %v2527 = vor.u32 %v2524, %v2525
  %v2528 = vsel %vm2112, %v2520, %v2527
  %v2529 = vrot.slane %v2524, 4
  %v2531 = vshrl.u32 %v2030, 16
  %v2533 = vrot.slane %v2531, 7
  %v2534 = vshll.u32 %v2030, 16
  %v2536 = vor.u32 %v2533, %v2534
  %v2537 = vsel %vm2112, %v2529, %v2536
  %v2538 = vrot.slane %v2533, 4
  %v2540 = vshrl.u32 %v2031, 16
  %v2542 = vrot.slane %v2540, 7
  %v2543 = vshll.u32 %v2031, 16
  %v2545 = vor.u32 %v2542, %v2543
  %v2546 = vrot.slane %v2542, 4
  %v2548 = vshrl.u32 %v2032, 16
  %v2550 = vrot.slane %v2548, 7
  %v2551 = vshll.u32 %v2032, 16
  %v2553 = vor.u32 %v2550, %v2551
  %v2554 = vsel %vm2112, %v2546, %v2553
  %v2555 = vrot.slane %v2550, 4
  %v2557 = vshrl.u32 %v2033, 16
  %v2559 = vrot.slane %v2557, 7
  %v2560 = vshll.u32 %v2033, 16
  %v2562 = vor.u32 %v2559, %v2560
  %v2563 = vsel %vm2112, %v2555, %v2562
  %v2564 = vrot.slane %v2559, 4
  %v2566 = vshrl.u32 %v2034, 16
  %v2568 = vrot.slane %v2566, 7
  %v2569 = vshll.u32 %v2034, 16
  %v2571 = vor.u32 %v2568, %v2569
  %v2572 = vsel %vm2112, %v2564, %v2571
  %v2573 = vrot.slane %v2568, 4
  %v2575 = vshrl.u32 %v2035, 16
  %v2577 = vrot.slane %v2575, 7
  %v2578 = vshll.u32 %v2035, 16
  %v2580 = vor.u32 %v2577, %v2578
  %v2581 = vsel %vm2112, %v2573, %v2580
  %v2582 = vrot.slane %v2577, 4
  %v2584 = vshrl.u32 %v2036, 16
  %v2586 = vrot.slane %v2584, 7
  %v2587 = vshll.u32 %v2036, 16
  %v2589 = vor.u32 %v2586, %v2587
  %v2590 = vsel %vm2112, %v2582, %v2589
  %v2591 = vrot.slane %v2586, 4
  %v2593 = vshrl.u32 %v2037, 16
  %v2595 = vrot.slane %v2593, 7
  %v2596 = vshll.u32 %v2037, 16
  %v2598 = vor.u32 %v2595, %v2596
  %v2599 = vsel %vm2112, %v2591, %v2598
  %v2600 = vrot.slane %v2595, 4
  %v2602 = vshrl.u32 %v2038, 16
  %v2604 = vrot.slane %v2602, 7
  %v2605 = vshll.u32 %v2038, 16
  %v2607 = vor.u32 %v2604, %v2605
  %v2608 = vsel %vm2112, %v2600, %v2607
  %v2609 = vrot.slane %v2604, 4
  %v2611 = vshrl.u32 %v2039, 16
  %v2613 = vrot.slane %v2611, 7
  %v2614 = vshll.u32 %v2039, 16
  %v2616 = vor.u32 %v2613, %v2614
  %v2617 = vrot.slane %v2613, 4
  %v2619 = vshrl.u32 %v2040, 16
  %v2621 = vrot.slane %v2619, 7
  %v2622 = vshll.u32 %v2040, 16
  %v2624 = vor.u32 %v2621, %v2622
  %v2625 = vsel %vm2112, %v2617, %v2624
  %v2626 = vrot.slane %v2621, 4
  %v2628 = vshrl.u32 %v2041, 16
  %v2630 = vrot.slane %v2628, 7
  %v2631 = vshll.u32 %v2041, 16
  %v2633 = vor.u32 %v2630, %v2631
  %v2634 = vsel %vm2112, %v2626, %v2633
  %v2635 = vrot.slane %v2630, 4
  %v2637 = vshrl.u32 %v2042, 16
  %v2639 = vrot.slane %v2637, 7
  %v2640 = vshll.u32 %v2042, 16
  %v2642 = vor.u32 %v2639, %v2640
  %v2643 = vsel %vm2112, %v2635, %v2642
  %v2644 = vrot.slane %v2639, 4
  %v2646 = vshrl.u32 %v2043, 16
  %v2648 = vrot.slane %v2646, 7
  %v2649 = vshll.u32 %v2043, 16
  %v2651 = vor.u32 %v2648, %v2649
  %v2652 = vsel %vm2112, %v2644, %v2651
  %v2653 = vrot.slane %v2648, 4
  %v2655 = vshrl.u32 %v2044, 16
  %v2657 = vrot.slane %v2655, 7
  %v2658 = vshll.u32 %v2044, 16
  %v2660 = vor.u32 %v2657, %v2658
  %v2661 = vsel %vm2112, %v2653, %v2660
  %v2662 = vrot.slane %v2657, 4
  %v2664 = vshrl.u32 %v2045, 16
  %v2666 = vrot.slane %v2664, 7
  %v2667 = vshll.u32 %v2045, 16
  %v2669 = vor.u32 %v2666, %v2667
  %v2670 = vsel %vm2112, %v2662, %v2669
  %v2671 = vrot.slane %v2666, 4
  %v2673 = vshrl.u32 %v2046, 16
  %v2675 = vrot.slane %v2673, 7
  %v2676 = vshll.u32 %v2046, 16
  %v2678 = vor.u32 %v2675, %v2676
  %v2679 = vsel %vm2112, %v2671, %v2678
  %v2680 = vrot.slane %v2675, 4
  %v2682 = vshrl.u32 %v2047, 16
  %v2684 = vrot.slane %v2682, 7
  %v2685 = vshll.u32 %v2047, 16
  %v2687 = vor.u32 %v2684, %v2685
  %v2688 = vrot.slane %v2684, 4
  %v2690 = vshrl.u32 %v2048, 16
  %v2692 = vrot.slane %v2690, 7
  %v2693 = vshll.u32 %v2048, 16
  %v2695 = vor.u32 %v2692, %v2693
  %v2696 = vsel %vm2112, %v2688, %v2695
  %v2697 = vrot.slane %v2692, 4
  %v2699 = vshrl.u32 %v2049, 16
  %v2701 = vrot.slane %v2699, 7
  %v2702 = vshll.u32 %v2049, 16
  %v2704 = vor.u32 %v2701, %v2702
  %v2705 = vsel %vm2112, %v2697, %v2704
  %v2706 = vrot.slane %v2701, 4
  %v2708 = vshrl.u32 %v2050, 16
  %v2710 = vrot.slane %v2708, 7
  %v2711 = vshll.u32 %v2050, 16
  %v2713 = vor.u32 %v2710, %v2711
  %v2714 = vsel %vm2112, %v2706, %v2713
  %v2715 = vrot.slane %v2710, 4
  %v2717 = vshrl.u32 %v2051, 16
  %v2719 = vrot.slane %v2717, 7
  %v2720 = vshll.u32 %v2051, 16
  %v2722 = vor.u32 %v2719, %v2720
  %v2723 = vsel %vm2112, %v2715, %v2722
  %v2724 = vrot.slane %v2719, 4
  %v2726 = vshrl.u32 %v2052, 16
  %v2728 = vrot.slane %v2726, 7
  %v2729 = vshll.u32 %v2052, 16
  %v2731 = vor.u32 %v2728, %v2729
  %v2732 = vsel %vm2112, %v2724, %v2731
  %v2733 = vrot.slane %v2728, 4
  %v2735 = vshrl.u32 %v2053, 16
  %v2737 = vrot.slane %v2735, 7
  %v2738 = vshll.u32 %v2053, 16
  %v2740 = vor.u32 %v2737, %v2738
  %v2741 = vsel %vm2112, %v2733, %v2740
  %v2742 = vrot.slane %v2737, 4
  %v2744 = vshrl.u32 %v2054, 16
  %v2746 = vrot.slane %v2744, 7
  %v2747 = vshll.u32 %v2054, 16
  %v2749 = vor.u32 %v2746, %v2747
  %v2750 = vsel %vm2112, %v2742, %v2749
  %v2751 = vrot.slane %v2746, 4
  %v2753 = vshrl.u32 %v2055, 16
  %v2755 = vrot.slane %v2753, 7
  %v2756 = vshll.u32 %v2055, 16
  %v2758 = vor.u32 %v2755, %v2756
  %v2759 = vrot.slane %v2755, 4
  %v2761 = vshrl.u32 %v2056, 16
  %v2763 = vrot.slane %v2761, 7
  %v2764 = vshll.u32 %v2056, 16
  %v2766 = vor.u32 %v2763, %v2764
  %v2767 = vsel %vm2112, %v2759, %v2766
  %v2768 = vrot.slane %v2763, 4
  %v2770 = vshrl.u32 %v2057, 16
  %v2772 = vrot.slane %v2770, 7
  %v2773 = vshll.u32 %v2057, 16
  %v2775 = vor.u32 %v2772, %v2773
  %v2776 = vsel %vm2112, %v2768, %v2775
  %v2777 = vrot.slane %v2772, 4
  %v2779 = vshrl.u32 %v2058, 16
  %v2781 = vrot.slane %v2779, 7
  %v2782 = vshll.u32 %v2058, 16
  %v2784 = vor.u32 %v2781, %v2782
  %v2785 = vsel %vm2112, %v2777, %v2784
  %v2786 = vrot.slane %v2781, 4
  %v2788 = vshrl.u32 %v2059, 16
  %v2790 = vrot.slane %v2788, 7
  %v2791 = vshll.u32 %v2059, 16
  %v2793 = vor.u32 %v2790, %v2791
  %v2794 = vsel %vm2112, %v2786, %v2793
  %v2795 = vrot.slane %v2790, 4
  %v2797 = vshrl.u32 %v2060, 16
  %v2799 = vrot.slane %v2797, 7
  %v2800 = vshll.u32 %v2060, 16
  %v2802 = vor.u32 %v2799, %v2800
  %v2803 = vsel %vm2112, %v2795, %v2802
  %v2804 = vrot.slane %v2799, 4
  %v2806 = vshrl.u32 %v2061, 16
  %v2808 = vrot.slane %v2806, 7
  %v2809 = vshll.u32 %v2061, 16
  %v2811 = vor.u32 %v2808, %v2809
  %v2812 = vsel %vm2112, %v2804, %v2811
  %v2813 = vrot.slane %v2808, 4
  %v2815 = vshrl.u32 %v2062, 16
  %v2817 = vrot.slane %v2815, 7
  %v2818 = vshll.u32 %v2062, 16
  %v2820 = vor.u32 %v2817, %v2818
  %v2821 = vsel %vm2112, %v2813, %v2820
  %v2822 = vrot.slane %v2817, 4
  %v2824 = vshrl.u32 %v2063, 16
  %v2826 = vrot.slane %v2824, 7
  %v2827 = vshll.u32 %v2063, 16
  %v2829 = vor.u32 %v2826, %v2827
  %v2830 = vrot.slane %v2826, 4
  %v2832 = vshrl.u32 %v2064, 16
  %v2834 = vrot.slane %v2832, 7
  %v2835 = vshll.u32 %v2064, 16
  %v2837 = vor.u32 %v2834, %v2835
  %v2838 = vsel %vm2112, %v2830, %v2837
  %v2839 = vrot.slane %v2834, 4
  %v2841 = vshrl.u32 %v2065, 16
  %v2843 = vrot.slane %v2841, 7
  %v2844 = vshll.u32 %v2065, 16
  %v2846 = vor.u32 %v2843, %v2844
  %v2847 = vsel %vm2112, %v2839, %v2846
  %v2848 = vrot.slane %v2843, 4
  %v2850 = vshrl.u32 %v2066, 16
  %v2852 = vrot.slane %v2850, 7
  %v2853 = vshll.u32 %v2066, 16
  %v2855 = vor.u32 %v2852, %v2853
  %v2856 = vsel %vm2112, %v2848, %v2855
  %v2857 = vrot.slane %v2852, 4
  %v2859 = vshrl.u32 %v2067, 16
  %v2861 = vrot.slane %v2859, 7
  %v2862 = vshll.u32 %v2067, 16
  %v2864 = vor.u32 %v2861, %v2862
  %v2865 = vsel %vm2112, %v2857, %v2864
  %v2866 = vrot.slane %v2861, 4
  %v2868 = vshrl.u32 %v2068, 16
  %v2870 = vrot.slane %v2868, 7
  %v2871 = vshll.u32 %v2068, 16
  %v2873 = vor.u32 %v2870, %v2871
  %v2874 = vsel %vm2112, %v2866, %v2873
  %v2875 = vrot.slane %v2870, 4
  %v2877 = vshrl.u32 %v2069, 16
  %v2879 = vrot.slane %v2877, 7
  %v2880 = vshll.u32 %v2069, 16
  %v2882 = vor.u32 %v2879, %v2880
  %v2883 = vsel %vm2112, %v2875, %v2882
  %v2884 = vrot.slane %v2879, 4
  %v2886 = vshrl.u32 %v2070, 16
  %v2888 = vrot.slane %v2886, 7
  %v2889 = vshll.u32 %v2070, 16
  %v2891 = vor.u32 %v2888, %v2889
  %v2892 = vsel %vm2112, %v2884, %v2891
  %v2893 = vrot.slane %v2888, 4
  %v2895 = vshrl.u32 %v2071, 16
  %v2897 = vrot.slane %v2895, 7
  %v2898 = vshll.u32 %v2071, 16
  %v2900 = vor.u32 %v2897, %v2898
  %v2901 = vrot.slane %v2897, 4
  %v2903 = vshrl.u32 %v2072, 16
  %v2905 = vrot.slane %v2903, 7
  %v2906 = vshll.u32 %v2072, 16
  %v2908 = vor.u32 %v2905, %v2906
  %v2909 = vsel %vm2112, %v2901, %v2908
  %v2910 = vrot.slane %v2905, 4
  %v2912 = vshrl.u32 %v2073, 16
  %v2914 = vrot.slane %v2912, 7
  %v2915 = vshll.u32 %v2073, 16
  %v2917 = vor.u32 %v2914, %v2915
  %v2918 = vsel %vm2112, %v2910, %v2917
  %v2919 = vrot.slane %v2914, 4
  %v2921 = vshrl.u32 %v2074, 16
  %v2923 = vrot.slane %v2921, 7
  %v2924 = vshll.u32 %v2074, 16
  %v2926 = vor.u32 %v2923, %v2924
  %v2927 = vsel %vm2112, %v2919, %v2926
  %v2928 = vrot.slane %v2923, 4
  %v2930 = vshrl.u32 %v2075, 16
  %v2932 = vrot.slane %v2930, 7
  %v2933 = vshll.u32 %v2075, 16
  %v2935 = vor.u32 %v2932, %v2933
  %v2936 = vsel %vm2112, %v2928, %v2935
  %v2937 = vrot.slane %v2932, 4
  %v2939 = vshrl.u32 %v2076, 16
  %v2941 = vrot.slane %v2939, 7
  %v2942 = vshll.u32 %v2076, 16
  %v2944 = vor.u32 %v2941, %v2942
  %v2945 = vsel %vm2112, %v2937, %v2944
  %v2946 = vrot.slane %v2941, 4
  %v2948 = vshrl.u32 %v2077, 16
  %v2950 = vrot.slane %v2948, 7
  %v2951 = vshll.u32 %v2077, 16
  %v2953 = vor.u32 %v2950, %v2951
  %v2954 = vsel %vm2112, %v2946, %v2953
  %v2955 = vrot.slane %v2950, 4
  %v2957 = vshrl.u32 %v2078, 16
  %v2959 = vrot.slane %v2957, 7
  %v2960 = vshll.u32 %v2078, 16
  %v2962 = vor.u32 %v2959, %v2960
  %v2963 = vsel %vm2112, %v2955, %v2962
  %v2964 = vrot.slane %v2959, 4
  %v2966 = vshrl.u32 %v2079, 16
  %v2968 = vrot.slane %v2966, 7
  %v2969 = vshll.u32 %v2079, 16
  %v2971 = vor.u32 %v2968, %v2969
  %v2972 = vrot.slane %v2968, 4
  %v2974 = vshrl.u32 %v2080, 16
  %v2976 = vrot.slane %v2974, 7
  %v2977 = vshll.u32 %v2080, 16
  %v2979 = vor.u32 %v2976, %v2977
  %v2980 = vsel %vm2112, %v2972, %v2979
  %v2981 = vrot.slane %v2976, 4
  %v2983 = vshrl.u32 %v2081, 16
  %v2985 = vrot.slane %v2983, 7
  %v2986 = vshll.u32 %v2081, 16
  %v2988 = vor.u32 %v2985, %v2986
  %v2989 = vsel %vm2112, %v2981, %v2988
  %v2990 = vrot.slane %v2985, 4
  %v2992 = vshrl.u32 %v2082, 16
  %v2994 = vrot.slane %v2992, 7
  %v2995 = vshll.u32 %v2082, 16
  %v2997 = vor.u32 %v2994, %v2995
  %v2998 = vsel %vm2112, %v2990, %v2997
  %v2999 = vrot.slane %v2994, 4
  %v3001 = vshrl.u32 %v2083, 16
  %v3003 = vrot.slane %v3001, 7
  %v3004 = vshll.u32 %v2083, 16
  %v3006 = vor.u32 %v3003, %v3004
  %v3007 = vsel %vm2112, %v2999, %v3006
  %v3008 = vrot.slane %v3003, 4
  %v3010 = vshrl.u32 %v2084, 16
  %v3012 = vrot.slane %v3010, 7
  %v3013 = vshll.u32 %v2084, 16
  %v3015 = vor.u32 %v3012, %v3013
  %v3016 = vsel %vm2112, %v3008, %v3015
  %v3017 = vrot.slane %v3012, 4
  %v3019 = vshrl.u32 %v2085, 16
  %v3021 = vrot.slane %v3019, 7
  %v3022 = vshll.u32 %v2085, 16
  %v3024 = vor.u32 %v3021, %v3022
  %v3025 = vsel %vm2112, %v3017, %v3024
  %v3026 = vrot.slane %v3021, 4
  %v3028 = vshrl.u32 %v2086, 16
  %v3030 = vrot.slane %v3028, 7
  %v3031 = vshll.u32 %v2086, 16
  %v3033 = vor.u32 %v3030, %v3031
  %v3034 = vsel %vm2112, %v3026, %v3033
  %v3035 = vrot.slane %v3030, 4
  %v3037 = vshrl.u32 %v2087, 16
  %v3039 = vrot.slane %v3037, 7
  %v3040 = vshll.u32 %v2087, 16
  %v3042 = vor.u32 %v3039, %v3040
  %v3043 = vrot.slane %v3039, 4
  %v3045 = vshrl.u32 %v2088, 16
  %v3047 = vrot.slane %v3045, 7
  %v3048 = vshll.u32 %v2088, 16
  %v3050 = vor.u32 %v3047, %v3048
  %v3051 = vsel %vm2112, %v3043, %v3050
  %v3052 = vrot.slane %v3047, 4
  %v3054 = vshrl.u32 %v2089, 16
  %v3056 = vrot.slane %v3054, 7
  %v3057 = vshll.u32 %v2089, 16
  %v3059 = vor.u32 %v3056, %v3057
  %v3060 = vsel %vm2112, %v3052, %v3059
  %v3061 = vrot.slane %v3056, 4
  %v3063 = vshrl.u32 %v2090, 16
  %v3065 = vrot.slane %v3063, 7
  %v3066 = vshll.u32 %v2090, 16
  %v3068 = vor.u32 %v3065, %v3066
  %v3069 = vsel %vm2112, %v3061, %v3068
  %v3070 = vrot.slane %v3065, 4
  %v3072 = vshrl.u32 %v2091, 16
  %v3074 = vrot.slane %v3072, 7
  %v3075 = vshll.u32 %v2091, 16
  %v3077 = vor.u32 %v3074, %v3075
  %v3078 = vsel %vm2112, %v3070, %v3077
  %v3079 = vrot.slane %v3074, 4
  %v3081 = vshrl.u32 %v2092, 16
  %v3083 = vrot.slane %v3081, 7
  %v3084 = vshll.u32 %v2092, 16
  %v3086 = vor.u32 %v3083, %v3084
  %v3087 = vsel %vm2112, %v3079, %v3086
  %v3088 = vrot.slane %v3083, 4
  %v3090 = vshrl.u32 %v2093, 16
  %v3092 = vrot.slane %v3090, 7
  %v3093 = vshll.u32 %v2093, 16
  %v3095 = vor.u32 %v3092, %v3093
  %v3096 = vsel %vm2112, %v3088, %v3095
  %v3097 = vrot.slane %v3092, 4
  %v3099 = vshrl.u32 %v2094, 16
  %v3101 = vrot.slane %v3099, 7
  %v3102 = vshll.u32 %v2094, 16
  %v3104 = vor.u32 %v3101, %v3102
  %v3105 = vsel %vm2112, %v3097, %v3104
  %v3106 = vrot.slane %v3101, 4
  %v3108 = vshrl.u32 %v2095, 16
  %v3110 = vrot.slane %v3108, 7
  %v3111 = vshll.u32 %v2095, 16
  %v3113 = vor.u32 %v3110, %v3111
  %v3114 = vrot.slane %v3110, 4
  %v3116 = vshrl.u32 %v2096, 16
  %v3118 = vrot.slane %v3116, 7
  %v3119 = vshll.u32 %v2096, 16
  %v3121 = vor.u32 %v3118, %v3119
  %v3122 = vsel %vm2112, %v3114, %v3121
  %v3123 = vrot.slane %v3118, 4
  %v3125 = vshrl.u32 %v2097, 16
  %v3127 = vrot.slane %v3125, 7
  %v3128 = vshll.u32 %v2097, 16
  %v3130 = vor.u32 %v3127, %v3128
  %v3131 = vsel %vm2112, %v3123, %v3130
  %v3132 = vrot.slane %v3127, 4
  %v3134 = vshrl.u32 %v2098, 16
  %v3136 = vrot.slane %v3134, 7
  %v3137 = vshll.u32 %v2098, 16
  %v3139 = vor.u32 %v3136, %v3137
  %v3140 = vsel %vm2112, %v3132, %v3139
  %v3141 = vrot.slane %v3136, 4
  %v3143 = vshrl.u32 %v2099, 16
  %v3145 = vrot.slane %v3143, 7
  %v3146 = vshll.u32 %v2099, 16
  %v3148 = vor.u32 %v3145, %v3146
  %v3149 = vsel %vm2112, %v3141, %v3148
  %v3150 = vrot.slane %v3145, 4
  %v3152 = vshrl.u32 %v2100, 16
  %v3154 = vrot.slane %v3152, 7
  %v3155 = vshll.u32 %v2100, 16
  %v3157 = vor.u32 %v3154, %v3155
  %v3158 = vsel %vm2112, %v3150, %v3157
  %v3159 = vrot.slane %v3154, 4
  %v3161 = vshrl.u32 %v2101, 16
  %v3163 = vrot.slane %v3161, 7
  %v3164 = vshll.u32 %v2101, 16
  %v3166 = vor.u32 %v3163, %v3164
  %v3167 = vsel %vm2112, %v3159, %v3166
  %v3168 = vrot.slane %v3163, 4
  %v3170 = vshrl.u32 %v2102, 16
  %v3172 = vrot.slane %v3170, 7
  %v3173 = vshll.u32 %v2102, 16
  %v3175 = vor.u32 %v3172, %v3173
  %v3176 = vsel %vm2112, %v3168, %v3175
  %v3177 = vrot.slane %v3172, 4
  %v3179 = vshrl.u32 %v2103, 16
  %v3181 = vrot.slane %v3179, 7
  %v3182 = vshll.u32 %v2103, 16
  %v3184 = vor.u32 %v3181, %v3182
  %v3185 = vrot.slane %v3181, 4
  %v3187 = vshrl.u32 %v2104, 16
  %v3189 = vrot.slane %v3187, 7
  %v3190 = vshll.u32 %v2104, 16
  %v3192 = vor.u32 %v3189, %v3190
  %v3193 = vsel %vm2112, %v3185, %v3192
  %v3194 = vrot.slane %v3189, 4
  %v3196 = vshrl.u32 %v2105, 16
  %v3198 = vrot.slane %v3196, 7
  %v3199 = vshll.u32 %v2105, 16
  %v3201 = vor.u32 %v3198, %v3199
  %v3202 = vsel %vm2112, %v3194, %v3201
  %v3203 = vrot.slane %v3198, 4
  %v3205 = vshrl.u32 %v2106, 16
  %v3207 = vrot.slane %v3205, 7
  %v3208 = vshll.u32 %v2106, 16
  %v3210 = vor.u32 %v3207, %v3208
  %v3211 = vsel %vm2112, %v3203, %v3210
  %v3212 = vrot.slane %v3207, 4
  %v3214 = vshrl.u32 %v2107, 16
  %v3216 = vrot.slane %v3214, 7
  %v3217 = vshll.u32 %v2107, 16
  %v3219 = vor.u32 %v3216, %v3217
  %v3220 = vsel %vm2112, %v3212, %v3219
  %v3221 = vrot.slane %v3216, 4
  %v3223 = vshrl.u32 %v2108, 16
  %v3225 = vrot.slane %v3223, 7
  %v3226 = vshll.u32 %v2108, 16
  %v3228 = vor.u32 %v3225, %v3226
  %v3229 = vsel %vm2112, %v3221, %v3228
  %v3230 = vrot.slane %v3225, 4
  %v3232 = vshrl.u32 %v2109, 16
  %v3234 = vrot.slane %v3232, 7
  %v3235 = vshll.u32 %v2109, 16
  %v3237 = vor.u32 %v3234, %v3235
  %v3238 = vsel %vm2112, %v3230, %v3237
  %v3239 = vrot.slane %v3234, 4
  %v3241 = vshrl.u32 %v2110, 16
  %v3243 = vrot.slane %v3241, 7
  %v3244 = vshll.u32 %v2110, 16
  %v3246 = vor.u32 %v3243, %v3244
  %v3247 = vsel %vm2112, %v3239, %v3246
  %v3248 = vrot.slane %v3243, 4
  %vm3393 = vcmask 257024
  %vm3394 = vmand %vm3393, %vm1677
  %v3395 = vld [vmem:[#allocation2] sm:$0xf]
  %v3396 = vsel %vm3394, %v2119, %v3395
  %3397 = vst [vmem:[#allocation2] sm:$0xf] %v3396
  %vm3398 = vcmask 257024
  %3399 = vst.msk [vmem:[#allocation2 + $0x4] sm:$0xf] %vm3398, %v2128
  %3400 = vst.msk [vmem:[#allocation2 + $0x8] sm:$0xf] %vm3398, %v2137
  %3401 = vst.msk [vmem:[#allocation2 + $0xc] sm:$0xf] %vm3398, %v2146
  %3402 = vst.msk [vmem:[#allocation2 + $0x10] sm:$0xf] %vm3398, %v2155
  %3403 = vst.msk [vmem:[#allocation2 + $0x14] sm:$0xf] %vm3398, %v2164
  %3404 = vst.msk [vmem:[#allocation2 + $0x18] sm:$0xf] %vm3398, %v2173
  %3405 = vst.msk [vmem:[#allocation2 + $0x1c] sm:$0xf] %vm3398, %v2182
  %v3406 = vld [vmem:[#allocation2 + $0x20] sm:$0x1]
  %v3407 = vsel %vm1628, %v2183, %v3406
  %3408 = vst [vmem:[#allocation2 + $0x20] sm:$0x1] %v3407
  %v3409 = vld [vmem:[#allocation2 + $0x24] sm:$0xf]
  %v3410 = vsel %vm3394, %v2190, %v3409
  %3411 = vst [vmem:[#allocation2 + $0x24] sm:$0xf] %v3410
  %3412 = vst.msk [vmem:[#allocation2 + $0x28] sm:$0xf] %vm3398, %v2199
  %3413 = vst.msk [vmem:[#allocation2 + $0x2c] sm:$0xf] %vm3398, %v2208
  %3414 = vst.msk [vmem:[#allocation2 + $0x30] sm:$0xf] %vm3398, %v2217
  %3415 = vst.msk [vmem:[#allocation2 + $0x34] sm:$0xf] %vm3398, %v2226
  %3416 = vst.msk [vmem:[#allocation2 + $0x38] sm:$0xf] %vm3398, %v2235
  %3417 = vst.msk [vmem:[#allocation2 + $0x3c] sm:$0xf] %vm3398, %v2244
  %3418 = vst.msk [vmem:[#allocation2 + $0x40] sm:$0xf] %vm3398, %v2253
  %v3419 = vld [vmem:[#allocation2 + $0x44] sm:$0x1]
  %v3420 = vsel %vm1628, %v2254, %v3419
  %3421 = vst [vmem:[#allocation2 + $0x44] sm:$0x1] %v3420
  %v3422 = vld [vmem:[#allocation2 + $0x48] sm:$0xf]
  %v3423 = vsel %vm3394, %v2261, %v3422
  %3424 = vst [vmem:[#allocation2 + $0x48] sm:$0xf] %v3423
  %3425 = vst.msk [vmem:[#allocation2 + $0x4c] sm:$0xf] %vm3398, %v2270
  %3426 = vst.msk [vmem:[#allocation2 + $0x50] sm:$0xf] %vm3398, %v2279
  %3427 = vst.msk [vmem:[#allocation2 + $0x54] sm:$0xf] %vm3398, %v2288
  %3428 = vst.msk [vmem:[#allocation2 + $0x58] sm:$0xf] %vm3398, %v2297
  %3429 = vst.msk [vmem:[#allocation2 + $0x5c] sm:$0xf] %vm3398, %v2306
  %3430 = vst.msk [vmem:[#allocation2 + $0x60] sm:$0xf] %vm3398, %v2315
  %3431 = vst.msk [vmem:[#allocation2 + $0x64] sm:$0xf] %vm3398, %v2324
  %v3432 = vld [vmem:[#allocation2 + $0x68] sm:$0x1]
  %v3433 = vsel %vm1628, %v2325, %v3432
  %3434 = vst [vmem:[#allocation2 + $0x68] sm:$0x1] %v3433
  %v3435 = vld [vmem:[#allocation2 + $0x6c] sm:$0xf]
  %v3436 = vsel %vm3394, %v2332, %v3435
  %3437 = vst [vmem:[#allocation2 + $0x6c] sm:$0xf] %v3436
  %3438 = vst.msk [vmem:[#allocation2 + $0x70] sm:$0xf] %vm3398, %v2341
  %3439 = vst.msk [vmem:[#allocation2 + $0x74] sm:$0xf] %vm3398, %v2350
  %3440 = vst.msk [vmem:[#allocation2 + $0x78] sm:$0xf] %vm3398, %v2359
  %3441 = vst.msk [vmem:[#allocation2 + $0x7c] sm:$0xf] %vm3398, %v2368
  %3442 = vst.msk [vmem:[#allocation2 + $0x80] sm:$0xf] %vm3398, %v2377
  %3443 = vst.msk [vmem:[#allocation2 + $0x84] sm:$0xf] %vm3398, %v2386
  %3444 = vst.msk [vmem:[#allocation2 + $0x88] sm:$0xf] %vm3398, %v2395
  %v3445 = vld [vmem:[#allocation2 + $0x8c] sm:$0x1]
  %v3446 = vsel %vm1628, %v2396, %v3445
  %3447 = vst [vmem:[#allocation2 + $0x8c] sm:$0x1] %v3446
  %v3448 = vld [vmem:[#allocation2 + $0x90] sm:$0xf]
  %v3449 = vsel %vm3394, %v2403, %v3448
  %3450 = vst [vmem:[#allocation2 + $0x90] sm:$0xf] %v3449
  %3451 = vst.msk [vmem:[#allocation2 + $0x94] sm:$0xf] %vm3398, %v2412
  %3452 = vst.msk [vmem:[#allocation2 + $0x98] sm:$0xf] %vm3398, %v2421
  %3453 = vst.msk [vmem:[#allocation2 + $0x9c] sm:$0xf] %vm3398, %v2430
  %3454 = vst.msk [vmem:[#allocation2 + $0xa0] sm:$0xf] %vm3398, %v2439
  %3455 = vst.msk [vmem:[#allocation2 + $0xa4] sm:$0xf] %vm3398, %v2448
  %3456 = vst.msk [vmem:[#allocation2 + $0xa8] sm:$0xf] %vm3398, %v2457
  %3457 = vst.msk [vmem:[#allocation2 + $0xac] sm:$0xf] %vm3398, %v2466
  %v3458 = vld [vmem:[#allocation2 + $0xb0] sm:$0x1]
  %v3459 = vsel %vm1628, %v2467, %v3458
  %3460 = vst [vmem:[#allocation2 + $0xb0] sm:$0x1] %v3459
  %v3461 = vld [vmem:[#allocation2 + $0xb4] sm:$0xf]
  %v3462 = vsel %vm3394, %v2474, %v3461
  %3463 = vst [vmem:[#allocation2 + $0xb4] sm:$0xf] %v3462
  %3464 = vst.msk [vmem:[#allocation2 + $0xb8] sm:$0xf] %vm3398, %v2483
  %3465 = vst.msk [vmem:[#allocation2 + $0xbc] sm:$0xf] %vm3398, %v2492
  %3466 = vst.msk [vmem:[#allocation2 + $0xc0] sm:$0xf] %vm3398, %v2501
  %3467 = vst.msk [vmem:[#allocation2 + $0xc4] sm:$0xf] %vm3398, %v2510
  %3468 = vst.msk [vmem:[#allocation2 + $0xc8] sm:$0xf] %vm3398, %v2519
  %3469 = vst.msk [vmem:[#allocation2 + $0xcc] sm:$0xf] %vm3398, %v2528
  %3470 = vst.msk [vmem:[#allocation2 + $0xd0] sm:$0xf] %vm3398, %v2537
  %v3471 = vld [vmem:[#allocation2 + $0xd4] sm:$0x1]
  %v3472 = vsel %vm1628, %v2538, %v3471
  %3473 = vst [vmem:[#allocation2 + $0xd4] sm:$0x1] %v3472
  %v3474 = vld [vmem:[#allocation2 + $0xd8] sm:$0xf]
  %v3475 = vsel %vm3394, %v2545, %v3474
  %3476 = vst [vmem:[#allocation2 + $0xd8] sm:$0xf] %v3475
  %3477 = vst.msk [vmem:[#allocation2 + $0xdc] sm:$0xf] %vm3398, %v2554
  %3478 = vst.msk [vmem:[#allocation2 + $0xe0] sm:$0xf] %vm3398, %v2563
  %3479 = vst.msk [vmem:[#allocation2 + $0xe4] sm:$0xf] %vm3398, %v2572
  %3480 = vst.msk [vmem:[#allocation2 + $0xe8] sm:$0xf] %vm3398, %v2581
  %3481 = vst.msk [vmem:[#allocation2 + $0xec] sm:$0xf] %vm3398, %v2590
  %3482 = vst.msk [vmem:[#allocation2 + $0xf0] sm:$0xf] %vm3398, %v2599
  %3483 = vst.msk [vmem:[#allocation2 + $0xf4] sm:$0xf] %vm3398, %v2608
  %v3484 = vld [vmem:[#allocation2 + $0xf8] sm:$0x1]
  %v3485 = vsel %vm1628, %v2609, %v3484
  %3486 = vst [vmem:[#allocation2 + $0xf8] sm:$0x1] %v3485
  %v3487 = vld [vmem:[#allocation2 + $0xfc] sm:$0xf]
  %v3488 = vsel %vm3394, %v2616, %v3487
  %3489 = vst [vmem:[#allocation2 + $0xfc] sm:$0xf] %v3488
  %3490 = vst.msk [vmem:[#allocation2 + $0x100] sm:$0xf] %vm3398, %v2625
  %3491 = vst.msk [vmem:[#allocation2 + $0x104] sm:$0xf] %vm3398, %v2634
  %3492 = vst.msk [vmem:[#allocation2 + $0x108] sm:$0xf] %vm3398, %v2643
  %3493 = vst.msk [vmem:[#allocation2 + $0x10c] sm:$0xf] %vm3398, %v2652
  %3494 = vst.msk [vmem:[#allocation2 + $0x110] sm:$0xf] %vm3398, %v2661
  %3495 = vst.msk [vmem:[#allocation2 + $0x114] sm:$0xf] %vm3398, %v2670
  %3496 = vst.msk [vmem:[#allocation2 + $0x118] sm:$0xf] %vm3398, %v2679
  %v3497 = vld [vmem:[#allocation2 + $0x11c] sm:$0x1]
  %v3498 = vsel %vm1628, %v2680, %v3497
  %3499 = vst [vmem:[#allocation2 + $0x11c] sm:$0x1] %v3498
  %v3500 = vld [vmem:[#allocation2 + $0x120] sm:$0xf]
  %v3501 = vsel %vm3394, %v2687, %v3500
  %3502 = vst [vmem:[#allocation2 + $0x120] sm:$0xf] %v3501
  %3503 = vst.msk [vmem:[#allocation2 + $0x124] sm:$0xf] %vm3398, %v2696
  %3504 = vst.msk [vmem:[#allocation2 + $0x128] sm:$0xf] %vm3398, %v2705
  %3505 = vst.msk [vmem:[#allocation2 + $0x12c] sm:$0xf] %vm3398, %v2714
  %3506 = vst.msk [vmem:[#allocation2 + $0x130] sm:$0xf] %vm3398, %v2723
  %3507 = vst.msk [vmem:[#allocation2 + $0x134] sm:$0xf] %vm3398, %v2732
  %3508 = vst.msk [vmem:[#allocation2 + $0x138] sm:$0xf] %vm3398, %v2741
  %3509 = vst.msk [vmem:[#allocation2 + $0x13c] sm:$0xf] %vm3398, %v2750
  %v3510 = vld [vmem:[#allocation2 + $0x140] sm:$0x1]
  %v3511 = vsel %vm1628, %v2751, %v3510
  %3512 = vst [vmem:[#allocation2 + $0x140] sm:$0x1] %v3511
  %v3513 = vld [vmem:[#allocation2 + $0x144] sm:$0xf]
  %v3514 = vsel %vm3394, %v2758, %v3513
  %3515 = vst [vmem:[#allocation2 + $0x144] sm:$0xf] %v3514
  %3516 = vst.msk [vmem:[#allocation2 + $0x148] sm:$0xf] %vm3398, %v2767
  %3517 = vst.msk [vmem:[#allocation2 + $0x14c] sm:$0xf] %vm3398, %v2776
  %3518 = vst.msk [vmem:[#allocation2 + $0x150] sm:$0xf] %vm3398, %v2785
  %3519 = vst.msk [vmem:[#allocation2 + $0x154] sm:$0xf] %vm3398, %v2794
  %3520 = vst.msk [vmem:[#allocation2 + $0x158] sm:$0xf] %vm3398, %v2803
  %3521 = vst.msk [vmem:[#allocation2 + $0x15c] sm:$0xf] %vm3398, %v2812
  %3522 = vst.msk [vmem:[#allocation2 + $0x160] sm:$0xf] %vm3398, %v2821
  %v3523 = vld [vmem:[#allocation2 + $0x164] sm:$0x1]
  %v3524 = vsel %vm1628, %v2822, %v3523
  %3525 = vst [vmem:[#allocation2 + $0x164] sm:$0x1] %v3524
  %v3526 = vld [vmem:[#allocation2 + $0x168] sm:$0xf]
  %v3527 = vsel %vm3394, %v2829, %v3526
  %3528 = vst [vmem:[#allocation2 + $0x168] sm:$0xf] %v3527
  %3529 = vst.msk [vmem:[#allocation2 + $0x16c] sm:$0xf] %vm3398, %v2838
  %3530 = vst.msk [vmem:[#allocation2 + $0x170] sm:$0xf] %vm3398, %v2847
  %3531 = vst.msk [vmem:[#allocation2 + $0x174] sm:$0xf] %vm3398, %v2856
  %3532 = vst.msk [vmem:[#allocation2 + $0x178] sm:$0xf] %vm3398, %v2865
  %3533 = vst.msk [vmem:[#allocation2 + $0x17c] sm:$0xf] %vm3398, %v2874
  %3534 = vst.msk [vmem:[#allocation2 + $0x180] sm:$0xf] %vm3398, %v2883
  %3535 = vst.msk [vmem:[#allocation2 + $0x184] sm:$0xf] %vm3398, %v2892
  %v3536 = vld [vmem:[#allocation2 + $0x188] sm:$0x1]
  %v3537 = vsel %vm1628, %v2893, %v3536
  %3538 = vst [vmem:[#allocation2 + $0x188] sm:$0x1] %v3537
  %v3539 = vld [vmem:[#allocation2 + $0x18c] sm:$0xf]
  %v3540 = vsel %vm3394, %v2900, %v3539
  %3541 = vst [vmem:[#allocation2 + $0x18c] sm:$0xf] %v3540
  %3542 = vst.msk [vmem:[#allocation2 + $0x190] sm:$0xf] %vm3398, %v2909
  %3543 = vst.msk [vmem:[#allocation2 + $0x194] sm:$0xf] %vm3398, %v2918
  %3544 = vst.msk [vmem:[#allocation2 + $0x198] sm:$0xf] %vm3398, %v2927
  %3545 = vst.msk [vmem:[#allocation2 + $0x19c] sm:$0xf] %vm3398, %v2936
  %3546 = vst.msk [vmem:[#allocation2 + $0x1a0] sm:$0xf] %vm3398, %v2945
  %3547 = vst.msk [vmem:[#allocation2 + $0x1a4] sm:$0xf] %vm3398, %v2954
  %3548 = vst.msk [vmem:[#allocation2 + $0x1a8] sm:$0xf] %vm3398, %v2963
  %v3549 = vld [vmem:[#allocation2 + $0x1ac] sm:$0x1]
  %v3550 = vsel %vm1628, %v2964, %v3549
  %3551 = vst [vmem:[#allocation2 + $0x1ac] sm:$0x1] %v3550
  %v3552 = vld [vmem:[#allocation2 + $0x1b0] sm:$0xf]
  %v3553 = vsel %vm3394, %v2971, %v3552
  %3554 = vst [vmem:[#allocation2 + $0x1b0] sm:$0xf] %v3553
  %3555 = vst.msk [vmem:[#allocation2 + $0x1b4] sm:$0xf] %vm3398, %v2980
  %3556 = vst.msk [vmem:[#allocation2 + $0x1b8] sm:$0xf] %vm3398, %v2989
  %3557 = vst.msk [vmem:[#allocation2 + $0x1bc] sm:$0xf] %vm3398, %v2998
  %3558 = vst.msk [vmem:[#allocation2 + $0x1c0] sm:$0xf] %vm3398, %v3007
  %3559 = vst.msk [vmem:[#allocation2 + $0x1c4] sm:$0xf] %vm3398, %v3016
  %3560 = vst.msk [vmem:[#allocation2 + $0x1c8] sm:$0xf] %vm3398, %v3025
  %3561 = vst.msk [vmem:[#allocation2 + $0x1cc] sm:$0xf] %vm3398, %v3034
  %v3562 = vld [vmem:[#allocation2 + $0x1d0] sm:$0x1]
  %v3563 = vsel %vm1628, %v3035, %v3562
  %3564 = vst [vmem:[#allocation2 + $0x1d0] sm:$0x1] %v3563
  %v3565 = vld [vmem:[#allocation2 + $0x1d4] sm:$0xf]
  %v3566 = vsel %vm3394, %v3042, %v3565
  %3567 = vst [vmem:[#allocation2 + $0x1d4] sm:$0xf] %v3566
  %3568 = vst.msk [vmem:[#allocation2 + $0x1d8] sm:$0xf] %vm3398, %v3051
  %3569 = vst.msk [vmem:[#allocation2 + $0x1dc] sm:$0xf] %vm3398, %v3060
  %3570 = vst.msk [vmem:[#allocation2 + $0x1e0] sm:$0xf] %vm3398, %v3069
  %3571 = vst.msk [vmem:[#allocation2 + $0x1e4] sm:$0xf] %vm3398, %v3078
  %3572 = vst.msk [vmem:[#allocation2 + $0x1e8] sm:$0xf] %vm3398, %v3087
  %3573 = vst.msk [vmem:[#allocation2 + $0x1ec] sm:$0xf] %vm3398, %v3096
  %3574 = vst.msk [vmem:[#allocation2 + $0x1f0] sm:$0xf] %vm3398, %v3105
  %v3575 = vld [vmem:[#allocation2 + $0x1f4] sm:$0x1]
  %v3576 = vsel %vm1628, %v3106, %v3575
  %3577 = vst [vmem:[#allocation2 + $0x1f4] sm:$0x1] %v3576
  %v3578 = vld [vmem:[#allocation2 + $0x1f8] sm:$0xf]
  %v3579 = vsel %vm3394, %v3113, %v3578
  %3580 = vst [vmem:[#allocation2 + $0x1f8] sm:$0xf] %v3579
  %3581 = vst.msk [vmem:[#allocation2 + $0x1fc] sm:$0xf] %vm3398, %v3122
  %3582 = vst.msk [vmem:[#allocation2 + $0x200] sm:$0xf] %vm3398, %v3131
  %3583 = vst.msk [vmem:[#allocation2 + $0x204] sm:$0xf] %vm3398, %v3140
  %3584 = vst.msk [vmem:[#allocation2 + $0x208] sm:$0xf] %vm3398, %v3149
  %3585 = vst.msk [vmem:[#allocation2 + $0x20c] sm:$0xf] %vm3398, %v3158
  %3586 = vst.msk [vmem:[#allocation2 + $0x210] sm:$0xf] %vm3398, %v3167
  %3587 = vst.msk [vmem:[#allocation2 + $0x214] sm:$0xf] %vm3398, %v3176
  %v3588 = vld [vmem:[#allocation2 + $0x218] sm:$0x1]
  %v3589 = vsel %vm1628, %v3177, %v3588
  %3590 = vst [vmem:[#allocation2 + $0x218] sm:$0x1] %v3589
  %v3591 = vld [vmem:[#allocation2 + $0x21c] sm:$0xf]
  %v3592 = vsel %vm3394, %v3184, %v3591
  %3593 = vst [vmem:[#allocation2 + $0x21c] sm:$0xf] %v3592
  %3594 = vst.msk [vmem:[#allocation2 + $0x220] sm:$0xf] %vm3398, %v3193
  %3595 = vst.msk [vmem:[#allocation2 + $0x224] sm:$0xf] %vm3398, %v3202
  %3596 = vst.msk [vmem:[#allocation2 + $0x228] sm:$0xf] %vm3398, %v3211
  %3597 = vst.msk [vmem:[#allocation2 + $0x22c] sm:$0xf] %vm3398, %v3220
  %3598 = vst.msk [vmem:[#allocation2 + $0x230] sm:$0xf] %vm3398, %v3229
  %3599 = vst.msk [vmem:[#allocation2 + $0x234] sm:$0xf] %vm3398, %v3238
  %3600 = vst.msk [vmem:[#allocation2 + $0x238] sm:$0xf] %vm3398, %v3247
  %v3601 = vld [vmem:[#allocation2 + $0x23c] sm:$0x1]
  %v3602 = vsel %vm1628, %v3248, %v3601
  %3603 = vst [vmem:[#allocation2 + $0x23c] sm:$0x1] %v3602
  %v3604 = vld [vmem:[#allocation2] sm:$0xf]
  %v3605 = vld [vmem:[#allocation2 + $0x4] sm:$0xf]
  %v3606 = vld [vmem:[#allocation2 + $0x8] sm:$0xf]
  %v3607 = vld [vmem:[#allocation2 + $0xc] sm:$0xf]
  %v3608 = vld [vmem:[#allocation2 + $0x10] sm:$0xf]
  %v3609 = vld [vmem:[#allocation2 + $0x14] sm:$0xf]
  %v3610 = vld [vmem:[#allocation2 + $0x18] sm:$0xf]
  %v3611 = vld [vmem:[#allocation2 + $0x1c] sm:$0xf]
  %v3612 = vld [vmem:[#allocation2 + $0x24] sm:$0xf]
  %v3613 = vld [vmem:[#allocation2 + $0x28] sm:$0xf]
  %v3614 = vld [vmem:[#allocation2 + $0x2c] sm:$0xf]
  %v3615 = vld [vmem:[#allocation2 + $0x30] sm:$0xf]
  %v3616 = vld [vmem:[#allocation2 + $0x34] sm:$0xf]
  %v3617 = vld [vmem:[#allocation2 + $0x38] sm:$0xf]
  %v3618 = vld [vmem:[#allocation2 + $0x3c] sm:$0xf]
  %v3619 = vld [vmem:[#allocation2 + $0x40] sm:$0xf]
  %v3620 = vld [vmem:[#allocation2 + $0x48] sm:$0xf]
  %v3621 = vld [vmem:[#allocation2 + $0x4c] sm:$0xf]
  %v3622 = vld [vmem:[#allocation2 + $0x50] sm:$0xf]
  %v3623 = vld [vmem:[#allocation2 + $0x54] sm:$0xf]
  %v3624 = vld [vmem:[#allocation2 + $0x58] sm:$0xf]
  %v3625 = vld [vmem:[#allocation2 + $0x5c] sm:$0xf]
  %v3626 = vld [vmem:[#allocation2 + $0x60] sm:$0xf]
  %v3627 = vld [vmem:[#allocation2 + $0x64] sm:$0xf]
  %v3628 = vld [vmem:[#allocation2 + $0x6c] sm:$0xf]
  %v3629 = vld [vmem:[#allocation2 + $0x70] sm:$0xf]
  %v3630 = vld [vmem:[#allocation2 + $0x74] sm:$0xf]
  %v3631 = vld [vmem:[#allocation2 + $0x78] sm:$0xf]
  %v3632 = vld [vmem:[#allocation2 + $0x7c] sm:$0xf]
  %v3633 = vld [vmem:[#allocation2 + $0x80] sm:$0xf]
  %v3634 = vld [vmem:[#allocation2 + $0x84] sm:$0xf]
  %v3635 = vld [vmem:[#allocation2 + $0x88] sm:$0xf]
  %v3636 = vld [vmem:[#allocation2 + $0x90] sm:$0xf]
  %v3637 = vld [vmem:[#allocation2 + $0x94] sm:$0xf]
  %v3638 = vld [vmem:[#allocation2 + $0x98] sm:$0xf]
  %v3639 = vld [vmem:[#allocation2 + $0x9c] sm:$0xf]
  %v3640 = vld [vmem:[#allocation2 + $0xa0] sm:$0xf]
  %v3641 = vld [vmem:[#allocation2 + $0xa4] sm:$0xf]
  %v3642 = vld [vmem:[#allocation2 + $0xa8] sm:$0xf]
  %v3643 = vld [vmem:[#allocation2 + $0xac] sm:$0xf]
  %v3644 = vld [vmem:[#allocation2 + $0xb4] sm:$0xf]
  %v3645 = vld [vmem:[#allocation2 + $0xb8] sm:$0xf]
  %v3646 = vld [vmem:[#allocation2 + $0xbc] sm:$0xf]
  %v3647 = vld [vmem:[#allocation2 + $0xc0] sm:$0xf]
  %v3648 = vld [vmem:[#allocation2 + $0xc4] sm:$0xf]
  %v3649 = vld [vmem:[#allocation2 + $0xc8] sm:$0xf]
  %v3650 = vld [vmem:[#allocation2 + $0xcc] sm:$0xf]
  %v3651 = vld [vmem:[#allocation2 + $0xd0] sm:$0xf]
  %v3652 = vld [vmem:[#allocation2 + $0xd8] sm:$0xf]
  %v3653 = vld [vmem:[#allocation2 + $0xdc] sm:$0xf]
  %v3654 = vld [vmem:[#allocation2 + $0xe0] sm:$0xf]
  %v3655 = vld [vmem:[#allocation2 + $0xe4] sm:$0xf]
  %v3656 = vld [vmem:[#allocation2 + $0xe8] sm:$0xf]
  %v3657 = vld [vmem:[#allocation2 + $0xec] sm:$0xf]
  %v3658 = vld [vmem:[#allocation2 + $0xf0] sm:$0xf]
  %v3659 = vld [vmem:[#allocation2 + $0xf4] sm:$0xf]
  %v3660 = vld [vmem:[#allocation2 + $0xfc] sm:$0xf]
  %v3661 = vld [vmem:[#allocation2 + $0x100] sm:$0xf]
  %v3662 = vld [vmem:[#allocation2 + $0x104] sm:$0xf]
  %v3663 = vld [vmem:[#allocation2 + $0x108] sm:$0xf]
  %v3664 = vld [vmem:[#allocation2 + $0x10c] sm:$0xf]
  %v3665 = vld [vmem:[#allocation2 + $0x110] sm:$0xf]
  %v3666 = vld [vmem:[#allocation2 + $0x114] sm:$0xf]
  %v3667 = vld [vmem:[#allocation2 + $0x118] sm:$0xf]
  %v3668 = vld [vmem:[#allocation2 + $0x120] sm:$0xf]
  %v3669 = vld [vmem:[#allocation2 + $0x124] sm:$0xf]
  %v3670 = vld [vmem:[#allocation2 + $0x128] sm:$0xf]
  %v3671 = vld [vmem:[#allocation2 + $0x12c] sm:$0xf]
  %v3672 = vld [vmem:[#allocation2 + $0x130] sm:$0xf]
  %v3673 = vld [vmem:[#allocation2 + $0x134] sm:$0xf]
  %v3674 = vld [vmem:[#allocation2 + $0x138] sm:$0xf]
  %v3675 = vld [vmem:[#allocation2 + $0x13c] sm:$0xf]
  %v3676 = vld [vmem:[#allocation2 + $0x144] sm:$0xf]
  %v3677 = vld [vmem:[#allocation2 + $0x148] sm:$0xf]
  %v3678 = vld [vmem:[#allocation2 + $0x14c] sm:$0xf]
  %v3679 = vld [vmem:[#allocation2 + $0x150] sm:$0xf]
  %v3680 = vld [vmem:[#allocation2 + $0x154] sm:$0xf]
  %v3681 = vld [vmem:[#allocation2 + $0x158] sm:$0xf]
  %v3682 = vld [vmem:[#allocation2 + $0x15c] sm:$0xf]
  %v3683 = vld [vmem:[#allocation2 + $0x160] sm:$0xf]
  %v3684 = vld [vmem:[#allocation2 + $0x168] sm:$0xf]
  %v3685 = vld [vmem:[#allocation2 + $0x16c] sm:$0xf]
  %v3686 = vld [vmem:[#allocation2 + $0x170] sm:$0xf]
  %v3687 = vld [vmem:[#allocation2 + $0x174] sm:$0xf]
  %v3688 = vld [vmem:[#allocation2 + $0x178] sm:$0xf]
  %v3689 = vld [vmem:[#allocation2 + $0x17c] sm:$0xf]
  %v3690 = vld [vmem:[#allocation2 + $0x180] sm:$0xf]
  %v3691 = vld [vmem:[#allocation2 + $0x184] sm:$0xf]
  %v3692 = vld [vmem:[#allocation2 + $0x18c] sm:$0xf]
  %v3693 = vld [vmem:[#allocation2 + $0x190] sm:$0xf]
  %v3694 = vld [vmem:[#allocation2 + $0x194] sm:$0xf]
  %v3695 = vld [vmem:[#allocation2 + $0x198] sm:$0xf]
  %v3696 = vld [vmem:[#allocation2 + $0x19c] sm:$0xf]
  %v3697 = vld [vmem:[#allocation2 + $0x1a0] sm:$0xf]
  %v3698 = vld [vmem:[#allocation2 + $0x1a4] sm:$0xf]
  %v3699 = vld [vmem:[#allocation2 + $0x1a8] sm:$0xf]
  %v3700 = vld [vmem:[#allocation2 + $0x1b0] sm:$0xf]
  %v3701 = vld [vmem:[#allocation2 + $0x1b4] sm:$0xf]
  %v3702 = vld [vmem:[#allocation2 + $0x1b8] sm:$0xf]
  %v3703 = vld [vmem:[#allocation2 + $0x1bc] sm:$0xf]
  %v3704 = vld [vmem:[#allocation2 + $0x1c0] sm:$0xf]
  %v3705 = vld [vmem:[#allocation2 + $0x1c4] sm:$0xf]
  %v3706 = vld [vmem:[#allocation2 + $0x1c8] sm:$0xf]
  %v3707 = vld [vmem:[#allocation2 + $0x1cc] sm:$0xf]
  %v3708 = vld [vmem:[#allocation2 + $0x1d4] sm:$0xf]
  %v3709 = vld [vmem:[#allocation2 + $0x1d8] sm:$0xf]
  %v3710 = vld [vmem:[#allocation2 + $0x1dc] sm:$0xf]
  %v3711 = vld [vmem:[#allocation2 + $0x1e0] sm:$0xf]
  %v3712 = vld [vmem:[#allocation2 + $0x1e4] sm:$0xf]
  %v3713 = vld [vmem:[#allocation2 + $0x1e8] sm:$0xf]
  %v3714 = vld [vmem:[#allocation2 + $0x1ec] sm:$0xf]
  %v3715 = vld [vmem:[#allocation2 + $0x1f0] sm:$0xf]
  %v3716 = vld [vmem:[#allocation2 + $0x1f8] sm:$0xf]
  %v3717 = vld [vmem:[#allocation2 + $0x1fc] sm:$0xf]
  %v3718 = vld [vmem:[#allocation2 + $0x200] sm:$0xf]
  %v3719 = vld [vmem:[#allocation2 + $0x204] sm:$0xf]
  %v3720 = vld [vmem:[#allocation2 + $0x208] sm:$0xf]
  %v3721 = vld [vmem:[#allocation2 + $0x20c] sm:$0xf]
  %v3722 = vld [vmem:[#allocation2 + $0x210] sm:$0xf]
  %v3723 = vld [vmem:[#allocation2 + $0x214] sm:$0xf]
  %v3724 = vld [vmem:[#allocation2 + $0x21c] sm:$0xf]
  %v3725 = vld [vmem:[#allocation2 + $0x220] sm:$0xf]
  %v3726 = vld [vmem:[#allocation2 + $0x224] sm:$0xf]
  %v3727 = vld [vmem:[#allocation2 + $0x228] sm:$0xf]
  %v3728 = vld [vmem:[#allocation2 + $0x22c] sm:$0xf]
  %v3729 = vld [vmem:[#allocation2 + $0x230] sm:$0xf]
  %v3730 = vld [vmem:[#allocation2 + $0x234] sm:$0xf]
  %v3731 = vld [vmem:[#allocation2 + $0x238] sm:$0xf]
  %v3732 = vld [vmem:[#allocation2 + $0x20] sm:$0x1]
  %v3733 = vld [vmem:[#allocation2 + $0x44] sm:$0x1]
  %v3734 = vld [vmem:[#allocation2 + $0x68] sm:$0x1]
  %v3735 = vld [vmem:[#allocation2 + $0x8c] sm:$0x1]
  %v3736 = vld [vmem:[#allocation2 + $0xb0] sm:$0x1]
  %v3737 = vld [vmem:[#allocation2 + $0xd4] sm:$0x1]
  %v3738 = vld [vmem:[#allocation2 + $0xf8] sm:$0x1]
  %v3739 = vld [vmem:[#allocation2 + $0x11c] sm:$0x1]
  %v3740 = vld [vmem:[#allocation2 + $0x140] sm:$0x1]
  %v3741 = vld [vmem:[#allocation2 + $0x164] sm:$0x1]
  %v3742 = vld [vmem:[#allocation2 + $0x188] sm:$0x1]
  %v3743 = vld [vmem:[#allocation2 + $0x1ac] sm:$0x1]
  %v3744 = vld [vmem:[#allocation2 + $0x1d0] sm:$0x1]
  %v3745 = vld [vmem:[#allocation2 + $0x1f4] sm:$0x1]
  %v3746 = vld [vmem:[#allocation2 + $0x218] sm:$0x1]
  %v3747 = vld [vmem:[#allocation2 + $0x23c] sm:$0x1]
  %v3748 = vld [vmem:[#allocation2] sm:$0xe]
  %v3749 = vld [vmem:[#allocation2 + $0x24] sm:$0xe]
  %v3750 = vld [vmem:[#allocation2 + $0x48] sm:$0xe]
  %v3751 = vld [vmem:[#allocation2 + $0x6c] sm:$0xe]
  %v3752 = vld [vmem:[#allocation2 + $0x90] sm:$0xe]
  %v3753 = vld [vmem:[#allocation2 + $0xb4] sm:$0xe]
  %v3754 = vld [vmem:[#allocation2 + $0xd8] sm:$0xe]
  %v3755 = vld [vmem:[#allocation2 + $0xfc] sm:$0xe]
  %v3756 = vld [vmem:[#allocation2 + $0x120] sm:$0xe]
  %v3757 = vld [vmem:[#allocation2 + $0x144] sm:$0xe]
  %v3758 = vld [vmem:[#allocation2 + $0x168] sm:$0xe]
  %v3759 = vld [vmem:[#allocation2 + $0x18c] sm:$0xe]
  %v3760 = vld [vmem:[#allocation2 + $0x1b0] sm:$0xe]
  %v3761 = vld [vmem:[#allocation2 + $0x1d4] sm:$0xe]
  %v3762 = vld [vmem:[#allocation2 + $0x1f8] sm:$0xe]
  %v3763 = vld [vmem:[#allocation2 + $0x21c] sm:$0xe]
  %v3892 = vunpack.c.l.b16 %v3604
  %v3893 = vunpack.c.l.b16 %v3605
  %v3894 = vunpack.c.l.b16 %v3606
  %v3895 = vunpack.c.l.b16 %v3607
  %v3896 = vunpack.c.l.b16 %v3608
  %v3897 = vunpack.c.l.b16 %v3609
  %v3898 = vunpack.c.l.b16 %v3610
  %v3899 = vunpack.c.l.b16 %v3611
  %v3900 = vunpack.c.l.b16 %v3612
  %v3901 = vunpack.c.l.b16 %v3613
  %v3902 = vunpack.c.l.b16 %v3614
  %v3903 = vunpack.c.l.b16 %v3615
  %v3904 = vunpack.c.l.b16 %v3616
  %v3905 = vunpack.c.l.b16 %v3617
  %v3906 = vunpack.c.l.b16 %v3618
  %v3907 = vunpack.c.l.b16 %v3619
  %v3908 = vunpack.c.l.b16 %v3620
  %v3909 = vunpack.c.l.b16 %v3621
  %v3910 = vunpack.c.l.b16 %v3622
  %v3911 = vunpack.c.l.b16 %v3623
  %v3912 = vunpack.c.l.b16 %v3624
  %v3913 = vunpack.c.l.b16 %v3625
  %v3914 = vunpack.c.l.b16 %v3626
  %v3915 = vunpack.c.l.b16 %v3627
  %v3916 = vunpack.c.l.b16 %v3628
  %v3917 = vunpack.c.l.b16 %v3629
  %v3918 = vunpack.c.l.b16 %v3630
  %v3919 = vunpack.c.l.b16 %v3631
  %v3920 = vunpack.c.l.b16 %v3632
  %v3921 = vunpack.c.l.b16 %v3633
  %v3922 = vunpack.c.l.b16 %v3634
  %v3923 = vunpack.c.l.b16 %v3635
  %v3924 = vunpack.c.l.b16 %v3636
  %v3925 = vunpack.c.l.b16 %v3637
  %v3926 = vunpack.c.l.b16 %v3638
  %v3927 = vunpack.c.l.b16 %v3639
  %v3928 = vunpack.c.l.b16 %v3640
  %v3929 = vunpack.c.l.b16 %v3641
  %v3930 = vunpack.c.l.b16 %v3642
  %v3931 = vunpack.c.l.b16 %v3643
  %v3932 = vunpack.c.l.b16 %v3644
  %v3933 = vunpack.c.l.b16 %v3645
  %v3934 = vunpack.c.l.b16 %v3646
  %v3935 = vunpack.c.l.b16 %v3647
  %v3936 = vunpack.c.l.b16 %v3648
  %v3937 = vunpack.c.l.b16 %v3649
  %v3938 = vunpack.c.l.b16 %v3650
  %v3939 = vunpack.c.l.b16 %v3651
  %v3940 = vunpack.c.l.b16 %v3652
  %v3941 = vunpack.c.l.b16 %v3653
  %v3942 = vunpack.c.l.b16 %v3654
  %v3943 = vunpack.c.l.b16 %v3655
  %v3944 = vunpack.c.l.b16 %v3656
  %v3945 = vunpack.c.l.b16 %v3657
  %v3946 = vunpack.c.l.b16 %v3658
  %v3947 = vunpack.c.l.b16 %v3659
  %v3948 = vunpack.c.l.b16 %v3660
  %v3949 = vunpack.c.l.b16 %v3661
  %v3950 = vunpack.c.l.b16 %v3662
  %v3951 = vunpack.c.l.b16 %v3663
  %v3952 = vunpack.c.l.b16 %v3664
  %v3953 = vunpack.c.l.b16 %v3665
  %v3954 = vunpack.c.l.b16 %v3666
  %v3955 = vunpack.c.l.b16 %v3667
  %v3956 = vunpack.c.l.b16 %v3668
  %v3957 = vunpack.c.l.b16 %v3669
  %v3958 = vunpack.c.l.b16 %v3670
  %v3959 = vunpack.c.l.b16 %v3671
  %v3960 = vunpack.c.l.b16 %v3672
  %v3961 = vunpack.c.l.b16 %v3673
  %v3962 = vunpack.c.l.b16 %v3674
  %v3963 = vunpack.c.l.b16 %v3675
  %v3964 = vunpack.c.l.b16 %v3676
  %v3965 = vunpack.c.l.b16 %v3677
  %v3966 = vunpack.c.l.b16 %v3678
  %v3967 = vunpack.c.l.b16 %v3679
  %v3968 = vunpack.c.l.b16 %v3680
  %v3969 = vunpack.c.l.b16 %v3681
  %v3970 = vunpack.c.l.b16 %v3682
  %v3971 = vunpack.c.l.b16 %v3683
  %v3972 = vunpack.c.l.b16 %v3684
  %v3973 = vunpack.c.l.b16 %v3685
  %v3974 = vunpack.c.l.b16 %v3686
  %v3975 = vunpack.c.l.b16 %v3687
  %v3976 = vunpack.c.l.b16 %v3688
  %v3977 = vunpack.c.l.b16 %v3689
  %v3978 = vunpack.c.l.b16 %v3690
  %v3979 = vunpack.c.l.b16 %v3691
  %v3980 = vunpack.c.l.b16 %v3692
  %v3981 = vunpack.c.l.b16 %v3693
  %v3982 = vunpack.c.l.b16 %v3694
  %v3983 = vunpack.c.l.b16 %v3695
  %v3984 = vunpack.c.l.b16 %v3696
  %v3985 = vunpack.c.l.b16 %v3697
  %v3986 = vunpack.c.l.b16 %v3698
  %v3987 = vunpack.c.l.b16 %v3699
  %v3988 = vunpack.c.l.b16 %v3700
  %v3989 = vunpack.c.l.b16 %v3701
  %v3990 = vunpack.c.l.b16 %v3702
  %v3991 = vunpack.c.l.b16 %v3703
  %v3992 = vunpack.c.l.b16 %v3704
  %v3993 = vunpack.c.l.b16 %v3705
  %v3994 = vunpack.c.l.b16 %v3706
  %v3995 = vunpack.c.l.b16 %v3707
  %v3996 = vunpack.c.l.b16 %v3708
  %v3997 = vunpack.c.l.b16 %v3709
  %v3998 = vunpack.c.l.b16 %v3710
  %v3999 = vunpack.c.l.b16 %v3711
  %v4000 = vunpack.c.l.b16 %v3712
  %v4001 = vunpack.c.l.b16 %v3713
  %v4002 = vunpack.c.l.b16 %v3714
  %v4003 = vunpack.c.l.b16 %v3715
  %v4004 = vunpack.c.l.b16 %v3716
  %v4005 = vunpack.c.l.b16 %v3717
  %v4006 = vunpack.c.l.b16 %v3718
  %v4007 = vunpack.c.l.b16 %v3719
  %v4008 = vunpack.c.l.b16 %v3720
  %v4009 = vunpack.c.l.b16 %v3721
  %v4010 = vunpack.c.l.b16 %v3722
  %v4011 = vunpack.c.l.b16 %v3723
  %v4012 = vunpack.c.l.b16 %v3724
  %v4013 = vunpack.c.l.b16 %v3725
  %v4014 = vunpack.c.l.b16 %v3726
  %v4015 = vunpack.c.l.b16 %v3727
  %v4016 = vunpack.c.l.b16 %v3728
  %v4017 = vunpack.c.l.b16 %v3729
  %v4018 = vunpack.c.l.b16 %v3730
  %v4019 = vunpack.c.l.b16 %v3731
  %v4020 = vpack.c.b16 %v3893, %v3892
  %v4021 = vpack.c.b16 %v3895, %v3894
  %v4022 = vpack.c.b16 %v3897, %v3896
  %v4023 = vpack.c.b16 %v3899, %v3898
  %v4024 = vpack.c.b16 %v3901, %v3900
  %v4025 = vpack.c.b16 %v3903, %v3902
  %v4026 = vpack.c.b16 %v3905, %v3904
  %v4027 = vpack.c.b16 %v3907, %v3906
  %v4028 = vpack.c.b16 %v3909, %v3908
  %v4029 = vpack.c.b16 %v3911, %v3910
  %v4030 = vpack.c.b16 %v3913, %v3912
  %v4031 = vpack.c.b16 %v3915, %v3914
  %v4032 = vpack.c.b16 %v3917, %v3916
  %v4033 = vpack.c.b16 %v3919, %v3918
  %v4034 = vpack.c.b16 %v3921, %v3920
  %v4035 = vpack.c.b16 %v3923, %v3922
  %v4036 = vpack.c.b16 %v3925, %v3924
  %v4037 = vpack.c.b16 %v3927, %v3926
  %v4038 = vpack.c.b16 %v3929, %v3928
  %v4039 = vpack.c.b16 %v3931, %v3930
  %v4040 = vpack.c.b16 %v3933, %v3932
  %v4041 = vpack.c.b16 %v3935, %v3934
  %v4042 = vpack.c.b16 %v3937, %v3936
  %v4043 = vpack.c.b16 %v3939, %v3938
  %v4044 = vpack.c.b16 %v3941, %v3940
  %v4045 = vpack.c.b16 %v3943, %v3942
  %v4046 = vpack.c.b16 %v3945, %v3944
  %v4047 = vpack.c.b16 %v3947, %v3946
  %v4048 = vpack.c.b16 %v3949, %v3948
  %v4049 = vpack.c.b16 %v3951, %v3950
  %v4050 = vpack.c.b16 %v3953, %v3952
  %v4051 = vpack.c.b16 %v3955, %v3954
  %v4052 = vpack.c.b16 %v3957, %v3956
  %v4053 = vpack.c.b16 %v3959, %v3958
  %v4054 = vpack.c.b16 %v3961, %v3960
  %v4055 = vpack.c.b16 %v3963, %v3962
  %v4056 = vpack.c.b16 %v3965, %v3964
  %v4057 = vpack.c.b16 %v3967, %v3966
  %v4058 = vpack.c.b16 %v3969, %v3968
  %v4059 = vpack.c.b16 %v3971, %v3970
  %v4060 = vpack.c.b16 %v3973, %v3972
  %v4061 = vpack.c.b16 %v3975, %v3974
  %v4062 = vpack.c.b16 %v3977, %v3976
  %v4063 = vpack.c.b16 %v3979, %v3978
  %v4064 = vpack.c.b16 %v3981, %v3980
  %v4065 = vpack.c.b16 %v3983, %v3982
  %v4066 = vpack.c.b16 %v3985, %v3984
  %v4067 = vpack.c.b16 %v3987, %v3986
  %v4068 = vpack.c.b16 %v3989, %v3988
  %v4069 = vpack.c.b16 %v3991, %v3990
  %v4070 = vpack.c.b16 %v3993, %v3992
  %v4071 = vpack.c.b16 %v3995, %v3994
  %v4072 = vpack.c.b16 %v3997, %v3996
  %v4073 = vpack.c.b16 %v3999, %v3998
  %v4074 = vpack.c.b16 %v4001, %v4000
  %v4075 = vpack.c.b16 %v4003, %v4002
  %v4076 = vpack.c.b16 %v4005, %v4004
  %v4077 = vpack.c.b16 %v4007, %v4006
  %v4078 = vpack.c.b16 %v4009, %v4008
  %v4079 = vpack.c.b16 %v4011, %v4010
  %v4080 = vpack.c.b16 %v4013, %v4012
  %v4081 = vpack.c.b16 %v4015, %v4014
  %v4082 = vpack.c.b16 %v4017, %v4016
  %v4083 = vpack.c.b16 %v4019, %v4018
  %v4100 = vunpack.c.l.b16 %v3732
  %v4101 = vunpack.c.l.b16 %v3733
  %v4102 = vunpack.c.l.b16 %v3734
  %v4103 = vunpack.c.l.b16 %v3735
  %v4104 = vunpack.c.l.b16 %v3736
  %v4105 = vunpack.c.l.b16 %v3737
  %v4106 = vunpack.c.l.b16 %v3738
  %v4107 = vunpack.c.l.b16 %v3739
  %v4108 = vunpack.c.l.b16 %v3740
  %v4109 = vunpack.c.l.b16 %v3741
  %v4110 = vunpack.c.l.b16 %v3742
  %v4111 = vunpack.c.l.b16 %v3743
  %v4112 = vunpack.c.l.b16 %v3744
  %v4113 = vunpack.c.l.b16 %v3745
  %v4114 = vunpack.c.l.b16 %v3746
  %v4115 = vunpack.c.l.b16 %v3747
  %v4116 = vpack.c.b16 %v4100, %v4100
  %v4117 = vpack.c.b16 %v4101, %v4101
  %v4118 = vpack.c.b16 %v4102, %v4102
  %v4119 = vpack.c.b16 %v4103, %v4103
  %v4120 = vpack.c.b16 %v4104, %v4104
  %v4121 = vpack.c.b16 %v4105, %v4105
  %v4122 = vpack.c.b16 %v4106, %v4106
  %v4123 = vpack.c.b16 %v4107, %v4107
  %v4124 = vpack.c.b16 %v4108, %v4108
  %v4125 = vpack.c.b16 %v4109, %v4109
  %v4126 = vpack.c.b16 %v4110, %v4110
  %v4127 = vpack.c.b16 %v4111, %v4111
  %v4128 = vpack.c.b16 %v4112, %v4112
  %v4129 = vpack.c.b16 %v4113, %v4113
  %v4130 = vpack.c.b16 %v4114, %v4114
  %v4131 = vpack.c.b16 %v4115, %v4115
  %vm4132 = vsmask.f32 7424
  %v4134 = vshrl.u32 %v4020, 16
  %v4136 = vshll.u32 %v4020, 16
  %v4138 = vrot.slane %v4136, 1
  %v4139 = vor.u32 %v4134, %v4138
  %v4141 = vshll.u32 %v4021, 16
  %v4143 = vrot.slane %v4141, 1
  %v4144 = vsel %vm4132, %v4139, %v4143
  %v4145 = vshrl.u32 %v4021, 16
  %v4147 = vor.u32 %v4145, %v4143
  %v4149 = vshll.u32 %v4022, 16
  %v4151 = vrot.slane %v4149, 1
  %v4152 = vsel %vm4132, %v4147, %v4151
  %v4153 = vshrl.u32 %v4022, 16
  %v4155 = vor.u32 %v4153, %v4151
  %v4157 = vshll.u32 %v4023, 16
  %v4159 = vrot.slane %v4157, 1
  %v4160 = vsel %vm4132, %v4155, %v4159
  %v4161 = vshrl.u32 %v4023, 16
  %v4163 = vor.u32 %v4161, %v4159
  %v4165 = vshll.u32 %v4116, 16
  %v4167 = vrot.slane %v4165, 1
  %v4168 = vsel %vm4132, %v4163, %v4167
  %v4170 = vshrl.u32 %v4024, 16
  %v4172 = vshll.u32 %v4024, 16
  %v4174 = vrot.slane %v4172, 1
  %v4175 = vor.u32 %v4170, %v4174
  %v4177 = vshll.u32 %v4025, 16
  %v4179 = vrot.slane %v4177, 1
  %v4180 = vsel %vm4132, %v4175, %v4179
  %v4181 = vshrl.u32 %v4025, 16
  %v4183 = vor.u32 %v4181, %v4179
  %v4185 = vshll.u32 %v4026, 16
  %v4187 = vrot.slane %v4185, 1
  %v4188 = vsel %vm4132, %v4183, %v4187
  %v4189 = vshrl.u32 %v4026, 16
  %v4191 = vor.u32 %v4189, %v4187
  %v4193 = vshll.u32 %v4027, 16
  %v4195 = vrot.slane %v4193, 1
  %v4196 = vsel %vm4132, %v4191, %v4195
  %v4197 = vshrl.u32 %v4027, 16
  %v4199 = vor.u32 %v4197, %v4195
  %v4201 = vshll.u32 %v4117, 16
  %v4203 = vrot.slane %v4201, 1
  %v4204 = vsel %vm4132, %v4199, %v4203
  %v4206 = vshrl.u32 %v4028, 16
  %v4208 = vshll.u32 %v4028, 16
  %v4210 = vrot.slane %v4208, 1
  %v4211 = vor.u32 %v4206, %v4210
  %v4213 = vshll.u32 %v4029, 16
  %v4215 = vrot.slane %v4213, 1
  %v4216 = vsel %vm4132, %v4211, %v4215
  %v4217 = vshrl.u32 %v4029, 16
  %v4219 = vor.u32 %v4217, %v4215
  %v4221 = vshll.u32 %v4030, 16
  %v4223 = vrot.slane %v4221, 1
  %v4224 = vsel %vm4132, %v4219, %v4223
  %v4225 = vshrl.u32 %v4030, 16
  %v4227 = vor.u32 %v4225, %v4223
  %v4229 = vshll.u32 %v4031, 16
  %v4231 = vrot.slane %v4229, 1
  %v4232 = vsel %vm4132, %v4227, %v4231
  %v4233 = vshrl.u32 %v4031, 16
  %v4235 = vor.u32 %v4233, %v4231
  %v4237 = vshll.u32 %v4118, 16
  %v4239 = vrot.slane %v4237, 1
  %v4240 = vsel %vm4132, %v4235, %v4239
  %v4242 = vshrl.u32 %v4032, 16
  %v4244 = vshll.u32 %v4032, 16
  %v4246 = vrot.slane %v4244, 1
  %v4247 = vor.u32 %v4242, %v4246
  %v4249 = vshll.u32 %v4033, 16
  %v4251 = vrot.slane %v4249, 1
  %v4252 = vsel %vm4132, %v4247, %v4251
  %v4253 = vshrl.u32 %v4033, 16
  %v4255 = vor.u32 %v4253, %v4251
  %v4257 = vshll.u32 %v4034, 16
  %v4259 = vrot.slane %v4257, 1
  %v4260 = vsel %vm4132, %v4255, %v4259
  %v4261 = vshrl.u32 %v4034, 16
  %v4263 = vor.u32 %v4261, %v4259
  %v4265 = vshll.u32 %v4035, 16
  %v4267 = vrot.slane %v4265, 1
  %v4268 = vsel %vm4132, %v4263, %v4267
  %v4269 = vshrl.u32 %v4035, 16
  %v4271 = vor.u32 %v4269, %v4267
  %v4273 = vshll.u32 %v4119, 16
  %v4275 = vrot.slane %v4273, 1
  %v4276 = vsel %vm4132, %v4271, %v4275
  %v4278 = vshrl.u32 %v4036, 16
  %v4280 = vshll.u32 %v4036, 16
  %v4282 = vrot.slane %v4280, 1
  %v4283 = vor.u32 %v4278, %v4282
  %v4285 = vshll.u32 %v4037, 16
  %v4287 = vrot.slane %v4285, 1
  %v4288 = vsel %vm4132, %v4283, %v4287
  %v4289 = vshrl.u32 %v4037, 16
  %v4291 = vor.u32 %v4289, %v4287
  %v4293 = vshll.u32 %v4038, 16
  %v4295 = vrot.slane %v4293, 1
  %v4296 = vsel %vm4132, %v4291, %v4295
  %v4297 = vshrl.u32 %v4038, 16
  %v4299 = vor.u32 %v4297, %v4295
  %v4301 = vshll.u32 %v4039, 16
  %v4303 = vrot.slane %v4301, 1
  %v4304 = vsel %vm4132, %v4299, %v4303
  %v4305 = vshrl.u32 %v4039, 16
  %v4307 = vor.u32 %v4305, %v4303
  %v4309 = vshll.u32 %v4120, 16
  %v4311 = vrot.slane %v4309, 1
  %v4312 = vsel %vm4132, %v4307, %v4311
  %v4314 = vshrl.u32 %v4040, 16
  %v4316 = vshll.u32 %v4040, 16
  %v4318 = vrot.slane %v4316, 1
  %v4319 = vor.u32 %v4314, %v4318
  %v4321 = vshll.u32 %v4041, 16
  %v4323 = vrot.slane %v4321, 1
  %v4324 = vsel %vm4132, %v4319, %v4323
  %v4325 = vshrl.u32 %v4041, 16
  %v4327 = vor.u32 %v4325, %v4323
  %v4329 = vshll.u32 %v4042, 16
  %v4331 = vrot.slane %v4329, 1
  %v4332 = vsel %vm4132, %v4327, %v4331
  %v4333 = vshrl.u32 %v4042, 16
  %v4335 = vor.u32 %v4333, %v4331
  %v4337 = vshll.u32 %v4043, 16
  %v4339 = vrot.slane %v4337, 1
  %v4340 = vsel %vm4132, %v4335, %v4339
  %v4341 = vshrl.u32 %v4043, 16
  %v4343 = vor.u32 %v4341, %v4339
  %v4345 = vshll.u32 %v4121, 16
  %v4347 = vrot.slane %v4345, 1
  %v4348 = vsel %vm4132, %v4343, %v4347
  %v4350 = vshrl.u32 %v4044, 16
  %v4352 = vshll.u32 %v4044, 16
  %v4354 = vrot.slane %v4352, 1
  %v4355 = vor.u32 %v4350, %v4354
  %v4357 = vshll.u32 %v4045, 16
  %v4359 = vrot.slane %v4357, 1
  %v4360 = vsel %vm4132, %v4355, %v4359
  %v4361 = vshrl.u32 %v4045, 16
  %v4363 = vor.u32 %v4361, %v4359
  %v4365 = vshll.u32 %v4046, 16
  %v4367 = vrot.slane %v4365, 1
  %v4368 = vsel %vm4132, %v4363, %v4367
  %v4369 = vshrl.u32 %v4046, 16
  %v4371 = vor.u32 %v4369, %v4367
  %v4373 = vshll.u32 %v4047, 16
  %v4375 = vrot.slane %v4373, 1
  %v4376 = vsel %vm4132, %v4371, %v4375
  %v4377 = vshrl.u32 %v4047, 16
  %v4379 = vor.u32 %v4377, %v4375
  %v4381 = vshll.u32 %v4122, 16
  %v4383 = vrot.slane %v4381, 1
  %v4384 = vsel %vm4132, %v4379, %v4383
  %v4386 = vshrl.u32 %v4048, 16
  %v4388 = vshll.u32 %v4048, 16
  %v4390 = vrot.slane %v4388, 1
  %v4391 = vor.u32 %v4386, %v4390
  %v4393 = vshll.u32 %v4049, 16
  %v4395 = vrot.slane %v4393, 1
  %v4396 = vsel %vm4132, %v4391, %v4395
  %v4397 = vshrl.u32 %v4049, 16
  %v4399 = vor.u32 %v4397, %v4395
  %v4401 = vshll.u32 %v4050, 16
  %v4403 = vrot.slane %v4401, 1
  %v4404 = vsel %vm4132, %v4399, %v4403
  %v4405 = vshrl.u32 %v4050, 16
  %v4407 = vor.u32 %v4405, %v4403
  %v4409 = vshll.u32 %v4051, 16
  %v4411 = vrot.slane %v4409, 1
  %v4412 = vsel %vm4132, %v4407, %v4411
  %v4413 = vshrl.u32 %v4051, 16
  %v4415 = vor.u32 %v4413, %v4411
  %v4417 = vshll.u32 %v4123, 16
  %v4419 = vrot.slane %v4417, 1
  %v4420 = vsel %vm4132, %v4415, %v4419
  %v4422 = vshrl.u32 %v4052, 16
  %v4424 = vshll.u32 %v4052, 16
  %v4426 = vrot.slane %v4424, 1
  %v4427 = vor.u32 %v4422, %v4426
  %v4429 = vshll.u32 %v4053, 16
  %v4431 = vrot.slane %v4429, 1
  %v4432 = vsel %vm4132, %v4427, %v4431
  %v4433 = vshrl.u32 %v4053, 16
  %v4435 = vor.u32 %v4433, %v4431
  %v4437 = vshll.u32 %v4054, 16
  %v4439 = vrot.slane %v4437, 1
  %v4440 = vsel %vm4132, %v4435, %v4439
  %v4441 = vshrl.u32 %v4054, 16
  %v4443 = vor.u32 %v4441, %v4439
  %v4445 = vshll.u32 %v4055, 16
  %v4447 = vrot.slane %v4445, 1
  %v4448 = vsel %vm4132, %v4443, %v4447
  %v4449 = vshrl.u32 %v4055, 16
  %v4451 = vor.u32 %v4449, %v4447
  %v4453 = vshll.u32 %v4124, 16
  %v4455 = vrot.slane %v4453, 1
  %v4456 = vsel %vm4132, %v4451, %v4455
  %v4458 = vshrl.u32 %v4056, 16
  %v4460 = vshll.u32 %v4056, 16
  %v4462 = vrot.slane %v4460, 1
  %v4463 = vor.u32 %v4458, %v4462
  %v4465 = vshll.u32 %v4057, 16
  %v4467 = vrot.slane %v4465, 1
  %v4468 = vsel %vm4132, %v4463, %v4467
  %v4469 = vshrl.u32 %v4057, 16
  %v4471 = vor.u32 %v4469, %v4467
  %v4473 = vshll.u32 %v4058, 16
  %v4475 = vrot.slane %v4473, 1
  %v4476 = vsel %vm4132, %v4471, %v4475
  %v4477 = vshrl.u32 %v4058, 16
  %v4479 = vor.u32 %v4477, %v4475
  %v4481 = vshll.u32 %v4059, 16
  %v4483 = vrot.slane %v4481, 1
  %v4484 = vsel %vm4132, %v4479, %v4483
  %v4485 = vshrl.u32 %v4059, 16
  %v4487 = vor.u32 %v4485, %v4483
  %v4489 = vshll.u32 %v4125, 16
  %v4491 = vrot.slane %v4489, 1
  %v4492 = vsel %vm4132, %v4487, %v4491
  %v4494 = vshrl.u32 %v4060, 16
  %v4496 = vshll.u32 %v4060, 16
  %v4498 = vrot.slane %v4496, 1
  %v4499 = vor.u32 %v4494, %v4498
  %v4501 = vshll.u32 %v4061, 16
  %v4503 = vrot.slane %v4501, 1
  %v4504 = vsel %vm4132, %v4499, %v4503
  %v4505 = vshrl.u32 %v4061, 16
  %v4507 = vor.u32 %v4505, %v4503
  %v4509 = vshll.u32 %v4062, 16
  %v4511 = vrot.slane %v4509, 1
  %v4512 = vsel %vm4132, %v4507, %v4511
  %v4513 = vshrl.u32 %v4062, 16
  %v4515 = vor.u32 %v4513, %v4511
  %v4517 = vshll.u32 %v4063, 16
  %v4519 = vrot.slane %v4517, 1
  %v4520 = vsel %vm4132, %v4515, %v4519
  %v4521 = vshrl.u32 %v4063, 16
  %v4523 = vor.u32 %v4521, %v4519
  %v4525 = vshll.u32 %v4126, 16
  %v4527 = vrot.slane %v4525, 1
  %v4528 = vsel %vm4132, %v4523, %v4527
  %v4530 = vshrl.u32 %v4064, 16
  %v4532 = vshll.u32 %v4064, 16
  %v4534 = vrot.slane %v4532, 1
  %v4535 = vor.u32 %v4530, %v4534
  %v4537 = vshll.u32 %v4065, 16
  %v4539 = vrot.slane %v4537, 1
  %v4540 = vsel %vm4132, %v4535, %v4539
  %v4541 = vshrl.u32 %v4065, 16
  %v4543 = vor.u32 %v4541, %v4539
  %v4545 = vshll.u32 %v4066, 16
  %v4547 = vrot.slane %v4545, 1
  %v4548 = vsel %vm4132, %v4543, %v4547
  %v4549 = vshrl.u32 %v4066, 16
  %v4551 = vor.u32 %v4549, %v4547
  %v4553 = vshll.u32 %v4067, 16
  %v4555 = vrot.slane %v4553, 1
  %v4556 = vsel %vm4132, %v4551, %v4555
  %v4557 = vshrl.u32 %v4067, 16
  %v4559 = vor.u32 %v4557, %v4555
  %v4561 = vshll.u32 %v4127, 16
  %v4563 = vrot.slane %v4561, 1
  %v4564 = vsel %vm4132, %v4559, %v4563
  %v4566 = vshrl.u32 %v4068, 16
  %v4568 = vshll.u32 %v4068, 16
  %v4570 = vrot.slane %v4568, 1
  %v4571 = vor.u32 %v4566, %v4570
  %v4573 = vshll.u32 %v4069, 16
  %v4575 = vrot.slane %v4573, 1
  %v4576 = vsel %vm4132, %v4571, %v4575
  %v4577 = vshrl.u32 %v4069, 16
  %v4579 = vor.u32 %v4577, %v4575
  %v4581 = vshll.u32 %v4070, 16
  %v4583 = vrot.slane %v4581, 1
  %v4584 = vsel %vm4132, %v4579, %v4583
  %v4585 = vshrl.u32 %v4070, 16
  %v4587 = vor.u32 %v4585, %v4583
  %v4589 = vshll.u32 %v4071, 16
  %v4591 = vrot.slane %v4589, 1
  %v4592 = vsel %vm4132, %v4587, %v4591
  %v4593 = vshrl.u32 %v4071, 16
  %v4595 = vor.u32 %v4593, %v4591
  %v4597 = vshll.u32 %v4128, 16
  %v4599 = vrot.slane %v4597, 1
  %v4600 = vsel %vm4132, %v4595, %v4599
  %v4602 = vshrl.u32 %v4072, 16
  %v4604 = vshll.u32 %v4072, 16
  %v4606 = vrot.slane %v4604, 1
  %v4607 = vor.u32 %v4602, %v4606
  %v4609 = vshll.u32 %v4073, 16
  %v4611 = vrot.slane %v4609, 1
  %v4612 = vsel %vm4132, %v4607, %v4611
  %v4613 = vshrl.u32 %v4073, 16
  %v4615 = vor.u32 %v4613, %v4611
  %v4617 = vshll.u32 %v4074, 16
  %v4619 = vrot.slane %v4617, 1
  %v4620 = vsel %vm4132, %v4615, %v4619
  %v4621 = vshrl.u32 %v4074, 16
  %v4623 = vor.u32 %v4621, %v4619
  %v4625 = vshll.u32 %v4075, 16
  %v4627 = vrot.slane %v4625, 1
  %v4628 = vsel %vm4132, %v4623, %v4627
  %v4629 = vshrl.u32 %v4075, 16
  %v4631 = vor.u32 %v4629, %v4627
  %v4633 = vshll.u32 %v4129, 16
  %v4635 = vrot.slane %v4633, 1
  %v4636 = vsel %vm4132, %v4631, %v4635
  %v4638 = vshrl.u32 %v4076, 16
  %v4640 = vshll.u32 %v4076, 16
  %v4642 = vrot.slane %v4640, 1
  %v4643 = vor.u32 %v4638, %v4642
  %v4645 = vshll.u32 %v4077, 16
  %v4647 = vrot.slane %v4645, 1
  %v4648 = vsel %vm4132, %v4643, %v4647
  %v4649 = vshrl.u32 %v4077, 16
  %v4651 = vor.u32 %v4649, %v4647
  %v4653 = vshll.u32 %v4078, 16
  %v4655 = vrot.slane %v4653, 1
  %v4656 = vsel %vm4132, %v4651, %v4655
  %v4657 = vshrl.u32 %v4078, 16
  %v4659 = vor.u32 %v4657, %v4655
  %v4661 = vshll.u32 %v4079, 16
  %v4663 = vrot.slane %v4661, 1
  %v4664 = vsel %vm4132, %v4659, %v4663
  %v4665 = vshrl.u32 %v4079, 16
  %v4667 = vor.u32 %v4665, %v4663
  %v4669 = vshll.u32 %v4130, 16
  %v4671 = vrot.slane %v4669, 1
  %v4672 = vsel %vm4132, %v4667, %v4671
  %v4674 = vshrl.u32 %v4080, 16
  %v4676 = vshll.u32 %v4080, 16
  %v4678 = vrot.slane %v4676, 1
  %v4679 = vor.u32 %v4674, %v4678
  %v4681 = vshll.u32 %v4081, 16
  %v4683 = vrot.slane %v4681, 1
  %v4684 = vsel %vm4132, %v4679, %v4683
  %v4685 = vshrl.u32 %v4081, 16
  %v4687 = vor.u32 %v4685, %v4683
  %v4689 = vshll.u32 %v4082, 16
  %v4691 = vrot.slane %v4689, 1
  %v4692 = vsel %vm4132, %v4687, %v4691
  %v4693 = vshrl.u32 %v4082, 16
  %v4695 = vor.u32 %v4693, %v4691
  %v4697 = vshll.u32 %v4083, 16
  %v4699 = vrot.slane %v4697, 1
  %v4700 = vsel %vm4132, %v4695, %v4699
  %v4701 = vshrl.u32 %v4083, 16
  %v4703 = vor.u32 %v4701, %v4699
  %v4705 = vshll.u32 %v4131, 16
  %v4707 = vrot.slane %v4705, 1
  %v4708 = vsel %vm4132, %v4703, %v4707
  %4709 = vrot.lane.b32.xlu0 %v4144, 32
  %v4710 = vpop.permute.xlu0 %4709
  %4711 = vrot.lane.b32.xlu0 %v4152, 32
  %v4712 = vpop.permute.xlu0 %4711
  %4713 = vrot.lane.b32.xlu0 %v4160, 32
  %v4714 = vpop.permute.xlu0 %4713
  %4715 = vrot.lane.b32.xlu0 %v4168, 32
  %v4716 = vpop.permute.xlu0 %4715
  %4717 = vrot.lane.b32.xlu0 %v4180, 32
  %v4718 = vpop.permute.xlu0 %4717
  %4719 = vrot.lane.b32.xlu0 %v4188, 32
  %v4720 = vpop.permute.xlu0 %4719
  %4721 = vrot.lane.b32.xlu0 %v4196, 32
  %v4722 = vpop.permute.xlu0 %4721
  %4723 = vrot.lane.b32.xlu0 %v4204, 32
  %v4724 = vpop.permute.xlu0 %4723
  %4725 = vrot.lane.b32.xlu0 %v4216, 32
  %v4726 = vpop.permute.xlu0 %4725
  %4727 = vrot.lane.b32.xlu0 %v4224, 32
  %v4728 = vpop.permute.xlu0 %4727
  %4729 = vrot.lane.b32.xlu0 %v4232, 32
  %v4730 = vpop.permute.xlu0 %4729
  %4731 = vrot.lane.b32.xlu0 %v4240, 32
  %v4732 = vpop.permute.xlu0 %4731
  %4733 = vrot.lane.b32.xlu0 %v4252, 32
  %v4734 = vpop.permute.xlu0 %4733
  %4735 = vrot.lane.b32.xlu0 %v4260, 32
  %v4736 = vpop.permute.xlu0 %4735
  %4737 = vrot.lane.b32.xlu0 %v4268, 32
  %v4738 = vpop.permute.xlu0 %4737
  %4739 = vrot.lane.b32.xlu0 %v4276, 32
  %v4740 = vpop.permute.xlu0 %4739
  %4741 = vrot.lane.b32.xlu0 %v4288, 32
  %v4742 = vpop.permute.xlu0 %4741
  %4743 = vrot.lane.b32.xlu0 %v4296, 32
  %v4744 = vpop.permute.xlu0 %4743
  %4745 = vrot.lane.b32.xlu0 %v4304, 32
  %v4746 = vpop.permute.xlu0 %4745
  %4747 = vrot.lane.b32.xlu0 %v4312, 32
  %v4748 = vpop.permute.xlu0 %4747
  %4749 = vrot.lane.b32.xlu0 %v4324, 32
  %v4750 = vpop.permute.xlu0 %4749
  %4751 = vrot.lane.b32.xlu0 %v4332, 32
  %v4752 = vpop.permute.xlu0 %4751
  %4753 = vrot.lane.b32.xlu0 %v4340, 32
  %v4754 = vpop.permute.xlu0 %4753
  %4755 = vrot.lane.b32.xlu0 %v4348, 32
  %v4756 = vpop.permute.xlu0 %4755
  %4757 = vrot.lane.b32.xlu0 %v4360, 32
  %v4758 = vpop.permute.xlu0 %4757
  %4759 = vrot.lane.b32.xlu0 %v4368, 32
  %v4760 = vpop.permute.xlu0 %4759
  %4761 = vrot.lane.b32.xlu0 %v4376, 32
  %v4762 = vpop.permute.xlu0 %4761
  %4763 = vrot.lane.b32.xlu0 %v4384, 32
  %v4764 = vpop.permute.xlu0 %4763
  %4765 = vrot.lane.b32.xlu0 %v4396, 32
  %v4766 = vpop.permute.xlu0 %4765
  %4767 = vrot.lane.b32.xlu0 %v4404, 32
  %v4768 = vpop.permute.xlu0 %4767
  %4769 = vrot.lane.b32.xlu0 %v4412, 32
  %v4770 = vpop.permute.xlu0 %4769
  %4771 = vrot.lane.b32.xlu0 %v4420, 32
  %v4772 = vpop.permute.xlu0 %4771
  %4773 = vrot.lane.b32.xlu0 %v4432, 32
  %v4774 = vpop.permute.xlu0 %4773
  %4775 = vrot.lane.b32.xlu0 %v4440, 32
  %v4776 = vpop.permute.xlu0 %4775
  %4777 = vrot.lane.b32.xlu0 %v4448, 32
  %v4778 = vpop.permute.xlu0 %4777
  %4779 = vrot.lane.b32.xlu0 %v4456, 32
  %v4780 = vpop.permute.xlu0 %4779
  %4781 = vrot.lane.b32.xlu0 %v4468, 32
  %v4782 = vpop.permute.xlu0 %4781
  %4783 = vrot.lane.b32.xlu0 %v4476, 32
  %v4784 = vpop.permute.xlu0 %4783
  %4785 = vrot.lane.b32.xlu0 %v4484, 32
  %v4786 = vpop.permute.xlu0 %4785
  %4787 = vrot.lane.b32.xlu0 %v4492, 32
  %v4788 = vpop.permute.xlu0 %4787
  %4789 = vrot.lane.b32.xlu0 %v4504, 32
  %v4790 = vpop.permute.xlu0 %4789
  %4791 = vrot.lane.b32.xlu0 %v4512, 32
  %v4792 = vpop.permute.xlu0 %4791
  %4793 = vrot.lane.b32.xlu0 %v4520, 32
  %v4794 = vpop.permute.xlu0 %4793
  %4795 = vrot.lane.b32.xlu0 %v4528, 32
  %v4796 = vpop.permute.xlu0 %4795
  %4797 = vrot.lane.b32.xlu0 %v4540, 32
  %v4798 = vpop.permute.xlu0 %4797
  %4799 = vrot.lane.b32.xlu0 %v4548, 32
  %v4800 = vpop.permute.xlu0 %4799
  %4801 = vrot.lane.b32.xlu0 %v4556, 32
  %v4802 = vpop.permute.xlu0 %4801
  %4803 = vrot.lane.b32.xlu0 %v4564, 32
  %v4804 = vpop.permute.xlu0 %4803
  %4805 = vrot.lane.b32.xlu0 %v4576, 32
  %v4806 = vpop.permute.xlu0 %4805
  %4807 = vrot.lane.b32.xlu0 %v4584, 32
  %v4808 = vpop.permute.xlu0 %4807
  %4809 = vrot.lane.b32.xlu0 %v4592, 32
  %v4810 = vpop.permute.xlu0 %4809
  %4811 = vrot.lane.b32.xlu0 %v4600, 32
  %v4812 = vpop.permute.xlu0 %4811
  %4813 = vrot.lane.b32.xlu0 %v4612, 32
  %v4814 = vpop.permute.xlu0 %4813
  %4815 = vrot.lane.b32.xlu0 %v4620, 32
  %v4816 = vpop.permute.xlu0 %4815
  %4817 = vrot.lane.b32.xlu0 %v4628, 32
  %v4818 = vpop.permute.xlu0 %4817
  %4819 = vrot.lane.b32.xlu0 %v4636, 32
  %v4820 = vpop.permute.xlu0 %4819
  %4821 = vrot.lane.b32.xlu0 %v4648, 32
  %v4822 = vpop.permute.xlu0 %4821
  %4823 = vrot.lane.b32.xlu0 %v4656, 32
  %v4824 = vpop.permute.xlu0 %4823
  %4825 = vrot.lane.b32.xlu0 %v4664, 32
  %v4826 = vpop.permute.xlu0 %4825
  %4827 = vrot.lane.b32.xlu0 %v4672, 32
  %v4828 = vpop.permute.xlu0 %4827
  %4829 = vrot.lane.b32.xlu0 %v4684, 32
  %v4830 = vpop.permute.xlu0 %4829
  %4831 = vrot.lane.b32.xlu0 %v4692, 32
  %v4832 = vpop.permute.xlu0 %4831
  %4833 = vrot.lane.b32.xlu0 %v4700, 32
  %v4834 = vpop.permute.xlu0 %4833
  %4835 = vrot.lane.b32.xlu0 %v4708, 32
  %v4836 = vpop.permute.xlu0 %4835
  %v4853 = vunpack.c.l.b16 %v3748
  %v4854 = vunpack.c.l.b16 %v3749
  %v4855 = vunpack.c.l.b16 %v3750
  %v4856 = vunpack.c.l.b16 %v3751
  %v4857 = vunpack.c.l.b16 %v3752
  %v4858 = vunpack.c.l.b16 %v3753
  %v4859 = vunpack.c.l.b16 %v3754
  %v4860 = vunpack.c.l.b16 %v3755
  %v4861 = vunpack.c.l.b16 %v3756
  %v4862 = vunpack.c.l.b16 %v3757
  %v4863 = vunpack.c.l.b16 %v3758
  %v4864 = vunpack.c.l.b16 %v3759
  %v4865 = vunpack.c.l.b16 %v3760
  %v4866 = vunpack.c.l.b16 %v3761
  %v4867 = vunpack.c.l.b16 %v3762
  %v4868 = vunpack.c.l.b16 %v3763
  %v4869 = vpack.c.b16 %v3893, %v4853
  %v4870 = vpack.c.b16 %v3901, %v4854
  %v4871 = vpack.c.b16 %v3909, %v4855
  %v4872 = vpack.c.b16 %v3917, %v4856
  %v4873 = vpack.c.b16 %v3925, %v4857
  %v4874 = vpack.c.b16 %v3933, %v4858
  %v4875 = vpack.c.b16 %v3941, %v4859
  %v4876 = vpack.c.b16 %v3949, %v4860
  %v4877 = vpack.c.b16 %v3957, %v4861
  %v4878 = vpack.c.b16 %v3965, %v4862
  %v4879 = vpack.c.b16 %v3973, %v4863
  %v4880 = vpack.c.b16 %v3981, %v4864
  %v4881 = vpack.c.b16 %v3989, %v4865
  %v4882 = vpack.c.b16 %v3997, %v4866
  %v4883 = vpack.c.b16 %v4005, %v4867
  %v4884 = vpack.c.b16 %v4013, %v4868
  %vm4885 = vcmask 1046528
  %v4886 = vrot.slane %v4869, 1
  %v4887 = vrot.slane %v4021, 1
  %v4888 = vsel %vm4885, %v4886, %v4887
  %v4889 = vrot.slane %v4022, 1
  %v4890 = vsel %vm4885, %v4887, %v4889
  %v4891 = vrot.slane %v4023, 1
  %v4892 = vsel %vm4885, %v4889, %v4891
  %v4893 = vrot.slane %v4116, 1
  %v4894 = vsel %vm4885, %v4891, %v4893
  %v4895 = vrot.slane %v4870, 1
  %v4896 = vrot.slane %v4025, 1
  %v4897 = vsel %vm4885, %v4895, %v4896
  %v4898 = vrot.slane %v4026, 1
  %v4899 = vsel %vm4885, %v4896, %v4898
  %v4900 = vrot.slane %v4027, 1
  %v4901 = vsel %vm4885, %v4898, %v4900
  %v4902 = vrot.slane %v4117, 1
  %v4903 = vsel %vm4885, %v4900, %v4902
  %v4904 = vrot.slane %v4871, 1
  %v4905 = vrot.slane %v4029, 1
  %v4906 = vsel %vm4885, %v4904, %v4905
  %v4907 = vrot.slane %v4030, 1
  %v4908 = vsel %vm4885, %v4905, %v4907
  %v4909 = vrot.slane %v4031, 1
  %v4910 = vsel %vm4885, %v4907, %v4909
  %v4911 = vrot.slane %v4118, 1
  %v4912 = vsel %vm4885, %v4909, %v4911
  %v4913 = vrot.slane %v4872, 1
  %v4914 = vrot.slane %v4033, 1
  %v4915 = vsel %vm4885, %v4913, %v4914
  %v4916 = vrot.slane %v4034, 1
  %v4917 = vsel %vm4885, %v4914, %v4916
  %v4918 = vrot.slane %v4035, 1
  %v4919 = vsel %vm4885, %v4916, %v4918
  %v4920 = vrot.slane %v4119, 1
  %v4921 = vsel %vm4885, %v4918, %v4920
  %v4922 = vrot.slane %v4873, 1
  %v4923 = vrot.slane %v4037, 1
  %v4924 = vsel %vm4885, %v4922, %v4923
  %v4925 = vrot.slane %v4038, 1
  %v4926 = vsel %vm4885, %v4923, %v4925
  %v4927 = vrot.slane %v4039, 1
  %v4928 = vsel %vm4885, %v4925, %v4927
  %v4929 = vrot.slane %v4120, 1
  %v4930 = vsel %vm4885, %v4927, %v4929
  %v4931 = vrot.slane %v4874, 1
  %v4932 = vrot.slane %v4041, 1
  %v4933 = vsel %vm4885, %v4931, %v4932
  %v4934 = vrot.slane %v4042, 1
  %v4935 = vsel %vm4885, %v4932, %v4934
  %v4936 = vrot.slane %v4043, 1
  %v4937 = vsel %vm4885, %v4934, %v4936
  %v4938 = vrot.slane %v4121, 1
  %v4939 = vsel %vm4885, %v4936, %v4938
  %v4940 = vrot.slane %v4875, 1
  %v4941 = vrot.slane %v4045, 1
  %v4942 = vsel %vm4885, %v4940, %v4941
  %v4943 = vrot.slane %v4046, 1
  %v4944 = vsel %vm4885, %v4941, %v4943
  %v4945 = vrot.slane %v4047, 1
  %v4946 = vsel %vm4885, %v4943, %v4945
  %v4947 = vrot.slane %v4122, 1
  %v4948 = vsel %vm4885, %v4945, %v4947
  %v4949 = vrot.slane %v4876, 1
  %v4950 = vrot.slane %v4049, 1
  %v4951 = vsel %vm4885, %v4949, %v4950
  %v4952 = vrot.slane %v4050, 1
  %v4953 = vsel %vm4885, %v4950, %v4952
  %v4954 = vrot.slane %v4051, 1
  %v4955 = vsel %vm4885, %v4952, %v4954
  %v4956 = vrot.slane %v4123, 1
  %v4957 = vsel %vm4885, %v4954, %v4956
  %v4958 = vrot.slane %v4877, 1
  %v4959 = vrot.slane %v4053, 1
  %v4960 = vsel %vm4885, %v4958, %v4959
  %v4961 = vrot.slane %v4054, 1
  %v4962 = vsel %vm4885, %v4959, %v4961
  %v4963 = vrot.slane %v4055, 1
  %v4964 = vsel %vm4885, %v4961, %v4963
  %v4965 = vrot.slane %v4124, 1
  %v4966 = vsel %vm4885, %v4963, %v4965
  %v4967 = vrot.slane %v4878, 1
  %v4968 = vrot.slane %v4057, 1
  %v4969 = vsel %vm4885, %v4967, %v4968
  %v4970 = vrot.slane %v4058, 1
  %v4971 = vsel %vm4885, %v4968, %v4970
  %v4972 = vrot.slane %v4059, 1
  %v4973 = vsel %vm4885, %v4970, %v4972
  %v4974 = vrot.slane %v4125, 1
  %v4975 = vsel %vm4885, %v4972, %v4974
  %v4976 = vrot.slane %v4879, 1
  %v4977 = vrot.slane %v4061, 1
  %v4978 = vsel %vm4885, %v4976, %v4977
  %v4979 = vrot.slane %v4062, 1
  %v4980 = vsel %vm4885, %v4977, %v4979
  %v4981 = vrot.slane %v4063, 1
  %v4982 = vsel %vm4885, %v4979, %v4981
  %v4983 = vrot.slane %v4126, 1
  %v4984 = vsel %vm4885, %v4981, %v4983
  %v4985 = vrot.slane %v4880, 1
  %v4986 = vrot.slane %v4065, 1
  %v4987 = vsel %vm4885, %v4985, %v4986
  %v4988 = vrot.slane %v4066, 1
  %v4989 = vsel %vm4885, %v4986, %v4988
  %v4990 = vrot.slane %v4067, 1
  %v4991 = vsel %vm4885, %v4988, %v4990
  %v4992 = vrot.slane %v4127, 1
  %v4993 = vsel %vm4885, %v4990, %v4992
  %v4994 = vrot.slane %v4881, 1
  %v4995 = vrot.slane %v4069, 1
  %v4996 = vsel %vm4885, %v4994, %v4995
  %v4997 = vrot.slane %v4070, 1
  %v4998 = vsel %vm4885, %v4995, %v4997
  %v4999 = vrot.slane %v4071, 1
  %v5000 = vsel %vm4885, %v4997, %v4999
  %v5001 = vrot.slane %v4128, 1
  %v5002 = vsel %vm4885, %v4999, %v5001
  %v5003 = vrot.slane %v4882, 1
  %v5004 = vrot.slane %v4073, 1
  %v5005 = vsel %vm4885, %v5003, %v5004
  %v5006 = vrot.slane %v4074, 1
  %v5007 = vsel %vm4885, %v5004, %v5006
  %v5008 = vrot.slane %v4075, 1
  %v5009 = vsel %vm4885, %v5006, %v5008
  %v5010 = vrot.slane %v4129, 1
  %v5011 = vsel %vm4885, %v5008, %v5010
  %v5012 = vrot.slane %v4883, 1
  %v5013 = vrot.slane %v4077, 1
  %v5014 = vsel %vm4885, %v5012, %v5013
  %v5015 = vrot.slane %v4078, 1
  %v5016 = vsel %vm4885, %v5013, %v5015
  %v5017 = vrot.slane %v4079, 1
  %v5018 = vsel %vm4885, %v5015, %v5017
  %v5019 = vrot.slane %v4130, 1
  %v5020 = vsel %vm4885, %v5017, %v5019
  %v5021 = vrot.slane %v4884, 1
  %v5022 = vrot.slane %v4081, 1
  %v5023 = vsel %vm4885, %v5021, %v5022
  %v5024 = vrot.slane %v4082, 1
  %v5025 = vsel %vm4885, %v5022, %v5024
  %v5026 = vrot.slane %v4083, 1
  %v5027 = vsel %vm4885, %v5024, %v5026
  %v5028 = vrot.slane %v4131, 1
  %v5029 = vsel %vm4885, %v5026, %v5028
  %5030 = vrot.lane.b32.xlu0 %v4888, 64
  %v5031 = vpop.permute.xlu0 %5030
  %5032 = vrot.lane.b32.xlu0 %v4890, 64
  %v5033 = vpop.permute.xlu0 %5032
  %5034 = vrot.lane.b32.xlu0 %v4892, 64
  %v5035 = vpop.permute.xlu0 %5034
  %5036 = vrot.lane.b32.xlu0 %v4894, 64
  %v5037 = vpop.permute.xlu0 %5036
  %5038 = vrot.lane.b32.xlu0 %v4897, 64
  %v5039 = vpop.permute.xlu0 %5038
  %5040 = vrot.lane.b32.xlu0 %v4899, 64
  %v5041 = vpop.permute.xlu0 %5040
  %5042 = vrot.lane.b32.xlu0 %v4901, 64
  %v5043 = vpop.permute.xlu0 %5042
  %5044 = vrot.lane.b32.xlu0 %v4903, 64
  %v5045 = vpop.permute.xlu0 %5044
  %5046 = vrot.lane.b32.xlu0 %v4906, 64
  %v5047 = vpop.permute.xlu0 %5046
  %5048 = vrot.lane.b32.xlu0 %v4908, 64
  %v5049 = vpop.permute.xlu0 %5048
  %5050 = vrot.lane.b32.xlu0 %v4910, 64
  %v5051 = vpop.permute.xlu0 %5050
  %5052 = vrot.lane.b32.xlu0 %v4912, 64
  %v5053 = vpop.permute.xlu0 %5052
  %5054 = vrot.lane.b32.xlu0 %v4915, 64
  %v5055 = vpop.permute.xlu0 %5054
  %5056 = vrot.lane.b32.xlu0 %v4917, 64
  %v5057 = vpop.permute.xlu0 %5056
  %5058 = vrot.lane.b32.xlu0 %v4919, 64
  %v5059 = vpop.permute.xlu0 %5058
  %5060 = vrot.lane.b32.xlu0 %v4921, 64
  %v5061 = vpop.permute.xlu0 %5060
  %5062 = vrot.lane.b32.xlu0 %v4924, 64
  %v5063 = vpop.permute.xlu0 %5062
  %5064 = vrot.lane.b32.xlu0 %v4926, 64
  %v5065 = vpop.permute.xlu0 %5064
  %5066 = vrot.lane.b32.xlu0 %v4928, 64
  %v5067 = vpop.permute.xlu0 %5066
  %5068 = vrot.lane.b32.xlu0 %v4930, 64
  %v5069 = vpop.permute.xlu0 %5068
  %5070 = vrot.lane.b32.xlu0 %v4933, 64
  %v5071 = vpop.permute.xlu0 %5070
  %5072 = vrot.lane.b32.xlu0 %v4935, 64
  %v5073 = vpop.permute.xlu0 %5072
  %5074 = vrot.lane.b32.xlu0 %v4937, 64
  %v5075 = vpop.permute.xlu0 %5074
  %5076 = vrot.lane.b32.xlu0 %v4939, 64
  %v5077 = vpop.permute.xlu0 %5076
  %5078 = vrot.lane.b32.xlu0 %v4942, 64
  %v5079 = vpop.permute.xlu0 %5078
  %5080 = vrot.lane.b32.xlu0 %v4944, 64
  %v5081 = vpop.permute.xlu0 %5080
  %5082 = vrot.lane.b32.xlu0 %v4946, 64
  %v5083 = vpop.permute.xlu0 %5082
  %5084 = vrot.lane.b32.xlu0 %v4948, 64
  %v5085 = vpop.permute.xlu0 %5084
  %5086 = vrot.lane.b32.xlu0 %v4951, 64
  %v5087 = vpop.permute.xlu0 %5086
  %5088 = vrot.lane.b32.xlu0 %v4953, 64
  %v5089 = vpop.permute.xlu0 %5088
  %5090 = vrot.lane.b32.xlu0 %v4955, 64
  %v5091 = vpop.permute.xlu0 %5090
  %5092 = vrot.lane.b32.xlu0 %v4957, 64
  %v5093 = vpop.permute.xlu0 %5092
  %5094 = vrot.lane.b32.xlu0 %v4960, 64
  %v5095 = vpop.permute.xlu0 %5094
  %5096 = vrot.lane.b32.xlu0 %v4962, 64
  %v5097 = vpop.permute.xlu0 %5096
  %5098 = vrot.lane.b32.xlu0 %v4964, 64
  %v5099 = vpop.permute.xlu0 %5098
  %5100 = vrot.lane.b32.xlu0 %v4966, 64
  %v5101 = vpop.permute.xlu0 %5100
  %5102 = vrot.lane.b32.xlu0 %v4969, 64
  %v5103 = vpop.permute.xlu0 %5102
  %5104 = vrot.lane.b32.xlu0 %v4971, 64
  %v5105 = vpop.permute.xlu0 %5104
  %5106 = vrot.lane.b32.xlu0 %v4973, 64
  %v5107 = vpop.permute.xlu0 %5106
  %5108 = vrot.lane.b32.xlu0 %v4975, 64
  %v5109 = vpop.permute.xlu0 %5108
  %5110 = vrot.lane.b32.xlu0 %v4978, 64
  %v5111 = vpop.permute.xlu0 %5110
  %5112 = vrot.lane.b32.xlu0 %v4980, 64
  %v5113 = vpop.permute.xlu0 %5112
  %5114 = vrot.lane.b32.xlu0 %v4982, 64
  %v5115 = vpop.permute.xlu0 %5114
  %5116 = vrot.lane.b32.xlu0 %v4984, 64
  %v5117 = vpop.permute.xlu0 %5116
  %5118 = vrot.lane.b32.xlu0 %v4987, 64
  %v5119 = vpop.permute.xlu0 %5118
  %5120 = vrot.lane.b32.xlu0 %v4989, 64
  %v5121 = vpop.permute.xlu0 %5120
  %5122 = vrot.lane.b32.xlu0 %v4991, 64
  %v5123 = vpop.permute.xlu0 %5122
  %5124 = vrot.lane.b32.xlu0 %v4993, 64
  %v5125 = vpop.permute.xlu0 %5124
  %5126 = vrot.lane.b32.xlu0 %v4996, 64
  %v5127 = vpop.permute.xlu0 %5126
  %5128 = vrot.lane.b32.xlu0 %v4998, 64
  %v5129 = vpop.permute.xlu0 %5128
  %5130 = vrot.lane.b32.xlu0 %v5000, 64
  %v5131 = vpop.permute.xlu0 %5130
  %5132 = vrot.lane.b32.xlu0 %v5002, 64
  %v5133 = vpop.permute.xlu0 %5132
  %5134 = vrot.lane.b32.xlu0 %v5005, 64
  %v5135 = vpop.permute.xlu0 %5134
  %5136 = vrot.lane.b32.xlu0 %v5007, 64
  %v5137 = vpop.permute.xlu0 %5136
  %5138 = vrot.lane.b32.xlu0 %v5009, 64
  %v5139 = vpop.permute.xlu0 %5138
  %5140 = vrot.lane.b32.xlu0 %v5011, 64
  %v5141 = vpop.permute.xlu0 %5140
  %5142 = vrot.lane.b32.xlu0 %v5014, 64
  %v5143 = vpop.permute.xlu0 %5142
  %5144 = vrot.lane.b32.xlu0 %v5016, 64
  %v5145 = vpop.permute.xlu0 %5144
  %5146 = vrot.lane.b32.xlu0 %v5018, 64
  %v5147 = vpop.permute.xlu0 %5146
  %5148 = vrot.lane.b32.xlu0 %v5020, 64
  %v5149 = vpop.permute.xlu0 %5148
  %5150 = vrot.lane.b32.xlu0 %v5023, 64
  %v5151 = vpop.permute.xlu0 %5150
  %5152 = vrot.lane.b32.xlu0 %v5025, 64
  %v5153 = vpop.permute.xlu0 %5152
  %5154 = vrot.lane.b32.xlu0 %v5027, 64
  %v5155 = vpop.permute.xlu0 %5154
  %5156 = vrot.lane.b32.xlu0 %v5029, 64
  %v5157 = vpop.permute.xlu0 %5156
  %vm5158 = vcmask 261120
  %v5160 = vsel %vm5158, %v4020, %v4710
  %v5162 = vsel %vm5158, %v4021, %v4712
  %v5164 = vsel %vm5158, %v4022, %v4714
  %v5166 = vsel %vm5158, %v4023, %v4716
  %v5168 = vsel %vm5158, %v4024, %v4718
  %v5170 = vsel %vm5158, %v4025, %v4720
  %v5172 = vsel %vm5158, %v4026, %v4722
  %v5174 = vsel %vm5158, %v4027, %v4724
  %v5176 = vsel %vm5158, %v4028, %v4726
  %v5178 = vsel %vm5158, %v4029, %v4728
  %v5180 = vsel %vm5158, %v4030, %v4730
  %v5182 = vsel %vm5158, %v4031, %v4732
  %v5184 = vsel %vm5158, %v4032, %v4734
  %v5186 = vsel %vm5158, %v4033, %v4736
  %v5188 = vsel %vm5158, %v4034, %v4738
  %v5190 = vsel %vm5158, %v4035, %v4740
  %v5192 = vsel %vm5158, %v4036, %v4742
  %v5194 = vsel %vm5158, %v4037, %v4744
  %v5196 = vsel %vm5158, %v4038, %v4746
  %v5198 = vsel %vm5158, %v4039, %v4748
  %v5200 = vsel %vm5158, %v4040, %v4750
  %v5202 = vsel %vm5158, %v4041, %v4752
  %v5204 = vsel %vm5158, %v4042, %v4754
  %v5206 = vsel %vm5158, %v4043, %v4756
  %v5208 = vsel %vm5158, %v4044, %v4758
  %v5210 = vsel %vm5158, %v4045, %v4760
  %v5212 = vsel %vm5158, %v4046, %v4762
  %v5214 = vsel %vm5158, %v4047, %v4764
  %v5216 = vsel %vm5158, %v4048, %v4766
  %v5218 = vsel %vm5158, %v4049, %v4768
  %v5220 = vsel %vm5158, %v4050, %v4770
  %v5222 = vsel %vm5158, %v4051, %v4772
  %v5224 = vsel %vm5158, %v4052, %v4774
  %v5226 = vsel %vm5158, %v4053, %v4776
  %v5228 = vsel %vm5158, %v4054, %v4778
  %v5230 = vsel %vm5158, %v4055, %v4780
  %v5232 = vsel %vm5158, %v4056, %v4782
  %v5234 = vsel %vm5158, %v4057, %v4784
  %v5236 = vsel %vm5158, %v4058, %v4786
  %v5238 = vsel %vm5158, %v4059, %v4788
  %v5240 = vsel %vm5158, %v4060, %v4790
  %v5242 = vsel %vm5158, %v4061, %v4792
  %v5244 = vsel %vm5158, %v4062, %v4794
  %v5246 = vsel %vm5158, %v4063, %v4796
  %v5248 = vsel %vm5158, %v4064, %v4798
  %v5250 = vsel %vm5158, %v4065, %v4800
  %v5252 = vsel %vm5158, %v4066, %v4802
  %v5254 = vsel %vm5158, %v4067, %v4804
  %v5256 = vsel %vm5158, %v4068, %v4806
  %v5258 = vsel %vm5158, %v4069, %v4808
  %v5260 = vsel %vm5158, %v4070, %v4810
  %v5262 = vsel %vm5158, %v4071, %v4812
  %v5264 = vsel %vm5158, %v4072, %v4814
  %v5266 = vsel %vm5158, %v4073, %v4816
  %v5268 = vsel %vm5158, %v4074, %v4818
  %v5270 = vsel %vm5158, %v4075, %v4820
  %v5272 = vsel %vm5158, %v4076, %v4822
  %v5274 = vsel %vm5158, %v4077, %v4824
  %v5276 = vsel %vm5158, %v4078, %v4826
  %v5278 = vsel %vm5158, %v4079, %v4828
  %v5280 = vsel %vm5158, %v4080, %v4830
  %v5282 = vsel %vm5158, %v4081, %v4832
  %v5284 = vsel %vm5158, %v4082, %v4834
  %v5286 = vsel %vm5158, %v4083, %v4836
  %vm5287 = vcmask 523264
  %v5289 = vsel %vm5287, %v5160, %v5031
  %v5291 = vsel %vm5287, %v5162, %v5033
  %v5293 = vsel %vm5287, %v5164, %v5035
  %v5295 = vsel %vm5287, %v5166, %v5037
  %v5297 = vsel %vm5287, %v5168, %v5039
  %v5299 = vsel %vm5287, %v5170, %v5041
  %v5301 = vsel %vm5287, %v5172, %v5043
  %v5303 = vsel %vm5287, %v5174, %v5045
  %v5305 = vsel %vm5287, %v5176, %v5047
  %v5307 = vsel %vm5287, %v5178, %v5049
  %v5309 = vsel %vm5287, %v5180, %v5051
  %v5311 = vsel %vm5287, %v5182, %v5053
  %v5313 = vsel %vm5287, %v5184, %v5055
  %v5315 = vsel %vm5287, %v5186, %v5057
  %v5317 = vsel %vm5287, %v5188, %v5059
  %v5319 = vsel %vm5287, %v5190, %v5061
  %v5321 = vsel %vm5287, %v5192, %v5063
  %v5323 = vsel %vm5287, %v5194, %v5065
  %v5325 = vsel %vm5287, %v5196, %v5067
  %v5327 = vsel %vm5287, %v5198, %v5069
  %v5329 = vsel %vm5287, %v5200, %v5071
  %v5331 = vsel %vm5287, %v5202, %v5073
  %v5333 = vsel %vm5287, %v5204, %v5075
  %v5335 = vsel %vm5287, %v5206, %v5077
  %v5337 = vsel %vm5287, %v5208, %v5079
  %v5339 = vsel %vm5287, %v5210, %v5081
  %v5341 = vsel %vm5287, %v5212, %v5083
  %v5343 = vsel %vm5287, %v5214, %v5085
  %v5345 = vsel %vm5287, %v5216, %v5087
  %v5347 = vsel %vm5287, %v5218, %v5089
  %v5349 = vsel %vm5287, %v5220, %v5091
  %v5351 = vsel %vm5287, %v5222, %v5093
  %v5353 = vsel %vm5287, %v5224, %v5095
  %v5355 = vsel %vm5287, %v5226, %v5097
  %v5357 = vsel %vm5287, %v5228, %v5099
  %v5359 = vsel %vm5287, %v5230, %v5101
  %v5361 = vsel %vm5287, %v5232, %v5103
  %v5363 = vsel %vm5287, %v5234, %v5105
  %v5365 = vsel %vm5287, %v5236, %v5107
  %v5367 = vsel %vm5287, %v5238, %v5109
  %v5369 = vsel %vm5287, %v5240, %v5111
  %v5371 = vsel %vm5287, %v5242, %v5113
  %v5373 = vsel %vm5287, %v5244, %v5115
  %v5375 = vsel %vm5287, %v5246, %v5117
  %v5377 = vsel %vm5287, %v5248, %v5119
  %v5379 = vsel %vm5287, %v5250, %v5121
  %v5381 = vsel %vm5287, %v5252, %v5123
  %v5383 = vsel %vm5287, %v5254, %v5125
  %v5385 = vsel %vm5287, %v5256, %v5127
  %v5387 = vsel %vm5287, %v5258, %v5129
  %v5389 = vsel %vm5287, %v5260, %v5131
  %v5391 = vsel %vm5287, %v5262, %v5133
  %v5393 = vsel %vm5287, %v5264, %v5135
  %v5395 = vsel %vm5287, %v5266, %v5137
  %v5397 = vsel %vm5287, %v5268, %v5139
  %v5399 = vsel %vm5287, %v5270, %v5141
  %v5401 = vsel %vm5287, %v5272, %v5143
  %v5403 = vsel %vm5287, %v5274, %v5145
  %v5405 = vsel %vm5287, %v5276, %v5147
  %v5407 = vsel %vm5287, %v5278, %v5149
  %v5409 = vsel %vm5287, %v5280, %v5151
  %v5411 = vsel %vm5287, %v5282, %v5153
  %v5413 = vsel %vm5287, %v5284, %v5155
  %v5415 = vsel %vm5287, %v5286, %v5157
  %v5416 = vld [vmem:[%s2] sm:$0xf]
  %v5417 = vld [vmem:[%s2 + $0x4] sm:$0xf]
  %v5418 = vld [vmem:[%s2 + $0x8] sm:$0xf]
  %v5419 = vld [vmem:[%s2 + $0xc] sm:$0xf]
  %v5420 = vld [vmem:[%s2 + $0x10] sm:$0xf]
  %v5421 = vld [vmem:[%s2 + $0x14] sm:$0xf]
  %v5422 = vld [vmem:[%s2 + $0x18] sm:$0xf]
  %v5423 = vld [vmem:[%s2 + $0x1c] sm:$0xf]
  %v5424 = vld [vmem:[%s2 + $0x20] sm:$0xf]
  %v5425 = vld [vmem:[%s2 + $0x24] sm:$0xf]
  %v5426 = vld [vmem:[%s2 + $0x28] sm:$0xf]
  %v5427 = vld [vmem:[%s2 + $0x2c] sm:$0xf]
  %v5428 = vld [vmem:[%s3 + $0x1] sm:$0x1]
  %v5429 = vlaneseq
  %v5430 = vshrl.u32 %v5429, 7
  %v5431 = vsub.s32 0, %v5430
  %v5432 = vrot.slane %v5428, %v5431
  %v5445 = vunpack.c.l.b16 %v5416
  %v5446 = vunpack.c.l.b16 %v5417
  %v5447 = vunpack.c.l.b16 %v5418
  %v5448 = vunpack.c.l.b16 %v5419
  %v5449 = vunpack.c.l.b16 %v5420
  %v5450 = vunpack.c.l.b16 %v5421
  %v5451 = vunpack.c.l.b16 %v5422
  %v5452 = vunpack.c.l.b16 %v5423
  %v5453 = vunpack.c.l.b16 %v5424
  %v5454 = vunpack.c.l.b16 %v5425
  %v5455 = vunpack.c.l.b16 %v5426
  %v5456 = vunpack.c.l.b16 %v5427
  %v5457 = vpack.c.b16 %v5446, %v5445
  %v5458 = vpack.c.b16 %v5448, %v5447
  %v5459 = vpack.c.b16 %v5450, %v5449
  %v5460 = vpack.c.b16 %v5452, %v5451
  %v5461 = vpack.c.b16 %v5454, %v5453
  %v5462 = vpack.c.b16 %v5456, %v5455
  %vm5469 = vcmask 785408
  %v5470 = vsel %vm5469, %v5289, 0
  %v5472 = vsel %vm5469, %v5291, 0
  %v5474 = vsel %vm5469, %v5293, 0
  %v5476 = vsel %vm5469, %v5295, 0
  %v5478 = vsel %vm5469, %v5297, 0
  %v5480 = vsel %vm5469, %v5299, 0
  %v5482 = vsel %vm5469, %v5301, 0
  %v5484 = vsel %vm5469, %v5303, 0
  %v5486 = vsel %vm5469, %v5305, 0
  %v5488 = vsel %vm5469, %v5307, 0
  %v5490 = vsel %vm5469, %v5309, 0
  %v5492 = vsel %vm5469, %v5311, 0
  %v5494 = vsel %vm5469, %v5313, 0
  %v5496 = vsel %vm5469, %v5315, 0
  %v5498 = vsel %vm5469, %v5317, 0
  %v5500 = vsel %vm5469, %v5319, 0
  %v5502 = vsel %vm5469, %v5321, 0
  %v5504 = vsel %vm5469, %v5323, 0
  %v5506 = vsel %vm5469, %v5325, 0
  %v5508 = vsel %vm5469, %v5327, 0
  %v5510 = vsel %vm5469, %v5329, 0
  %v5512 = vsel %vm5469, %v5331, 0
  %v5514 = vsel %vm5469, %v5333, 0
  %v5516 = vsel %vm5469, %v5335, 0
  %v5518 = vsel %vm5469, %v5337, 0
  %v5520 = vsel %vm5469, %v5339, 0
  %v5522 = vsel %vm5469, %v5341, 0
  %v5524 = vsel %vm5469, %v5343, 0
  %v5526 = vsel %vm5469, %v5345, 0
  %v5528 = vsel %vm5469, %v5347, 0
  %v5530 = vsel %vm5469, %v5349, 0
  %v5532 = vsel %vm5469, %v5351, 0
  %v5534 = vsel %vm5469, %v5353, 0
  %v5536 = vsel %vm5469, %v5355, 0
  %v5538 = vsel %vm5469, %v5357, 0
  %v5540 = vsel %vm5469, %v5359, 0
  %v5542 = vsel %vm5469, %v5361, 0
  %v5544 = vsel %vm5469, %v5363, 0
  %v5546 = vsel %vm5469, %v5365, 0
  %v5548 = vsel %vm5469, %v5367, 0
  %v5550 = vsel %vm5469, %v5369, 0
  %v5552 = vsel %vm5469, %v5371, 0
  %v5554 = vsel %vm5469, %v5373, 0
  %v5556 = vsel %vm5469, %v5375, 0
  %v5558 = vsel %vm5469, %v5377, 0
  %v5560 = vsel %vm5469, %v5379, 0
  %v5562 = vsel %vm5469, %v5381, 0
  %v5564 = vsel %vm5469, %v5383, 0
  %v5566 = vsel %vm5469, %v5385, 0
  %v5568 = vsel %vm5469, %v5387, 0
  %v5570 = vsel %vm5469, %v5389, 0
  %v5572 = vsel %vm5469, %v5391, 0
  %v5574 = vsel %vm5469, %v5393, 0
  %v5576 = vsel %vm5469, %v5395, 0
  %v5578 = vsel %vm5469, %v5397, 0
  %v5580 = vsel %vm5469, %v5399, 0
  %v5582 = vsel %vm5469, %v5401, 0
  %v5584 = vsel %vm5469, %v5403, 0
  %v5586 = vsel %vm5469, %v5405, 0
  %v5588 = vsel %vm5469, %v5407, 0
  %v5590 = vsel %vm5469, %v5409, 0
  %v5592 = vsel %vm5469, %v5411, 0
  %v5594 = vsel %vm5469, %v5413, 0
  %v5596 = vsel %vm5469, %v5415, 0
  %5598 = vmatprep.subr.bf16.mxu0 0
  %5599 = vmatpush1.bf16.msra.mxu0 0
  %5600 = vmatprep.subr.bf16.mxu0 0
  %5601 = vmatpush1.bf16.msra.mxu0 0
  %5602 = vmatprep.subr.bf16.mxu0 0
  %5603 = vmatpush1.bf16.msra.mxu0 %v5462
  %5604 = vmatprep.subr.bf16.mxu0 0
  %5605 = vmatpush1.bf16.msra.mxu0 %v5461
  %5606 = vmatprep.subr.bf16.mxu0 0
  %5607 = vmatpush1.bf16.msra.mxu0 %v5460
  %5608 = vmatprep.subr.bf16.mxu0 0
  %5609 = vmatpush1.bf16.msra.mxu0 %v5459
  %5610 = vmatprep.subr.bf16.mxu0 0
  %5611 = vmatpush1.bf16.msra.mxu0 %v5458
  %5612 = vmatprep.subr.bf16.mxu0 0
  %5613 = vmatpush1.bf16.msra.mxu0 %v5457
  %5614 = vmatprep.subr.bf16.mxu0 0
  %5615 = vmatpush2.bf16.msra.mxu0 0
  %5616 = vmatprep.subr.bf16.mxu0 0
  %5617 = vmatpush2.bf16.msra.mxu0 0
  %5618 = vmatprep.subr.bf16.mxu0 0
  %5619 = vmatpush2.bf16.msra.mxu0 0
  %5620 = vmatprep.subr.bf16.mxu0 0
  %5621 = vmatpush2.bf16.msra.mxu0 0
  %5622 = vmatprep.subr.bf16.mxu0 0
  %5623 = vmatpush2.bf16.msra.mxu0 0
  %5624 = vmatprep.subr.bf16.mxu0 0
  %5625 = vmatpush2.bf16.msra.mxu0 0
  %5626 = vmatprep.subr.bf16.mxu0 0
  %5627 = vmatpush2.bf16.msra.mxu0 0
  %5628 = vmatprep.subr.bf16.mxu0 0
  %5629 = vmatpush2.bf16.msra.mxu0 0
  %5630 = vmatprep.mubr.bf16.mxu0 0
  %5631 = vmatmul.mubr.bf16.gmra.mxu0 %v5470
  %v5632 = vpop.f32.mrf.mxu0
  %v5633 = vadd.f32 %v5432, %v5632
  %v5634 = vpop.f32.mrf.mxu0
  %v5635 = vpop.f32.mrf.mxu0
  %v5636 = vadd.f32 %v5432, %v5635
  %v5637 = vpop.f32.mrf.mxu0
  %5638 = vmatprep.mubr.bf16.mxu0 0
  %5639 = vmatmul.mubr.bf16.gmra.mxu0 %v5472
  %v5640 = vpop.f32.mrf.mxu0
  %v5641 = vadd.f32 %v5432, %v5640
  %v5642 = vpop.f32.mrf.mxu0
  %v5643 = vpop.f32.mrf.mxu0
  %v5644 = vadd.f32 %v5432, %v5643
  %v5645 = vpop.f32.mrf.mxu0
  %5646 = vmatprep.mubr.bf16.mxu0 0
  %5647 = vmatmul.mubr.bf16.gmra.mxu0 %v5474
  %v5648 = vpop.f32.mrf.mxu0
  %v5649 = vadd.f32 %v5432, %v5648
  %v5650 = vpop.f32.mrf.mxu0
  %v5651 = vpop.f32.mrf.mxu0
  %v5652 = vadd.f32 %v5432, %v5651
  %v5653 = vpop.f32.mrf.mxu0
  %5654 = vmatprep.mubr.bf16.mxu0 0
  %5655 = vmatmul.mubr.bf16.gmra.mxu0 %v5476
  %v5656 = vpop.f32.mrf.mxu0
  %v5657 = vadd.f32 %v5432, %v5656
  %v5658 = vpop.f32.mrf.mxu0
  %v5659 = vpop.f32.mrf.mxu0
  %v5660 = vadd.f32 %v5432, %v5659
  %v5661 = vpop.f32.mrf.mxu0
  %5662 = vmatprep.mubr.bf16.mxu0 0
  %5663 = vmatmul.mubr.bf16.gmra.mxu0 %v5478
  %v5664 = vpop.f32.mrf.mxu0
  %v5665 = vadd.f32 %v5432, %v5664
  %v5666 = vpop.f32.mrf.mxu0
  %v5667 = vpop.f32.mrf.mxu0
  %v5668 = vadd.f32 %v5432, %v5667
  %v5669 = vpop.f32.mrf.mxu0
  %5670 = vmatprep.mubr.bf16.mxu0 0
  %5671 = vmatmul.mubr.bf16.gmra.mxu0 %v5480
  %v5672 = vpop.f32.mrf.mxu0
  %v5673 = vadd.f32 %v5432, %v5672
  %v5674 = vpop.f32.mrf.mxu0
  %v5675 = vpop.f32.mrf.mxu0
  %v5676 = vadd.f32 %v5432, %v5675
  %v5677 = vpop.f32.mrf.mxu0
  %5678 = vmatprep.mubr.bf16.mxu0 0
  %5679 = vmatmul.mubr.bf16.gmra.mxu0 %v5482
  %v5680 = vpop.f32.mrf.mxu0
  %v5681 = vadd.f32 %v5432, %v5680
  %v5682 = vpop.f32.mrf.mxu0
  %v5683 = vpop.f32.mrf.mxu0
  %v5684 = vadd.f32 %v5432, %v5683
  %v5685 = vpop.f32.mrf.mxu0
  %5686 = vmatprep.mubr.bf16.mxu0 0
  %5687 = vmatmul.mubr.bf16.gmra.mxu0 %v5484
  %v5688 = vpop.f32.mrf.mxu0
  %v5689 = vadd.f32 %v5432, %v5688
  %v5690 = vpop.f32.mrf.mxu0
  %v5691 = vpop.f32.mrf.mxu0
  %v5692 = vadd.f32 %v5432, %v5691
  %v5693 = vpop.f32.mrf.mxu0
  %5694 = vmatprep.mubr.bf16.mxu0 0
  %5695 = vmatmul.mubr.bf16.gmra.mxu0 %v5486
  %v5696 = vpop.f32.mrf.mxu0
  %v5697 = vadd.f32 %v5432, %v5696
  %v5698 = vpop.f32.mrf.mxu0
  %v5699 = vpop.f32.mrf.mxu0
  %v5700 = vadd.f32 %v5432, %v5699
  %v5701 = vpop.f32.mrf.mxu0
  %5702 = vmatprep.mubr.bf16.mxu0 0
  %5703 = vmatmul.mubr.bf16.gmra.mxu0 %v5488
  %v5704 = vpop.f32.mrf.mxu0
  %v5705 = vadd.f32 %v5432, %v5704
  %v5706 = vpop.f32.mrf.mxu0
  %v5707 = vpop.f32.mrf.mxu0
  %v5708 = vadd.f32 %v5432, %v5707
  %v5709 = vpop.f32.mrf.mxu0
  %5710 = vmatprep.mubr.bf16.mxu0 0
  %5711 = vmatmul.mubr.bf16.gmra.mxu0 %v5490
  %v5712 = vpop.f32.mrf.mxu0
  %v5713 = vadd.f32 %v5432, %v5712
  %v5714 = vpop.f32.mrf.mxu0
  %v5715 = vpop.f32.mrf.mxu0
  %v5716 = vadd.f32 %v5432, %v5715
  %v5717 = vpop.f32.mrf.mxu0
  %5718 = vmatprep.mubr.bf16.mxu0 0
  %5719 = vmatmul.mubr.bf16.gmra.mxu0 %v5492
  %v5720 = vpop.f32.mrf.mxu0
  %v5721 = vadd.f32 %v5432, %v5720
  %v5722 = vpop.f32.mrf.mxu0
  %v5723 = vpop.f32.mrf.mxu0
  %v5724 = vadd.f32 %v5432, %v5723
  %v5725 = vpop.f32.mrf.mxu0
  %5726 = vmatprep.mubr.bf16.mxu0 0
  %5727 = vmatmul.mubr.bf16.gmra.mxu0 %v5494
  %v5728 = vpop.f32.mrf.mxu0
  %v5729 = vadd.f32 %v5432, %v5728
  %v5730 = vpop.f32.mrf.mxu0
  %v5731 = vpop.f32.mrf.mxu0
  %v5732 = vadd.f32 %v5432, %v5731
  %v5733 = vpop.f32.mrf.mxu0
  %5734 = vmatprep.mubr.bf16.mxu0 0
  %5735 = vmatmul.mubr.bf16.gmra.mxu0 %v5496
  %v5736 = vpop.f32.mrf.mxu0
  %v5737 = vadd.f32 %v5432, %v5736
  %v5738 = vpop.f32.mrf.mxu0
  %v5739 = vpop.f32.mrf.mxu0
  %v5740 = vadd.f32 %v5432, %v5739
  %v5741 = vpop.f32.mrf.mxu0
  %5742 = vmatprep.mubr.bf16.mxu0 0
  %5743 = vmatmul.mubr.bf16.gmra.mxu0 %v5498
  %v5744 = vpop.f32.mrf.mxu0
  %v5745 = vadd.f32 %v5432, %v5744
  %v5746 = vpop.f32.mrf.mxu0
  %v5747 = vpop.f32.mrf.mxu0
  %v5748 = vadd.f32 %v5432, %v5747
  %v5749 = vpop.f32.mrf.mxu0
  %5750 = vmatprep.mubr.bf16.mxu0 0
  %5751 = vmatmul.mubr.bf16.gmra.mxu0 %v5500
  %v5752 = vpop.f32.mrf.mxu0
  %v5753 = vadd.f32 %v5432, %v5752
  %v5754 = vpop.f32.mrf.mxu0
  %v5755 = vpop.f32.mrf.mxu0
  %v5756 = vadd.f32 %v5432, %v5755
  %v5757 = vpop.f32.mrf.mxu0
  %5758 = vmatprep.mubr.bf16.mxu0 0
  %5759 = vmatmul.mubr.bf16.gmra.mxu0 %v5502
  %v5760 = vpop.f32.mrf.mxu0
  %v5761 = vadd.f32 %v5432, %v5760
  %v5762 = vpop.f32.mrf.mxu0
  %v5763 = vpop.f32.mrf.mxu0
  %v5764 = vadd.f32 %v5432, %v5763
  %v5765 = vpop.f32.mrf.mxu0
  %5766 = vmatprep.mubr.bf16.mxu0 0
  %5767 = vmatmul.mubr.bf16.gmra.mxu0 %v5504
  %v5768 = vpop.f32.mrf.mxu0
  %v5769 = vadd.f32 %v5432, %v5768
  %v5770 = vpop.f32.mrf.mxu0
  %v5771 = vpop.f32.mrf.mxu0
  %v5772 = vadd.f32 %v5432, %v5771
  %v5773 = vpop.f32.mrf.mxu0
  %5774 = vmatprep.mubr.bf16.mxu0 0
  %5775 = vmatmul.mubr.bf16.gmra.mxu0 %v5506
  %v5776 = vpop.f32.mrf.mxu0
  %v5777 = vadd.f32 %v5432, %v5776
  %v5778 = vpop.f32.mrf.mxu0
  %v5779 = vpop.f32.mrf.mxu0
  %v5780 = vadd.f32 %v5432, %v5779
  %v5781 = vpop.f32.mrf.mxu0
  %5782 = vmatprep.mubr.bf16.mxu0 0
  %5783 = vmatmul.mubr.bf16.gmra.mxu0 %v5508
  %v5784 = vpop.f32.mrf.mxu0
  %v5785 = vadd.f32 %v5432, %v5784
  %v5786 = vpop.f32.mrf.mxu0
  %v5787 = vpop.f32.mrf.mxu0
  %v5788 = vadd.f32 %v5432, %v5787
  %v5789 = vpop.f32.mrf.mxu0
  %5790 = vmatprep.mubr.bf16.mxu0 0
  %5791 = vmatmul.mubr.bf16.gmra.mxu0 %v5510
  %v5792 = vpop.f32.mrf.mxu0
  %v5793 = vadd.f32 %v5432, %v5792
  %v5794 = vpop.f32.mrf.mxu0
  %v5795 = vpop.f32.mrf.mxu0
  %v5796 = vadd.f32 %v5432, %v5795
  %v5797 = vpop.f32.mrf.mxu0
  %5798 = vmatprep.mubr.bf16.mxu0 0
  %5799 = vmatmul.mubr.bf16.gmra.mxu0 %v5512
  %v5800 = vpop.f32.mrf.mxu0
  %v5801 = vadd.f32 %v5432, %v5800
  %v5802 = vpop.f32.mrf.mxu0
  %v5803 = vpop.f32.mrf.mxu0
  %v5804 = vadd.f32 %v5432, %v5803
  %v5805 = vpop.f32.mrf.mxu0
  %5806 = vmatprep.mubr.bf16.mxu0 0
  %5807 = vmatmul.mubr.bf16.gmra.mxu0 %v5514
  %v5808 = vpop.f32.mrf.mxu0
  %v5809 = vadd.f32 %v5432, %v5808
  %v5810 = vpop.f32.mrf.mxu0
  %v5811 = vpop.f32.mrf.mxu0
  %v5812 = vadd.f32 %v5432, %v5811
  %v5813 = vpop.f32.mrf.mxu0
  %5814 = vmatprep.mubr.bf16.mxu0 0
  %5815 = vmatmul.mubr.bf16.gmra.mxu0 %v5516
  %v5816 = vpop.f32.mrf.mxu0
  %v5817 = vadd.f32 %v5432, %v5816
  %v5818 = vpop.f32.mrf.mxu0
  %v5819 = vpop.f32.mrf.mxu0
  %v5820 = vadd.f32 %v5432, %v5819
  %v5821 = vpop.f32.mrf.mxu0
  %5822 = vmatprep.mubr.bf16.mxu0 0
  %5823 = vmatmul.mubr.bf16.gmra.mxu0 %v5518
  %v5824 = vpop.f32.mrf.mxu0
  %v5825 = vadd.f32 %v5432, %v5824
  %v5826 = vpop.f32.mrf.mxu0
  %v5827 = vpop.f32.mrf.mxu0
  %v5828 = vadd.f32 %v5432, %v5827
  %v5829 = vpop.f32.mrf.mxu0
  %5830 = vmatprep.mubr.bf16.mxu0 0
  %5831 = vmatmul.mubr.bf16.gmra.mxu0 %v5520
  %v5832 = vpop.f32.mrf.mxu0
  %v5833 = vadd.f32 %v5432, %v5832
  %v5834 = vpop.f32.mrf.mxu0
  %v5835 = vpop.f32.mrf.mxu0
  %v5836 = vadd.f32 %v5432, %v5835
  %v5837 = vpop.f32.mrf.mxu0
  %5838 = vmatprep.mubr.bf16.mxu0 0
  %5839 = vmatmul.mubr.bf16.gmra.mxu0 %v5522
  %v5840 = vpop.f32.mrf.mxu0
  %v5841 = vadd.f32 %v5432, %v5840
  %v5842 = vpop.f32.mrf.mxu0
  %v5843 = vpop.f32.mrf.mxu0
  %v5844 = vadd.f32 %v5432, %v5843
  %v5845 = vpop.f32.mrf.mxu0
  %5846 = vmatprep.mubr.bf16.mxu0 0
  %5847 = vmatmul.mubr.bf16.gmra.mxu0 %v5524
  %v5848 = vpop.f32.mrf.mxu0
  %v5849 = vadd.f32 %v5432, %v5848
  %v5850 = vpop.f32.mrf.mxu0
  %v5851 = vpop.f32.mrf.mxu0
  %v5852 = vadd.f32 %v5432, %v5851
  %v5853 = vpop.f32.mrf.mxu0
  %5854 = vmatprep.mubr.bf16.mxu0 0
  %5855 = vmatmul.mubr.bf16.gmra.mxu0 %v5526
  %v5856 = vpop.f32.mrf.mxu0
  %v5857 = vadd.f32 %v5432, %v5856
  %v5858 = vpop.f32.mrf.mxu0
  %v5859 = vpop.f32.mrf.mxu0
  %v5860 = vadd.f32 %v5432, %v5859
  %v5861 = vpop.f32.mrf.mxu0
  %5862 = vmatprep.mubr.bf16.mxu0 0
  %5863 = vmatmul.mubr.bf16.gmra.mxu0 %v5528
  %v5864 = vpop.f32.mrf.mxu0
  %v5865 = vadd.f32 %v5432, %v5864
  %v5866 = vpop.f32.mrf.mxu0
  %v5867 = vpop.f32.mrf.mxu0
  %v5868 = vadd.f32 %v5432, %v5867
  %v5869 = vpop.f32.mrf.mxu0
  %5870 = vmatprep.mubr.bf16.mxu0 0
  %5871 = vmatmul.mubr.bf16.gmra.mxu0 %v5530
  %v5872 = vpop.f32.mrf.mxu0
  %v5873 = vadd.f32 %v5432, %v5872
  %v5874 = vpop.f32.mrf.mxu0
  %v5875 = vpop.f32.mrf.mxu0
  %v5876 = vadd.f32 %v5432, %v5875
  %v5877 = vpop.f32.mrf.mxu0
  %5878 = vmatprep.mubr.bf16.mxu0 0
  %5879 = vmatmul.mubr.bf16.gmra.mxu0 %v5532
  %v5880 = vpop.f32.mrf.mxu0
  %v5881 = vadd.f32 %v5432, %v5880
  %v5882 = vpop.f32.mrf.mxu0
  %v5883 = vpop.f32.mrf.mxu0
  %v5884 = vadd.f32 %v5432, %v5883
  %v5885 = vpop.f32.mrf.mxu0
  %5886 = vmatprep.mubr.bf16.mxu0 0
  %5887 = vmatmul.mubr.bf16.gmra.mxu0 %v5534
  %v5888 = vpop.f32.mrf.mxu0
  %v5889 = vadd.f32 %v5432, %v5888
  %v5890 = vpop.f32.mrf.mxu0
  %v5891 = vpop.f32.mrf.mxu0
  %v5892 = vadd.f32 %v5432, %v5891
  %v5893 = vpop.f32.mrf.mxu0
  %5894 = vmatprep.mubr.bf16.mxu0 0
  %5895 = vmatmul.mubr.bf16.gmra.mxu0 %v5536
  %v5896 = vpop.f32.mrf.mxu0
  %v5897 = vadd.f32 %v5432, %v5896
  %v5898 = vpop.f32.mrf.mxu0
  %v5899 = vpop.f32.mrf.mxu0
  %v5900 = vadd.f32 %v5432, %v5899
  %v5901 = vpop.f32.mrf.mxu0
  %5902 = vmatprep.mubr.bf16.mxu0 0
  %5903 = vmatmul.mubr.bf16.gmra.mxu0 %v5538
  %v5904 = vpop.f32.mrf.mxu0
  %v5905 = vadd.f32 %v5432, %v5904
  %v5906 = vpop.f32.mrf.mxu0
  %v5907 = vpop.f32.mrf.mxu0
  %v5908 = vadd.f32 %v5432, %v5907
  %v5909 = vpop.f32.mrf.mxu0
  %5910 = vmatprep.mubr.bf16.mxu0 0
  %5911 = vmatmul.mubr.bf16.gmra.mxu0 %v5540
  %v5912 = vpop.f32.mrf.mxu0
  %v5913 = vadd.f32 %v5432, %v5912
  %v5914 = vpop.f32.mrf.mxu0
  %v5915 = vpop.f32.mrf.mxu0
  %v5916 = vadd.f32 %v5432, %v5915
  %v5917 = vpop.f32.mrf.mxu0
  %5918 = vmatprep.mubr.bf16.mxu0 0
  %5919 = vmatmul.mubr.bf16.gmra.mxu0 %v5542
  %v5920 = vpop.f32.mrf.mxu0
  %v5921 = vadd.f32 %v5432, %v5920
  %v5922 = vpop.f32.mrf.mxu0
  %v5923 = vpop.f32.mrf.mxu0
  %v5924 = vadd.f32 %v5432, %v5923
  %v5925 = vpop.f32.mrf.mxu0
  %5926 = vmatprep.mubr.bf16.mxu0 0
  %5927 = vmatmul.mubr.bf16.gmra.mxu0 %v5544
  %v5928 = vpop.f32.mrf.mxu0
  %v5929 = vadd.f32 %v5432, %v5928
  %v5930 = vpop.f32.mrf.mxu0
  %v5931 = vpop.f32.mrf.mxu0
  %v5932 = vadd.f32 %v5432, %v5931
  %v5933 = vpop.f32.mrf.mxu0
  %5934 = vmatprep.mubr.bf16.mxu0 0
  %5935 = vmatmul.mubr.bf16.gmra.mxu0 %v5546
  %v5936 = vpop.f32.mrf.mxu0
  %v5937 = vadd.f32 %v5432, %v5936
  %v5938 = vpop.f32.mrf.mxu0
  %v5939 = vpop.f32.mrf.mxu0
  %v5940 = vadd.f32 %v5432, %v5939
  %v5941 = vpop.f32.mrf.mxu0
  %5942 = vmatprep.mubr.bf16.mxu0 0
  %5943 = vmatmul.mubr.bf16.gmra.mxu0 %v5548
  %v5944 = vpop.f32.mrf.mxu0
  %v5945 = vadd.f32 %v5432, %v5944
  %v5946 = vpop.f32.mrf.mxu0
  %v5947 = vpop.f32.mrf.mxu0
  %v5948 = vadd.f32 %v5432, %v5947
  %v5949 = vpop.f32.mrf.mxu0
  %5950 = vmatprep.mubr.bf16.mxu0 0
  %5951 = vmatmul.mubr.bf16.gmra.mxu0 %v5550
  %v5952 = vpop.f32.mrf.mxu0
  %v5953 = vadd.f32 %v5432, %v5952
  %v5954 = vpop.f32.mrf.mxu0
  %v5955 = vpop.f32.mrf.mxu0
  %v5956 = vadd.f32 %v5432, %v5955
  %v5957 = vpop.f32.mrf.mxu0
  %5958 = vmatprep.mubr.bf16.mxu0 0
  %5959 = vmatmul.mubr.bf16.gmra.mxu0 %v5552
  %v5960 = vpop.f32.mrf.mxu0
  %v5961 = vadd.f32 %v5432, %v5960
  %v5962 = vpop.f32.mrf.mxu0
  %v5963 = vpop.f32.mrf.mxu0
  %v5964 = vadd.f32 %v5432, %v5963
  %v5965 = vpop.f32.mrf.mxu0
  %5966 = vmatprep.mubr.bf16.mxu0 0
  %5967 = vmatmul.mubr.bf16.gmra.mxu0 %v5554
  %v5968 = vpop.f32.mrf.mxu0
  %v5969 = vadd.f32 %v5432, %v5968
  %v5970 = vpop.f32.mrf.mxu0
  %v5971 = vpop.f32.mrf.mxu0
  %v5972 = vadd.f32 %v5432, %v5971
  %v5973 = vpop.f32.mrf.mxu0
  %5974 = vmatprep.mubr.bf16.mxu0 0
  %5975 = vmatmul.mubr.bf16.gmra.mxu0 %v5556
  %v5976 = vpop.f32.mrf.mxu0
  %v5977 = vadd.f32 %v5432, %v5976
  %v5978 = vpop.f32.mrf.mxu0
  %v5979 = vpop.f32.mrf.mxu0
  %v5980 = vadd.f32 %v5432, %v5979
  %v5981 = vpop.f32.mrf.mxu0
  %5982 = vmatprep.mubr.bf16.mxu0 0
  %5983 = vmatmul.mubr.bf16.gmra.mxu0 %v5558
  %v5984 = vpop.f32.mrf.mxu0
  %v5985 = vadd.f32 %v5432, %v5984
  %v5986 = vpop.f32.mrf.mxu0
  %v5987 = vpop.f32.mrf.mxu0
  %v5988 = vadd.f32 %v5432, %v5987
  %v5989 = vpop.f32.mrf.mxu0
  %5990 = vmatprep.mubr.bf16.mxu0 0
  %5991 = vmatmul.mubr.bf16.gmra.mxu0 %v5560
  %v5992 = vpop.f32.mrf.mxu0
  %v5993 = vadd.f32 %v5432, %v5992
  %v5994 = vpop.f32.mrf.mxu0
  %v5995 = vpop.f32.mrf.mxu0
  %v5996 = vadd.f32 %v5432, %v5995
  %v5997 = vpop.f32.mrf.mxu0
  %5998 = vmatprep.mubr.bf16.mxu0 0
  %5999 = vmatmul.mubr.bf16.gmra.mxu0 %v5562
  %v6000 = vpop.f32.mrf.mxu0
  %v6001 = vadd.f32 %v5432, %v6000
  %v6002 = vpop.f32.mrf.mxu0
  %v6003 = vpop.f32.mrf.mxu0
  %v6004 = vadd.f32 %v5432, %v6003
  %v6005 = vpop.f32.mrf.mxu0
  %6006 = vmatprep.mubr.bf16.mxu0 0
  %6007 = vmatmul.mubr.bf16.gmra.mxu0 %v5564
  %v6008 = vpop.f32.mrf.mxu0
  %v6009 = vadd.f32 %v5432, %v6008
  %v6010 = vpop.f32.mrf.mxu0
  %v6011 = vpop.f32.mrf.mxu0
  %v6012 = vadd.f32 %v5432, %v6011
  %v6013 = vpop.f32.mrf.mxu0
  %6014 = vmatprep.mubr.bf16.mxu0 0
  %6015 = vmatmul.mubr.bf16.gmra.mxu0 %v5566
  %v6016 = vpop.f32.mrf.mxu0
  %v6017 = vadd.f32 %v5432, %v6016
  %v6018 = vpop.f32.mrf.mxu0
  %v6019 = vpop.f32.mrf.mxu0
  %v6020 = vadd.f32 %v5432, %v6019
  %v6021 = vpop.f32.mrf.mxu0
  %6022 = vmatprep.mubr.bf16.mxu0 0
  %6023 = vmatmul.mubr.bf16.gmra.mxu0 %v5568
  %v6024 = vpop.f32.mrf.mxu0
  %v6025 = vadd.f32 %v5432, %v6024
  %v6026 = vpop.f32.mrf.mxu0
  %v6027 = vpop.f32.mrf.mxu0
  %v6028 = vadd.f32 %v5432, %v6027
  %v6029 = vpop.f32.mrf.mxu0
  %6030 = vmatprep.mubr.bf16.mxu0 0
  %6031 = vmatmul.mubr.bf16.gmra.mxu0 %v5570
  %v6032 = vpop.f32.mrf.mxu0
  %v6033 = vadd.f32 %v5432, %v6032
  %v6034 = vpop.f32.mrf.mxu0
  %v6035 = vpop.f32.mrf.mxu0
  %v6036 = vadd.f32 %v5432, %v6035
  %v6037 = vpop.f32.mrf.mxu0
  %6038 = vmatprep.mubr.bf16.mxu0 0
  %6039 = vmatmul.mubr.bf16.gmra.mxu0 %v5572
  %v6040 = vpop.f32.mrf.mxu0
  %v6041 = vadd.f32 %v5432, %v6040
  %v6042 = vpop.f32.mrf.mxu0
  %v6043 = vpop.f32.mrf.mxu0
  %v6044 = vadd.f32 %v5432, %v6043
  %v6045 = vpop.f32.mrf.mxu0
  %6046 = vmatprep.mubr.bf16.mxu0 0
  %6047 = vmatmul.mubr.bf16.gmra.mxu0 %v5574
  %v6048 = vpop.f32.mrf.mxu0
  %v6049 = vadd.f32 %v5432, %v6048
  %v6050 = vpop.f32.mrf.mxu0
  %v6051 = vpop.f32.mrf.mxu0
  %v6052 = vadd.f32 %v5432, %v6051
  %v6053 = vpop.f32.mrf.mxu0
  %6054 = vmatprep.mubr.bf16.mxu0 0
  %6055 = vmatmul.mubr.bf16.gmra.mxu0 %v5576
  %v6056 = vpop.f32.mrf.mxu0
  %v6057 = vadd.f32 %v5432, %v6056
  %v6058 = vpop.f32.mrf.mxu0
  %v6059 = vpop.f32.mrf.mxu0
  %v6060 = vadd.f32 %v5432, %v6059
  %v6061 = vpop.f32.mrf.mxu0
  %6062 = vmatprep.mubr.bf16.mxu0 0
  %6063 = vmatmul.mubr.bf16.gmra.mxu0 %v5578
  %v6064 = vpop.f32.mrf.mxu0
  %v6065 = vadd.f32 %v5432, %v6064
  %v6066 = vpop.f32.mrf.mxu0
  %v6067 = vpop.f32.mrf.mxu0
  %v6068 = vadd.f32 %v5432, %v6067
  %v6069 = vpop.f32.mrf.mxu0
  %6070 = vmatprep.mubr.bf16.mxu0 0
  %6071 = vmatmul.mubr.bf16.gmra.mxu0 %v5580
  %v6072 = vpop.f32.mrf.mxu0
  %v6073 = vadd.f32 %v5432, %v6072
  %v6074 = vpop.f32.mrf.mxu0
  %v6075 = vpop.f32.mrf.mxu0
  %v6076 = vadd.f32 %v5432, %v6075
  %v6077 = vpop.f32.mrf.mxu0
  %6078 = vmatprep.mubr.bf16.mxu0 0
  %6079 = vmatmul.mubr.bf16.gmra.mxu0 %v5582
  %v6080 = vpop.f32.mrf.mxu0
  %v6081 = vadd.f32 %v5432, %v6080
  %v6082 = vpop.f32.mrf.mxu0
  %v6083 = vpop.f32.mrf.mxu0
  %v6084 = vadd.f32 %v5432, %v6083
  %v6085 = vpop.f32.mrf.mxu0
  %6086 = vmatprep.mubr.bf16.mxu0 0
  %6087 = vmatmul.mubr.bf16.gmra.mxu0 %v5584
  %v6088 = vpop.f32.mrf.mxu0
  %v6089 = vadd.f32 %v5432, %v6088
  %v6090 = vpop.f32.mrf.mxu0
  %v6091 = vpop.f32.mrf.mxu0
  %v6092 = vadd.f32 %v5432, %v6091
  %v6093 = vpop.f32.mrf.mxu0
  %6094 = vmatprep.mubr.bf16.mxu0 0
  %6095 = vmatmul.mubr.bf16.gmra.mxu0 %v5586
  %v6096 = vpop.f32.mrf.mxu0
  %v6097 = vadd.f32 %v5432, %v6096
  %v6098 = vpop.f32.mrf.mxu0
  %v6099 = vpop.f32.mrf.mxu0
  %v6100 = vadd.f32 %v5432, %v6099
  %v6101 = vpop.f32.mrf.mxu0
  %6102 = vmatprep.mubr.bf16.mxu0 0
  %6103 = vmatmul.mubr.bf16.gmra.mxu0 %v5588
  %v6104 = vpop.f32.mrf.mxu0
  %v6105 = vadd.f32 %v5432, %v6104
  %v6106 = vpop.f32.mrf.mxu0
  %v6107 = vpop.f32.mrf.mxu0
  %v6108 = vadd.f32 %v5432, %v6107
  %v6109 = vpop.f32.mrf.mxu0
  %6110 = vmatprep.mubr.bf16.mxu0 0
  %6111 = vmatmul.mubr.bf16.gmra.mxu0 %v5590
  %v6112 = vpop.f32.mrf.mxu0
  %v6113 = vadd.f32 %v5432, %v6112
  %v6114 = vpop.f32.mrf.mxu0
  %v6115 = vpop.f32.mrf.mxu0
  %v6116 = vadd.f32 %v5432, %v6115
  %v6117 = vpop.f32.mrf.mxu0
  %6118 = vmatprep.mubr.bf16.mxu0 0
  %6119 = vmatmul.mubr.bf16.gmra.mxu0 %v5592
  %v6120 = vpop.f32.mrf.mxu0
  %v6121 = vadd.f32 %v5432, %v6120
  %v6122 = vpop.f32.mrf.mxu0
  %v6123 = vpop.f32.mrf.mxu0
  %v6124 = vadd.f32 %v5432, %v6123
  %v6125 = vpop.f32.mrf.mxu0
  %6126 = vmatprep.mubr.bf16.mxu0 0
  %6127 = vmatmul.mubr.bf16.gmra.mxu0 %v5594
  %v6128 = vpop.f32.mrf.mxu0
  %v6129 = vadd.f32 %v5432, %v6128
  %v6130 = vpop.f32.mrf.mxu0
  %v6131 = vpop.f32.mrf.mxu0
  %v6132 = vadd.f32 %v5432, %v6131
  %v6133 = vpop.f32.mrf.mxu0
  %6134 = vmatprep.mubr.bf16.mxu0 0
  %6135 = vmatmul.mubr.bf16.gmra.mxu0 %v5596
  %v6136 = vpop.f32.mrf.mxu0
  %v6137 = vadd.f32 %v5432, %v6136
  %v6138 = vpop.f32.mrf.mxu0
  %v6139 = vpop.f32.mrf.mxu0
  %v6140 = vadd.f32 %v5432, %v6139
  %v6141 = vpop.f32.mrf.mxu0
  %6142 = vdwg.mxu0
  %v6143 = vmax.f32 %v5633, 0.0
  %v6144 = vmax.f32 %v5636, 0.0
  %v6145 = vmax.f32 %v5641, 0.0
  %v6146 = vmax.f32 %v5644, 0.0
  %v6147 = vmax.f32 %v5649, 0.0
  %v6148 = vmax.f32 %v5652, 0.0
  %v6149 = vmax.f32 %v5657, 0.0
  %v6150 = vmax.f32 %v5660, 0.0
  %v6151 = vmax.f32 %v5665, 0.0
  %v6152 = vmax.f32 %v5668, 0.0
  %v6153 = vmax.f32 %v5673, 0.0
  %v6154 = vmax.f32 %v5676, 0.0
  %v6155 = vmax.f32 %v5681, 0.0
  %v6156 = vmax.f32 %v5684, 0.0
  %v6157 = vmax.f32 %v5689, 0.0
  %v6158 = vmax.f32 %v5692, 0.0
  %v6159 = vmax.f32 %v5697, 0.0
  %v6160 = vmax.f32 %v5700, 0.0
  %v6161 = vmax.f32 %v5705, 0.0
  %v6162 = vmax.f32 %v5708, 0.0
  %v6163 = vmax.f32 %v5713, 0.0
  %v6164 = vmax.f32 %v5716, 0.0
  %v6165 = vmax.f32 %v5721, 0.0
  %v6166 = vmax.f32 %v5724, 0.0
  %v6167 = vmax.f32 %v5729, 0.0
  %v6168 = vmax.f32 %v5732, 0.0
  %v6169 = vmax.f32 %v5737, 0.0
  %v6170 = vmax.f32 %v5740, 0.0
  %v6171 = vmax.f32 %v5745, 0.0
  %v6172 = vmax.f32 %v5748, 0.0
  %v6173 = vmax.f32 %v5753, 0.0
  %v6174 = vmax.f32 %v5756, 0.0
  %v6175 = vmax.f32 %v5761, 0.0
  %v6176 = vmax.f32 %v5764, 0.0
  %v6177 = vmax.f32 %v5769, 0.0
  %v6178 = vmax.f32 %v5772, 0.0
  %v6179 = vmax.f32 %v5777, 0.0
  %v6180 = vmax.f32 %v5780, 0.0
  %v6181 = vmax.f32 %v5785, 0.0
  %v6182 = vmax.f32 %v5788, 0.0
  %v6183 = vmax.f32 %v5793, 0.0
  %v6184 = vmax.f32 %v5796, 0.0
  %v6185 = vmax.f32 %v5801, 0.0
  %v6186 = vmax.f32 %v5804, 0.0
  %v6187 = vmax.f32 %v5809, 0.0
  %v6188 = vmax.f32 %v5812, 0.0
  %v6189 = vmax.f32 %v5817, 0.0
  %v6190 = vmax.f32 %v5820, 0.0
  %v6191 = vmax.f32 %v5825, 0.0
  %v6192 = vmax.f32 %v5828, 0.0
  %v6193 = vmax.f32 %v5833, 0.0
  %v6194 = vmax.f32 %v5836, 0.0
  %v6195 = vmax.f32 %v5841, 0.0
  %v6196 = vmax.f32 %v5844, 0.0
  %v6197 = vmax.f32 %v5849, 0.0
  %v6198 = vmax.f32 %v5852, 0.0
  %v6199 = vmax.f32 %v5857, 0.0
  %v6200 = vmax.f32 %v5860, 0.0
  %v6201 = vmax.f32 %v5865, 0.0
  %v6202 = vmax.f32 %v5868, 0.0
  %v6203 = vmax.f32 %v5873, 0.0
  %v6204 = vmax.f32 %v5876, 0.0
  %v6205 = vmax.f32 %v5881, 0.0
  %v6206 = vmax.f32 %v5884, 0.0
  %v6207 = vmax.f32 %v5889, 0.0
  %v6208 = vmax.f32 %v5892, 0.0
  %v6209 = vmax.f32 %v5897, 0.0
  %v6210 = vmax.f32 %v5900, 0.0
  %v6211 = vmax.f32 %v5905, 0.0
  %v6212 = vmax.f32 %v5908, 0.0
  %v6213 = vmax.f32 %v5913, 0.0
  %v6214 = vmax.f32 %v5916, 0.0
  %v6215 = vmax.f32 %v5921, 0.0
  %v6216 = vmax.f32 %v5924, 0.0
  %v6217 = vmax.f32 %v5929, 0.0
  %v6218 = vmax.f32 %v5932, 0.0
  %v6219 = vmax.f32 %v5937, 0.0
  %v6220 = vmax.f32 %v5940, 0.0
  %v6221 = vmax.f32 %v5945, 0.0
  %v6222 = vmax.f32 %v5948, 0.0
  %v6223 = vmax.f32 %v5953, 0.0
  %v6224 = vmax.f32 %v5956, 0.0
  %v6225 = vmax.f32 %v5961, 0.0
  %v6226 = vmax.f32 %v5964, 0.0
  %v6227 = vmax.f32 %v5969, 0.0
  %v6228 = vmax.f32 %v5972, 0.0
  %v6229 = vmax.f32 %v5977, 0.0
  %v6230 = vmax.f32 %v5980, 0.0
  %v6231 = vmax.f32 %v5985, 0.0
  %v6232 = vmax.f32 %v5988, 0.0
  %v6233 = vmax.f32 %v5993, 0.0
  %v6234 = vmax.f32 %v5996, 0.0
  %v6235 = vmax.f32 %v6001, 0.0
  %v6236 = vmax.f32 %v6004, 0.0
  %v6237 = vmax.f32 %v6009, 0.0
  %v6238 = vmax.f32 %v6012, 0.0
  %v6239 = vmax.f32 %v6017, 0.0
  %v6240 = vmax.f32 %v6020, 0.0
  %v6241 = vmax.f32 %v6025, 0.0
  %v6242 = vmax.f32 %v6028, 0.0
  %v6243 = vmax.f32 %v6033, 0.0
  %v6244 = vmax.f32 %v6036, 0.0
  %v6245 = vmax.f32 %v6041, 0.0
  %v6246 = vmax.f32 %v6044, 0.0
  %v6247 = vmax.f32 %v6049, 0.0
  %v6248 = vmax.f32 %v6052, 0.0
  %v6249 = vmax.f32 %v6057, 0.0
  %v6250 = vmax.f32 %v6060, 0.0
  %v6251 = vmax.f32 %v6065, 0.0
  %v6252 = vmax.f32 %v6068, 0.0
  %v6253 = vmax.f32 %v6073, 0.0
  %v6254 = vmax.f32 %v6076, 0.0
  %v6255 = vmax.f32 %v6081, 0.0
  %v6256 = vmax.f32 %v6084, 0.0
  %v6257 = vmax.f32 %v6089, 0.0
  %v6258 = vmax.f32 %v6092, 0.0
  %v6259 = vmax.f32 %v6097, 0.0
  %v6260 = vmax.f32 %v6100, 0.0
  %v6261 = vmax.f32 %v6105, 0.0
  %v6262 = vmax.f32 %v6108, 0.0
  %v6263 = vmax.f32 %v6113, 0.0
  %v6264 = vmax.f32 %v6116, 0.0
  %v6265 = vmax.f32 %v6121, 0.0
  %v6266 = vmax.f32 %v6124, 0.0
  %v6267 = vmax.f32 %v6129, 0.0
  %v6268 = vmax.f32 %v6132, 0.0
  %v6269 = vmax.f32 %v6137, 0.0
  %v6270 = vmax.f32 %v6140, 0.0
  %6399 = vrot.lane.b32.xlu0 %v1498, 96
  %v6400 = vpop.permute.xlu0 %6399
  %6401 = vrot.lane.b32.xlu0 %v1499, 96
  %v6402 = vpop.permute.xlu0 %6401
  %6403 = vrot.lane.b32.xlu0 %v1500, 96
  %v6404 = vpop.permute.xlu0 %6403
  %6405 = vrot.lane.b32.xlu0 %v1501, 96
  %v6406 = vpop.permute.xlu0 %6405
  %6407 = vrot.lane.b32.xlu0 %v1502, 96
  %v6408 = vpop.permute.xlu0 %6407
  %6409 = vrot.lane.b32.xlu0 %v1503, 96
  %v6410 = vpop.permute.xlu0 %6409
  %6411 = vrot.lane.b32.xlu0 %v1504, 96
  %v6412 = vpop.permute.xlu0 %6411
  %6413 = vrot.lane.b32.xlu0 %v1505, 96
  %v6414 = vpop.permute.xlu0 %6413
  %6415 = vrot.lane.b32.xlu0 %v1506, 96
  %v6416 = vpop.permute.xlu0 %6415
  %6417 = vrot.lane.b32.xlu0 %v1507, 96
  %v6418 = vpop.permute.xlu0 %6417
  %6419 = vrot.lane.b32.xlu0 %v1508, 96
  %v6420 = vpop.permute.xlu0 %6419
  %6421 = vrot.lane.b32.xlu0 %v1509, 96
  %v6422 = vpop.permute.xlu0 %6421
  %6423 = vrot.lane.b32.xlu0 %v1510, 96
  %v6424 = vpop.permute.xlu0 %6423
  %6425 = vrot.lane.b32.xlu0 %v1511, 96
  %v6426 = vpop.permute.xlu0 %6425
  %6427 = vrot.lane.b32.xlu0 %v1512, 96
  %v6428 = vpop.permute.xlu0 %6427
  %6429 = vrot.lane.b32.xlu0 %v1513, 96
  %v6430 = vpop.permute.xlu0 %6429
  %6431 = vrot.lane.b32.xlu0 %v1514, 96
  %v6432 = vpop.permute.xlu0 %6431
  %6433 = vrot.lane.b32.xlu0 %v1515, 96
  %v6434 = vpop.permute.xlu0 %6433
  %6435 = vrot.lane.b32.xlu0 %v1516, 96
  %v6436 = vpop.permute.xlu0 %6435
  %6437 = vrot.lane.b32.xlu0 %v1517, 96
  %v6438 = vpop.permute.xlu0 %6437
  %6439 = vrot.lane.b32.xlu0 %v1518, 96
  %v6440 = vpop.permute.xlu0 %6439
  %6441 = vrot.lane.b32.xlu0 %v1519, 96
  %v6442 = vpop.permute.xlu0 %6441
  %6443 = vrot.lane.b32.xlu0 %v1520, 96
  %v6444 = vpop.permute.xlu0 %6443
  %6445 = vrot.lane.b32.xlu0 %v1521, 96
  %v6446 = vpop.permute.xlu0 %6445
  %6447 = vrot.lane.b32.xlu0 %v1522, 96
  %v6448 = vpop.permute.xlu0 %6447
  %6449 = vrot.lane.b32.xlu0 %v1523, 96
  %v6450 = vpop.permute.xlu0 %6449
  %6451 = vrot.lane.b32.xlu0 %v1524, 96
  %v6452 = vpop.permute.xlu0 %6451
  %6453 = vrot.lane.b32.xlu0 %v1525, 96
  %v6454 = vpop.permute.xlu0 %6453
  %6455 = vrot.lane.b32.xlu0 %v1526, 96
  %v6456 = vpop.permute.xlu0 %6455
  %6457 = vrot.lane.b32.xlu0 %v1527, 96
  %v6458 = vpop.permute.xlu0 %6457
  %6459 = vrot.lane.b32.xlu0 %v1528, 96
  %v6460 = vpop.permute.xlu0 %6459
  %6461 = vrot.lane.b32.xlu0 %v1529, 96
  %v6462 = vpop.permute.xlu0 %6461
  %6463 = vrot.lane.b32.xlu0 %v1530, 96
  %v6464 = vpop.permute.xlu0 %6463
  %6465 = vrot.lane.b32.xlu0 %v1531, 96
  %v6466 = vpop.permute.xlu0 %6465
  %6467 = vrot.lane.b32.xlu0 %v1532, 96
  %v6468 = vpop.permute.xlu0 %6467
  %6469 = vrot.lane.b32.xlu0 %v1533, 96
  %v6470 = vpop.permute.xlu0 %6469
  %6471 = vrot.lane.b32.xlu0 %v1534, 96
  %v6472 = vpop.permute.xlu0 %6471
  %6473 = vrot.lane.b32.xlu0 %v1535, 96
  %v6474 = vpop.permute.xlu0 %6473
  %6475 = vrot.lane.b32.xlu0 %v1536, 96
  %v6476 = vpop.permute.xlu0 %6475
  %6477 = vrot.lane.b32.xlu0 %v1537, 96
  %v6478 = vpop.permute.xlu0 %6477
  %6479 = vrot.lane.b32.xlu0 %v1538, 96
  %v6480 = vpop.permute.xlu0 %6479
  %6481 = vrot.lane.b32.xlu0 %v1539, 96
  %v6482 = vpop.permute.xlu0 %6481
  %6483 = vrot.lane.b32.xlu0 %v1540, 96
  %v6484 = vpop.permute.xlu0 %6483
  %6485 = vrot.lane.b32.xlu0 %v1541, 96
  %v6486 = vpop.permute.xlu0 %6485
  %6487 = vrot.lane.b32.xlu0 %v1542, 96
  %v6488 = vpop.permute.xlu0 %6487
  %6489 = vrot.lane.b32.xlu0 %v1543, 96
  %v6490 = vpop.permute.xlu0 %6489
  %6491 = vrot.lane.b32.xlu0 %v1544, 96
  %v6492 = vpop.permute.xlu0 %6491
  %6493 = vrot.lane.b32.xlu0 %v1545, 96
  %v6494 = vpop.permute.xlu0 %6493
  %6495 = vrot.lane.b32.xlu0 %v1546, 96
  %v6496 = vpop.permute.xlu0 %6495
  %6497 = vrot.lane.b32.xlu0 %v1547, 96
  %v6498 = vpop.permute.xlu0 %6497
  %6499 = vrot.lane.b32.xlu0 %v1548, 96
  %v6500 = vpop.permute.xlu0 %6499
  %6501 = vrot.lane.b32.xlu0 %v1549, 96
  %v6502 = vpop.permute.xlu0 %6501
  %6503 = vrot.lane.b32.xlu0 %v1550, 96
  %v6504 = vpop.permute.xlu0 %6503
  %6505 = vrot.lane.b32.xlu0 %v1551, 96
  %v6506 = vpop.permute.xlu0 %6505
  %6507 = vrot.lane.b32.xlu0 %v1552, 96
  %v6508 = vpop.permute.xlu0 %6507
  %6509 = vrot.lane.b32.xlu0 %v1553, 96
  %v6510 = vpop.permute.xlu0 %6509
  %6511 = vrot.lane.b32.xlu0 %v1554, 96
  %v6512 = vpop.permute.xlu0 %6511
  %6513 = vrot.lane.b32.xlu0 %v1555, 96
  %v6514 = vpop.permute.xlu0 %6513
  %6515 = vrot.lane.b32.xlu0 %v1556, 96
  %v6516 = vpop.permute.xlu0 %6515
  %6517 = vrot.lane.b32.xlu0 %v1557, 96
  %v6518 = vpop.permute.xlu0 %6517
  %6519 = vrot.lane.b32.xlu0 %v1558, 96
  %v6520 = vpop.permute.xlu0 %6519
  %6521 = vrot.lane.b32.xlu0 %v1559, 96
  %v6522 = vpop.permute.xlu0 %6521
  %6523 = vrot.lane.b32.xlu0 %v1560, 96
  %v6524 = vpop.permute.xlu0 %6523
  %6525 = vrot.lane.b32.xlu0 %v1561, 96
  %v6526 = vpop.permute.xlu0 %6525
  %6527 = vrot.lane.b32.xlu0 %v1562, 96
  %v6528 = vpop.permute.xlu0 %6527
  %6529 = vrot.lane.b32.xlu0 %v1563, 96
  %v6530 = vpop.permute.xlu0 %6529
  %6531 = vrot.lane.b32.xlu0 %v1564, 96
  %v6532 = vpop.permute.xlu0 %6531
  %6533 = vrot.lane.b32.xlu0 %v1565, 96
  %v6534 = vpop.permute.xlu0 %6533
  %6535 = vrot.lane.b32.xlu0 %v1566, 96
  %v6536 = vpop.permute.xlu0 %6535
  %6537 = vrot.lane.b32.xlu0 %v1567, 96
  %v6538 = vpop.permute.xlu0 %6537
  %6539 = vrot.lane.b32.xlu0 %v1568, 96
  %v6540 = vpop.permute.xlu0 %6539
  %6541 = vrot.lane.b32.xlu0 %v1569, 96
  %v6542 = vpop.permute.xlu0 %6541
  %6543 = vrot.lane.b32.xlu0 %v1570, 96
  %v6544 = vpop.permute.xlu0 %6543
  %6545 = vrot.lane.b32.xlu0 %v1571, 96
  %v6546 = vpop.permute.xlu0 %6545
  %6547 = vrot.lane.b32.xlu0 %v1572, 96
  %v6548 = vpop.permute.xlu0 %6547
  %6549 = vrot.lane.b32.xlu0 %v1573, 96
  %v6550 = vpop.permute.xlu0 %6549
  %6551 = vrot.lane.b32.xlu0 %v1574, 96
  %v6552 = vpop.permute.xlu0 %6551
  %6553 = vrot.lane.b32.xlu0 %v1575, 96
  %v6554 = vpop.permute.xlu0 %6553
  %6555 = vrot.lane.b32.xlu0 %v1576, 96
  %v6556 = vpop.permute.xlu0 %6555
  %6557 = vrot.lane.b32.xlu0 %v1577, 96
  %v6558 = vpop.permute.xlu0 %6557
  %6559 = vrot.lane.b32.xlu0 %v1578, 96
  %v6560 = vpop.permute.xlu0 %6559
  %6561 = vrot.lane.b32.xlu0 %v1579, 96
  %v6562 = vpop.permute.xlu0 %6561
  %6563 = vrot.lane.b32.xlu0 %v1580, 96
  %v6564 = vpop.permute.xlu0 %6563
  %6565 = vrot.lane.b32.xlu0 %v1581, 96
  %v6566 = vpop.permute.xlu0 %6565
  %6567 = vrot.lane.b32.xlu0 %v1582, 96
  %v6568 = vpop.permute.xlu0 %6567
  %6569 = vrot.lane.b32.xlu0 %v1583, 96
  %v6570 = vpop.permute.xlu0 %6569
  %6571 = vrot.lane.b32.xlu0 %v1584, 96
  %v6572 = vpop.permute.xlu0 %6571
  %6573 = vrot.lane.b32.xlu0 %v1585, 96
  %v6574 = vpop.permute.xlu0 %6573
  %6575 = vrot.lane.b32.xlu0 %v1586, 96
  %v6576 = vpop.permute.xlu0 %6575
  %6577 = vrot.lane.b32.xlu0 %v1587, 96
  %v6578 = vpop.permute.xlu0 %6577
  %6579 = vrot.lane.b32.xlu0 %v1588, 96
  %v6580 = vpop.permute.xlu0 %6579
  %6581 = vrot.lane.b32.xlu0 %v1589, 96
  %v6582 = vpop.permute.xlu0 %6581
  %6583 = vrot.lane.b32.xlu0 %v1590, 96
  %v6584 = vpop.permute.xlu0 %6583
  %6585 = vrot.lane.b32.xlu0 %v1591, 96
  %v6586 = vpop.permute.xlu0 %6585
  %6587 = vrot.lane.b32.xlu0 %v1592, 96
  %v6588 = vpop.permute.xlu0 %6587
  %6589 = vrot.lane.b32.xlu0 %v1593, 96
  %v6590 = vpop.permute.xlu0 %6589
  %6591 = vrot.lane.b32.xlu0 %v1594, 96
  %v6592 = vpop.permute.xlu0 %6591
  %6593 = vrot.lane.b32.xlu0 %v1595, 96
  %v6594 = vpop.permute.xlu0 %6593
  %6595 = vrot.lane.b32.xlu0 %v1596, 96
  %v6596 = vpop.permute.xlu0 %6595
  %6597 = vrot.lane.b32.xlu0 %v1597, 96
  %v6598 = vpop.permute.xlu0 %6597
  %6599 = vrot.lane.b32.xlu0 %v1598, 96
  %v6600 = vpop.permute.xlu0 %6599
  %6601 = vrot.lane.b32.xlu0 %v1599, 96
  %v6602 = vpop.permute.xlu0 %6601
  %6603 = vrot.lane.b32.xlu0 %v1600, 96
  %v6604 = vpop.permute.xlu0 %6603
  %6605 = vrot.lane.b32.xlu0 %v1601, 96
  %v6606 = vpop.permute.xlu0 %6605
  %6607 = vrot.lane.b32.xlu0 %v1602, 96
  %v6608 = vpop.permute.xlu0 %6607
  %6609 = vrot.lane.b32.xlu0 %v1603, 96
  %v6610 = vpop.permute.xlu0 %6609
  %6611 = vrot.lane.b32.xlu0 %v1604, 96
  %v6612 = vpop.permute.xlu0 %6611
  %6613 = vrot.lane.b32.xlu0 %v1605, 96
  %v6614 = vpop.permute.xlu0 %6613
  %6615 = vrot.lane.b32.xlu0 %v1606, 96
  %v6616 = vpop.permute.xlu0 %6615
  %6617 = vrot.lane.b32.xlu0 %v1607, 96
  %v6618 = vpop.permute.xlu0 %6617
  %6619 = vrot.lane.b32.xlu0 %v1608, 96
  %v6620 = vpop.permute.xlu0 %6619
  %6621 = vrot.lane.b32.xlu0 %v1609, 96
  %v6622 = vpop.permute.xlu0 %6621
  %6623 = vrot.lane.b32.xlu0 %v1610, 96
  %v6624 = vpop.permute.xlu0 %6623
  %6625 = vrot.lane.b32.xlu0 %v1611, 96
  %v6626 = vpop.permute.xlu0 %6625
  %6627 = vrot.lane.b32.xlu0 %v1612, 96
  %v6628 = vpop.permute.xlu0 %6627
  %6629 = vrot.lane.b32.xlu0 %v1613, 96
  %v6630 = vpop.permute.xlu0 %6629
  %6631 = vrot.lane.b32.xlu0 %v1614, 96
  %v6632 = vpop.permute.xlu0 %6631
  %6633 = vrot.lane.b32.xlu0 %v1615, 96
  %v6634 = vpop.permute.xlu0 %6633
  %6635 = vrot.lane.b32.xlu0 %v1616, 96
  %v6636 = vpop.permute.xlu0 %6635
  %6637 = vrot.lane.b32.xlu0 %v1617, 96
  %v6638 = vpop.permute.xlu0 %6637
  %6639 = vrot.lane.b32.xlu0 %v1618, 96
  %v6640 = vpop.permute.xlu0 %6639
  %6641 = vrot.lane.b32.xlu0 %v1619, 96
  %v6642 = vpop.permute.xlu0 %6641
  %6643 = vrot.lane.b32.xlu0 %v1620, 96
  %v6644 = vpop.permute.xlu0 %6643
  %6645 = vrot.lane.b32.xlu0 %v1621, 96
  %v6646 = vpop.permute.xlu0 %6645
  %6647 = vrot.lane.b32.xlu0 %v1622, 96
  %v6648 = vpop.permute.xlu0 %6647
  %6649 = vrot.lane.b32.xlu0 %v1623, 96
  %v6650 = vpop.permute.xlu0 %6649
  %6651 = vrot.lane.b32.xlu0 %v1624, 96
  %v6652 = vpop.permute.xlu0 %6651
  %6653 = vrot.lane.b32.xlu0 %v1625, 96
  %v6654 = vpop.permute.xlu0 %6653
  %v6783 = vadd.f32 %v6143, %v6400
  %v6784 = vadd.f32 %v6144, %v6402
  %v6785 = vadd.f32 %v6145, %v6404
  %v6786 = vadd.f32 %v6146, %v6406
  %v6787 = vadd.f32 %v6147, %v6408
  %v6788 = vadd.f32 %v6148, %v6410
  %v6789 = vadd.f32 %v6149, %v6412
  %v6790 = vadd.f32 %v6150, %v6414
  %v6791 = vadd.f32 %v6151, %v6416
  %v6792 = vadd.f32 %v6152, %v6418
  %v6793 = vadd.f32 %v6153, %v6420
  %v6794 = vadd.f32 %v6154, %v6422
  %v6795 = vadd.f32 %v6155, %v6424
  %v6796 = vadd.f32 %v6156, %v6426
  %v6797 = vadd.f32 %v6157, %v6428
  %v6798 = vadd.f32 %v6158, %v6430
  %v6799 = vadd.f32 %v6159, %v6432
  %v6800 = vadd.f32 %v6160, %v6434
  %v6801 = vadd.f32 %v6161, %v6436
  %v6802 = vadd.f32 %v6162, %v6438
  %v6803 = vadd.f32 %v6163, %v6440
  %v6804 = vadd.f32 %v6164, %v6442
  %v6805 = vadd.f32 %v6165, %v6444
  %v6806 = vadd.f32 %v6166, %v6446
  %v6807 = vadd.f32 %v6167, %v6448
  %v6808 = vadd.f32 %v6168, %v6450
  %v6809 = vadd.f32 %v6169, %v6452
  %v6810 = vadd.f32 %v6170, %v6454
  %v6811 = vadd.f32 %v6171, %v6456
  %v6812 = vadd.f32 %v6172, %v6458
  %v6813 = vadd.f32 %v6173, %v6460
  %v6814 = vadd.f32 %v6174, %v6462
  %v6815 = vadd.f32 %v6175, %v6464
  %v6816 = vadd.f32 %v6176, %v6466
  %v6817 = vadd.f32 %v6177, %v6468
  %v6818 = vadd.f32 %v6178, %v6470
  %v6819 = vadd.f32 %v6179, %v6472
  %v6820 = vadd.f32 %v6180, %v6474
  %v6821 = vadd.f32 %v6181, %v6476
  %v6822 = vadd.f32 %v6182, %v6478
  %v6823 = vadd.f32 %v6183, %v6480
  %v6824 = vadd.f32 %v6184, %v6482
  %v6825 = vadd.f32 %v6185, %v6484
  %v6826 = vadd.f32 %v6186, %v6486
  %v6827 = vadd.f32 %v6187, %v6488
  %v6828 = vadd.f32 %v6188, %v6490
  %v6829 = vadd.f32 %v6189, %v6492
  %v6830 = vadd.f32 %v6190, %v6494
  %v6831 = vadd.f32 %v6191, %v6496
  %v6832 = vadd.f32 %v6192, %v6498
  %v6833 = vadd.f32 %v6193, %v6500
  %v6834 = vadd.f32 %v6194, %v6502
  %v6835 = vadd.f32 %v6195, %v6504
  %v6836 = vadd.f32 %v6196, %v6506
  %v6837 = vadd.f32 %v6197, %v6508
  %v6838 = vadd.f32 %v6198, %v6510
  %v6839 = vadd.f32 %v6199, %v6512
  %v6840 = vadd.f32 %v6200, %v6514
  %v6841 = vadd.f32 %v6201, %v6516
  %v6842 = vadd.f32 %v6202, %v6518
  %v6843 = vadd.f32 %v6203, %v6520
  %v6844 = vadd.f32 %v6204, %v6522
  %v6845 = vadd.f32 %v6205, %v6524
  %v6846 = vadd.f32 %v6206, %v6526
  %v6847 = vadd.f32 %v6207, %v6528
  %v6848 = vadd.f32 %v6208, %v6530
  %v6849 = vadd.f32 %v6209, %v6532
  %v6850 = vadd.f32 %v6210, %v6534
  %v6851 = vadd.f32 %v6211, %v6536
  %v6852 = vadd.f32 %v6212, %v6538
  %v6853 = vadd.f32 %v6213, %v6540
  %v6854 = vadd.f32 %v6214, %v6542
  %v6855 = vadd.f32 %v6215, %v6544
  %v6856 = vadd.f32 %v6216, %v6546
  %v6857 = vadd.f32 %v6217, %v6548
  %v6858 = vadd.f32 %v6218, %v6550
  %v6859 = vadd.f32 %v6219, %v6552
  %v6860 = vadd.f32 %v6220, %v6554
  %v6861 = vadd.f32 %v6221, %v6556
  %v6862 = vadd.f32 %v6222, %v6558
  %v6863 = vadd.f32 %v6223, %v6560
  %v6864 = vadd.f32 %v6224, %v6562
  %v6865 = vadd.f32 %v6225, %v6564
  %v6866 = vadd.f32 %v6226, %v6566
  %v6867 = vadd.f32 %v6227, %v6568
  %v6868 = vadd.f32 %v6228, %v6570
  %v6869 = vadd.f32 %v6229, %v6572
  %v6870 = vadd.f32 %v6230, %v6574
  %v6871 = vadd.f32 %v6231, %v6576
  %v6872 = vadd.f32 %v6232, %v6578
  %v6873 = vadd.f32 %v6233, %v6580
  %v6874 = vadd.f32 %v6234, %v6582
  %v6875 = vadd.f32 %v6235, %v6584
  %v6876 = vadd.f32 %v6236, %v6586
  %v6877 = vadd.f32 %v6237, %v6588
  %v6878 = vadd.f32 %v6238, %v6590
  %v6879 = vadd.f32 %v6239, %v6592
  %v6880 = vadd.f32 %v6240, %v6594
  %v6881 = vadd.f32 %v6241, %v6596
  %v6882 = vadd.f32 %v6242, %v6598
  %v6883 = vadd.f32 %v6243, %v6600
  %v6884 = vadd.f32 %v6244, %v6602
  %v6885 = vadd.f32 %v6245, %v6604
  %v6886 = vadd.f32 %v6246, %v6606
  %v6887 = vadd.f32 %v6247, %v6608
  %v6888 = vadd.f32 %v6248, %v6610
  %v6889 = vadd.f32 %v6249, %v6612
  %v6890 = vadd.f32 %v6250, %v6614
  %v6891 = vadd.f32 %v6251, %v6616
  %v6892 = vadd.f32 %v6252, %v6618
  %v6893 = vadd.f32 %v6253, %v6620
  %v6894 = vadd.f32 %v6254, %v6622
  %v6895 = vadd.f32 %v6255, %v6624
  %v6896 = vadd.f32 %v6256, %v6626
  %v6897 = vadd.f32 %v6257, %v6628
  %v6898 = vadd.f32 %v6258, %v6630
  %v6899 = vadd.f32 %v6259, %v6632
  %v6900 = vadd.f32 %v6260, %v6634
  %v6901 = vadd.f32 %v6261, %v6636
  %v6902 = vadd.f32 %v6262, %v6638
  %v6903 = vadd.f32 %v6263, %v6640
  %v6904 = vadd.f32 %v6264, %v6642
  %v6905 = vadd.f32 %v6265, %v6644
  %v6906 = vadd.f32 %v6266, %v6646
  %v6907 = vadd.f32 %v6267, %v6648
  %v6908 = vadd.f32 %v6268, %v6650
  %v6909 = vadd.f32 %v6269, %v6652
  %v6910 = vadd.f32 %v6270, %v6654
  %6911 = vst.msk [vmem:[%s4] sm:$0xff] %vm5158, %v6783
  %6912 = vst.msk [vmem:[%s4 + $0x8] sm:$0xff] %vm5158, %v6784
  %6913 = vst.msk [vmem:[%s4 + $0x10] sm:$0xff] %vm5158, %v6785
  %6914 = vst.msk [vmem:[%s4 + $0x18] sm:$0xff] %vm5158, %v6786
  %6915 = vst.msk [vmem:[%s4 + $0x20] sm:$0xff] %vm5158, %v6787
  %6916 = vst.msk [vmem:[%s4 + $0x28] sm:$0xff] %vm5158, %v6788
  %6917 = vst.msk [vmem:[%s4 + $0x30] sm:$0xff] %vm5158, %v6789
  %6918 = vst.msk [vmem:[%s4 + $0x38] sm:$0xff] %vm5158, %v6790
  %6919 = vst.msk [vmem:[%s4 + $0x40] sm:$0xff] %vm5158, %v6791
  %6920 = vst.msk [vmem:[%s4 + $0x48] sm:$0xff] %vm5158, %v6792
  %6921 = vst.msk [vmem:[%s4 + $0x50] sm:$0xff] %vm5158, %v6793
  %6922 = vst.msk [vmem:[%s4 + $0x58] sm:$0xff] %vm5158, %v6794
  %6923 = vst.msk [vmem:[%s4 + $0x60] sm:$0xff] %vm5158, %v6795
  %6924 = vst.msk [vmem:[%s4 + $0x68] sm:$0xff] %vm5158, %v6796
  %6925 = vst.msk [vmem:[%s4 + $0x70] sm:$0xff] %vm5158, %v6797
  %6926 = vst.msk [vmem:[%s4 + $0x78] sm:$0xff] %vm5158, %v6798
  %6927 = vst.msk [vmem:[%s4 + $0x80] sm:$0xff] %vm5158, %v6799
  %6928 = vst.msk [vmem:[%s4 + $0x88] sm:$0xff] %vm5158, %v6800
  %6929 = vst.msk [vmem:[%s4 + $0x90] sm:$0xff] %vm5158, %v6801
  %6930 = vst.msk [vmem:[%s4 + $0x98] sm:$0xff] %vm5158, %v6802
  %6931 = vst.msk [vmem:[%s4 + $0xa0] sm:$0xff] %vm5158, %v6803
  %6932 = vst.msk [vmem:[%s4 + $0xa8] sm:$0xff] %vm5158, %v6804
  %6933 = vst.msk [vmem:[%s4 + $0xb0] sm:$0xff] %vm5158, %v6805
  %6934 = vst.msk [vmem:[%s4 + $0xb8] sm:$0xff] %vm5158, %v6806
  %6935 = vst.msk [vmem:[%s4 + $0xc0] sm:$0xff] %vm5158, %v6807
  %6936 = vst.msk [vmem:[%s4 + $0xc8] sm:$0xff] %vm5158, %v6808
  %6937 = vst.msk [vmem:[%s4 + $0xd0] sm:$0xff] %vm5158, %v6809
  %6938 = vst.msk [vmem:[%s4 + $0xd8] sm:$0xff] %vm5158, %v6810
  %6939 = vst.msk [vmem:[%s4 + $0xe0] sm:$0xff] %vm5158, %v6811
  %6940 = vst.msk [vmem:[%s4 + $0xe8] sm:$0xff] %vm5158, %v6812
  %6941 = vst.msk [vmem:[%s4 + $0xf0] sm:$0xff] %vm5158, %v6813
  %6942 = vst.msk [vmem:[%s4 + $0xf8] sm:$0xff] %vm5158, %v6814
  %6943 = vst.msk [vmem:[%s4 + $0x100] sm:$0xff] %vm5158, %v6815
  %6944 = vst.msk [vmem:[%s4 + $0x108] sm:$0xff] %vm5158, %v6816
  %6945 = vst.msk [vmem:[%s4 + $0x110] sm:$0xff] %vm5158, %v6817
  %6946 = vst.msk [vmem:[%s4 + $0x118] sm:$0xff] %vm5158, %v6818
  %6947 = vst.msk [vmem:[%s4 + $0x120] sm:$0xff] %vm5158, %v6819
  %6948 = vst.msk [vmem:[%s4 + $0x128] sm:$0xff] %vm5158, %v6820
  %6949 = vst.msk [vmem:[%s4 + $0x130] sm:$0xff] %vm5158, %v6821
  %6950 = vst.msk [vmem:[%s4 + $0x138] sm:$0xff] %vm5158, %v6822
  %6951 = vst.msk [vmem:[%s4 + $0x140] sm:$0xff] %vm5158, %v6823
  %6952 = vst.msk [vmem:[%s4 + $0x148] sm:$0xff] %vm5158, %v6824
  %6953 = vst.msk [vmem:[%s4 + $0x150] sm:$0xff] %vm5158, %v6825
  %6954 = vst.msk [vmem:[%s4 + $0x158] sm:$0xff] %vm5158, %v6826
  %6955 = vst.msk [vmem:[%s4 + $0x160] sm:$0xff] %vm5158, %v6827
  %6956 = vst.msk [vmem:[%s4 + $0x168] sm:$0xff] %vm5158, %v6828
  %6957 = vst.msk [vmem:[%s4 + $0x170] sm:$0xff] %vm5158, %v6829
  %6958 = vst.msk [vmem:[%s4 + $0x178] sm:$0xff] %vm5158, %v6830
  %6959 = vst.msk [vmem:[%s4 + $0x180] sm:$0xff] %vm5158, %v6831
  %6960 = vst.msk [vmem:[%s4 + $0x188] sm:$0xff] %vm5158, %v6832
  %6961 = vst.msk [vmem:[%s4 + $0x190] sm:$0xff] %vm5158, %v6833
  %6962 = vst.msk [vmem:[%s4 + $0x198] sm:$0xff] %vm5158, %v6834
  %6963 = vst.msk [vmem:[%s4 + $0x1a0] sm:$0xff] %vm5158, %v6835
  %6964 = vst.msk [vmem:[%s4 + $0x1a8] sm:$0xff] %vm5158, %v6836
  %6965 = vst.msk [vmem:[%s4 + $0x1b0] sm:$0xff] %vm5158, %v6837
  %6966 = vst.msk [vmem:[%s4 + $0x1b8] sm:$0xff] %vm5158, %v6838
  %6967 = vst.msk [vmem:[%s4 + $0x1c0] sm:$0xff] %vm5158, %v6839
  %6968 = vst.msk [vmem:[%s4 + $0x1c8] sm:$0xff] %vm5158, %v6840
  %6969 = vst.msk [vmem:[%s4 + $0x1d0] sm:$0xff] %vm5158, %v6841
  %6970 = vst.msk [vmem:[%s4 + $0x1d8] sm:$0xff] %vm5158, %v6842
  %6971 = vst.msk [vmem:[%s4 + $0x1e0] sm:$0xff] %vm5158, %v6843
  %6972 = vst.msk [vmem:[%s4 + $0x1e8] sm:$0xff] %vm5158, %v6844
  %6973 = vst.msk [vmem:[%s4 + $0x1f0] sm:$0xff] %vm5158, %v6845
  %6974 = vst.msk [vmem:[%s4 + $0x1f8] sm:$0xff] %vm5158, %v6846
  %6975 = vst.msk [vmem:[%s4 + $0x200] sm:$0xff] %vm5158, %v6847
  %6976 = vst.msk [vmem:[%s4 + $0x208] sm:$0xff] %vm5158, %v6848
  %6977 = vst.msk [vmem:[%s4 + $0x210] sm:$0xff] %vm5158, %v6849
  %6978 = vst.msk [vmem:[%s4 + $0x218] sm:$0xff] %vm5158, %v6850
  %6979 = vst.msk [vmem:[%s4 + $0x220] sm:$0xff] %vm5158, %v6851
  %6980 = vst.msk [vmem:[%s4 + $0x228] sm:$0xff] %vm5158, %v6852
  %6981 = vst.msk [vmem:[%s4 + $0x230] sm:$0xff] %vm5158, %v6853
  %6982 = vst.msk [vmem:[%s4 + $0x238] sm:$0xff] %vm5158, %v6854
  %6983 = vst.msk [vmem:[%s4 + $0x240] sm:$0xff] %vm5158, %v6855
  %6984 = vst.msk [vmem:[%s4 + $0x248] sm:$0xff] %vm5158, %v6856
  %6985 = vst.msk [vmem:[%s4 + $0x250] sm:$0xff] %vm5158, %v6857
  %6986 = vst.msk [vmem:[%s4 + $0x258] sm:$0xff] %vm5158, %v6858
  %6987 = vst.msk [vmem:[%s4 + $0x260] sm:$0xff] %vm5158, %v6859
  %6988 = vst.msk [vmem:[%s4 + $0x268] sm:$0xff] %vm5158, %v6860
  %6989 = vst.msk [vmem:[%s4 + $0x270] sm:$0xff] %vm5158, %v6861
  %6990 = vst.msk [vmem:[%s4 + $0x278] sm:$0xff] %vm5158, %v6862
  %6991 = vst.msk [vmem:[%s4 + $0x280] sm:$0xff] %vm5158, %v6863
  %6992 = vst.msk [vmem:[%s4 + $0x288] sm:$0xff] %vm5158, %v6864
  %6993 = vst.msk [vmem:[%s4 + $0x290] sm:$0xff] %vm5158, %v6865
  %6994 = vst.msk [vmem:[%s4 + $0x298] sm:$0xff] %vm5158, %v6866
  %6995 = vst.msk [vmem:[%s4 + $0x2a0] sm:$0xff] %vm5158, %v6867
  %6996 = vst.msk [vmem:[%s4 + $0x2a8] sm:$0xff] %vm5158, %v6868
  %6997 = vst.msk [vmem:[%s4 + $0x2b0] sm:$0xff] %vm5158, %v6869
  %6998 = vst.msk [vmem:[%s4 + $0x2b8] sm:$0xff] %vm5158, %v6870
  %6999 = vst.msk [vmem:[%s4 + $0x2c0] sm:$0xff] %vm5158, %v6871
  %7000 = vst.msk [vmem:[%s4 + $0x2c8] sm:$0xff] %vm5158, %v6872
  %7001 = vst.msk [vmem:[%s4 + $0x2d0] sm:$0xff] %vm5158, %v6873
  %7002 = vst.msk [vmem:[%s4 + $0x2d8] sm:$0xff] %vm5158, %v6874
  %7003 = vst.msk [vmem:[%s4 + $0x2e0] sm:$0xff] %vm5158, %v6875
  %7004 = vst.msk [vmem:[%s4 + $0x2e8] sm:$0xff] %vm5158, %v6876
  %7005 = vst.msk [vmem:[%s4 + $0x2f0] sm:$0xff] %vm5158, %v6877
  %7006 = vst.msk [vmem:[%s4 + $0x2f8] sm:$0xff] %vm5158, %v6878
  %7007 = vst.msk [vmem:[%s4 + $0x300] sm:$0xff] %vm5158, %v6879
  %7008 = vst.msk [vmem:[%s4 + $0x308] sm:$0xff] %vm5158, %v6880
  %7009 = vst.msk [vmem:[%s4 + $0x310] sm:$0xff] %vm5158, %v6881
  %7010 = vst.msk [vmem:[%s4 + $0x318] sm:$0xff] %vm5158, %v6882
  %7011 = vst.msk [vmem:[%s4 + $0x320] sm:$0xff] %vm5158, %v6883
  %7012 = vst.msk [vmem:[%s4 + $0x328] sm:$0xff] %vm5158, %v6884
  %7013 = vst.msk [vmem:[%s4 + $0x330] sm:$0xff] %vm5158, %v6885
  %7014 = vst.msk [vmem:[%s4 + $0x338] sm:$0xff] %vm5158, %v6886
  %7015 = vst.msk [vmem:[%s4 + $0x340] sm:$0xff] %vm5158, %v6887
  %7016 = vst.msk [vmem:[%s4 + $0x348] sm:$0xff] %vm5158, %v6888
  %7017 = vst.msk [vmem:[%s4 + $0x350] sm:$0xff] %vm5158, %v6889
  %7018 = vst.msk [vmem:[%s4 + $0x358] sm:$0xff] %vm5158, %v6890
  %7019 = vst.msk [vmem:[%s4 + $0x360] sm:$0xff] %vm5158, %v6891
  %7020 = vst.msk [vmem:[%s4 + $0x368] sm:$0xff] %vm5158, %v6892
  %7021 = vst.msk [vmem:[%s4 + $0x370] sm:$0xff] %vm5158, %v6893
  %7022 = vst.msk [vmem:[%s4 + $0x378] sm:$0xff] %vm5158, %v6894
  %7023 = vst.msk [vmem:[%s4 + $0x380] sm:$0xff] %vm5158, %v6895
  %7024 = vst.msk [vmem:[%s4 + $0x388] sm:$0xff] %vm5158, %v6896
  %7025 = vst.msk [vmem:[%s4 + $0x390] sm:$0xff] %vm5158, %v6897
  %7026 = vst.msk [vmem:[%s4 + $0x398] sm:$0xff] %vm5158, %v6898
  %7027 = vst.msk [vmem:[%s4 + $0x3a0] sm:$0xff] %vm5158, %v6899
  %7028 = vst.msk [vmem:[%s4 + $0x3a8] sm:$0xff] %vm5158, %v6900
  %7029 = vst.msk [vmem:[%s4 + $0x3b0] sm:$0xff] %vm5158, %v6901
  %7030 = vst.msk [vmem:[%s4 + $0x3b8] sm:$0xff] %vm5158, %v6902
  %7031 = vst.msk [vmem:[%s4 + $0x3c0] sm:$0xff] %vm5158, %v6903
  %7032 = vst.msk [vmem:[%s4 + $0x3c8] sm:$0xff] %vm5158, %v6904
  %7033 = vst.msk [vmem:[%s4 + $0x3d0] sm:$0xff] %vm5158, %v6905
  %7034 = vst.msk [vmem:[%s4 + $0x3d8] sm:$0xff] %vm5158, %v6906
  %7035 = vst.msk [vmem:[%s4 + $0x3e0] sm:$0xff] %vm5158, %v6907
  %7036 = vst.msk [vmem:[%s4 + $0x3e8] sm:$0xff] %vm5158, %v6908
  %7037 = vst.msk [vmem:[%s4 + $0x3f0] sm:$0xff] %vm5158, %v6909
  %7038 = vst.msk [vmem:[%s4 + $0x3f8] sm:$0xff] %vm5158, %v6910
  // Predicated region
  $region18: #{tpu_custom_call.1} parent=0 // pred_check
    _
  $region19: #{tpu_custom_call.1} parent=0 // pred_check_branch
    %7040 = sbr.rel (0) target = $region21
  $region20: #{tpu_custom_call.1} parent=0 // pred_region
    _
  $region21: #{tpu_custom_call.1} parent=0 // pred_fallthru
    _
  // Predicated region
  $region22: #{tpu_custom_call.1} parent=0 // pred_check
    _
  $region23: #{tpu_custom_call.1} parent=0 // pred_check_branch
    %7042 = sbr.rel (0) target = $region25
  $region24: #{tpu_custom_call.1} parent=0 // pred_region
    _
  $region25: #{tpu_custom_call.1} parent=0 // pred_fallthru
    _

</llo_original>
